<compile_context>
chip_gen: v7x
topology: tpu7x:2x2x1
jax: 0.10.0
libtpu: 0.0.40
codegen_flags: <defaults>
</compile_context>

<pallas_src>
import functools

import jax
import jax.numpy as jnp
from jax import lax
from jax.experimental import pallas as pl
from jax.experimental.pallas import tpu as pltpu

_SQRT_2_OVER_PI = 0.7978845608028654


def _gelu(x):
    # activation == nn.GELU(approximate='tanh')
    return 0.5 * x * (1.0 + jnp.tanh(_SQRT_2_OVER_PI * (x + 0.044715 * x * x * x)))


# ----------------------------------------------------------------------------
# Shared in-kernel helpers.
# ----------------------------------------------------------------------------
def _conv1_rows(x_rows, w1_ref, b1_ref):
    """1x1 conv (+folded BN) + GELU over an (R, Wc, Cin) block -> (R, Wc, C) f32.

    bf16 MXU matmul, f32 accumulation, f32 bias/GELU.
    """
    R, Wc, Cin = x_rows.shape
    xb = x_rows.astype(jnp.bfloat16).reshape(R * Wc, Cin)
    y = jnp.dot(xb, w1_ref[...], preferred_element_type=jnp.float32)
    y = _gelu(y + b1_ref[...])
    return y.reshape(R, Wc, y.shape[-1])


def _finish_tile(acc, b2_ref, w3_ref, b3_ref, o_ref):
    """conv2 bias + GELU, then conv3 (1x1 + folded BN) and store the out tile."""
    tro, wo, cdim = acc.shape
    z = _gelu(acc + b2_ref[...])                       # f32 elementwise
    z2 = z.reshape(tro * wo, cdim).astype(jnp.bfloat16)
    o = jnp.dot(z2, w3_ref[...], preferred_element_type=jnp.float32)
    o = o + b3_ref[...]
    o_ref[0] = o.astype(o_ref.dtype)


# ----------------------------------------------------------------------------
# Fused kernel, stride 2 (the common PatchMerging case).
#
# x is passed as (B, Hq, 2, Wq, 2*dim) where Hq=H/2, Wq=W/2 (a free, row-major
# reshape):  x5[b, p, q, wq, :dim]  = x[b, 2p+q, 2wq,   :]   (even column)
#            x5[b, p, q, wq, dim:]  = x[b, 2p+q, 2wq+1, :]   (odd  column)
# Per grid step (b, r) the kernel produces output rows [r*tro, (r+1)*tro).
# ----------------------------------------------------------------------------
def _fused_s2_kernel(x_ref, w1_ref, b1_ref, w2_ref, b2_ref, w3_ref, b3_ref,
                     o_ref, ye_e, ye_o, yo_e, yo_o, *, tro, wo, dim, cdim):
    r = pl.program_id(1)
    ro0 = r * tro

    def conv1_cols(x_rows):
        # x_rows: (n, Wq, 2*dim) -> conv1(+BN)+GELU of even / odd columns.
        ye = _conv1_rows(x_rows[..., :dim], w1_ref, b1_ref)
        yo = _conv1_rows(x_rows[..., dim:], w1_ref, b1_ref)
        return ye, yo

    # conv1 over the even input rows 2*(ro0+t) of this tile.
    ve, vo = conv1_cols(x_ref[0, pl.ds(ro0, tro), 0, :, :])
    ye_e[...] = ve
    ye_o[:, 1:wo + 1, :] = vo
    # conv1 over the odd input rows 2*(ro0+t)+1.
    ve, vo = conv1_cols(x_ref[0, pl.ds(ro0, tro), 1, :, :])
    yo_e[1:tro + 1, :, :] = ve
    yo_o[1:tro + 1, 1:wo + 1, :] = vo

    # Top halo: odd input row 2*ro0-1 (zero pad at the image top, else recompute).
    @pl.when(r == 0)
    def _():
        yo_e[0:1, :, :] = jnp.zeros((1, wo, cdim), jnp.float32)
        yo_o[0:1, :, :] = jnp.zeros((1, wo + 1, cdim), jnp.float32)

    @pl.when(r > 0)
    def _():
        hve, hvo = conv1_cols(x_ref[0, pl.ds(ro0 - 1, 1), 1, :, :])
        yo_e[0:1, :, :] = hve
        yo_o[0:1, 1:wo + 1, :] = hvo

    # Left zero-pad column (odd column index -1 of conv2's padding).
    ye_o[:, 0:1, :] = jnp.zeros((tro, 1, cdim), jnp.float32)
    yo_o[:, 0:1, :] = jnp.zeros((tro + 1, 1, cdim), jnp.float32)

    # Depthwise 3x3 / stride 2 / pad 1: 9 taps, all static scratch slices.
    #   dy=0 -> odd rows [0:tro], dy=1 -> even rows [0:tro], dy=2 -> odd rows [1:tro+1]
    #   dx=0 -> odd cols (shifted, cols [0:wo]), dx=1 -> even cols, dx=2 -> odd cols [1:wo+1]
    w2v = w2_ref[...]                                      # (9, C) resident taps
    acc = jnp.zeros((tro, wo, cdim), jnp.float32)
    for dy in range(3):
        if dy == 1:
            se, so, r0 = ye_e, ye_o, 0
        else:
            se, so, r0 = yo_e, yo_o, (0 if dy == 0 else 1)
        for dx in range(3):
            if dx == 1:
                win = se[r0:r0 + tro, 0:wo, :]
            elif dx == 0:
                win = so[r0:r0 + tro, 0:wo, :]
            else:
                win = so[r0:r0 + tro, 1:1 + wo, :]
            acc = acc + win * w2v[dy * 3 + dx:dy * 3 + dx + 1, :]

    _finish_tile(acc, b2_ref, w3_ref, b3_ref, o_ref)


# ----------------------------------------------------------------------------
# Fused kernel, stride 1 (out_dim in {320, 448, 576}).
# ----------------------------------------------------------------------------
def _fused_s1_kernel(x_ref, w1_ref, b1_ref, w2_ref, b2_ref, w3_ref, b3_ref,
                     o_ref, ypad, *, tro, wimg, cdim):
    r = pl.program_id(1)
    n_rt = pl.num_programs(1)
    ro0 = r * tro

    # conv1(+BN)+GELU for this tile's rows, into the zero-padded scratch.
    ypad[1:tro + 1, 1:wimg + 1, :] = _conv1_rows(
        x_ref[0, pl.ds(ro0, tro), :, :], w1_ref, b1_ref)

    # Top halo row (ro0 - 1): zero pad at the image top, else recompute.
    @pl.when(r == 0)
    def _():
        ypad[0:1, :, :] = jnp.zeros((1, wimg + 2, cdim), jnp.float32)

    @pl.when(r > 0)
    def _():
        ypad[0:1, 1:wimg + 1, :] = _conv1_rows(
            x_ref[0, pl.ds(ro0 - 1, 1), :, :], w1_ref, b1_ref)

    # Bottom halo row (ro0 + tro): zero pad at the image bottom, else recompute.
    @pl.when(r == n_rt - 1)
    def _():
        ypad[tro + 1:tro + 2, :, :] = jnp.zeros((1, wimg + 2, cdim), jnp.float32)

    @pl.when(r < n_rt - 1)
    def _():
        ypad[tro + 1:tro + 2, 1:wimg + 1, :] = _conv1_rows(
            x_ref[0, pl.ds(ro0 + tro, 1), :, :], w1_ref, b1_ref)

    # Left / right zero-pad columns.
    ypad[:, 0:1, :] = jnp.zeros((tro + 2, 1, cdim), jnp.float32)
    ypad[:, wimg + 1:wimg + 2, :] = jnp.zeros((tro + 2, 1, cdim), jnp.float32)

    # Depthwise 3x3 / stride 1 / pad 1: 9 taps, all static scratch slices.
    w2v = w2_ref[...]
    acc = jnp.zeros((tro, wimg, cdim), jnp.float32)
    for dy in range(3):
        for dx in range(3):
            win = ypad[dy:dy + tro, dx:dx + wimg, :]
            acc = acc + win * w2v[dy * 3 + dx:dy * 3 + dx + 1, :]

    _finish_tile(acc, b2_ref, w3_ref, b3_ref, o_ref)


# ----------------------------------------------------------------------------
# Row-tile selection: divisor of Ho, (tro*Wo) lane/sublane friendly, and a
# bounded f32 accumulator so the depthwise stage does not spill.
# ----------------------------------------------------------------------------
def _pick_row_tile(Ho, Wo, C, max_rows=8, acc_budget=128 * 1024):
    valid = [t for t in range(1, Ho + 1)
             if Ho % t == 0 and ((t * Wo) % 8 == 0 or t == Ho)]
    fit = [t for t in valid if t <= max_rows and t * Wo * C * 4 <= acc_budget]
    if fit:
        return max(fit)
    return min(valid)


# ----------------------------------------------------------------------------
# Forward pass: one fused pallas_call over (batch, output-row tiles).
# ----------------------------------------------------------------------------
def patch_merging_forward(x, params, resolution, stride_c):
    B, L, dim = x.shape
    H, W = resolution
    assert L == H * W
    C = params["b1"].shape[-1]

    if stride_c == 2:
        # TODO(synk): support odd H/W with stride 2 (needs in-kernel edge masks).
        assert H % 2 == 0 and W % 2 == 0, "stride-2 kernel requires even H and W"
        Hq, Wq = H // 2, W // 2
        Ho, Wo = Hq, Wq
        tro = _pick_row_tile(Ho, Wo, C)
        x_in = x.reshape(B, Hq, 2, Wq, 2 * dim)        # free, row-major reshape
        kernel = functools.partial(_fused_s2_kernel, tro=tro, wo=Wo, dim=dim, cdim=C)
        x_spec = pl.BlockSpec((1, Hq, 2, Wq, 2 * dim), lambda b, r: (b, 0, 0, 0, 0))
        scratch = [
            pltpu.VMEM((tro, Wq, C), jnp.float32),          # even rows, even cols
            pltpu.VMEM((tro, Wq + 1, C), jnp.float32),      # even rows, odd cols (+pad col)
            pltpu.VMEM((tro + 1, Wq, C), jnp.float32),      # odd rows (+halo), even cols
            pltpu.VMEM((tro + 1, Wq + 1, C), jnp.float32),  # odd rows (+halo), odd cols
        ]
    else:
        Ho, Wo = H, W
        tro = _pick_row_tile(Ho, Wo, C)
        x_in = x.reshape(B, H, W, dim)
        kernel = functools.partial(_fused_s1_kernel, tro=tro, wimg=W, cdim=C)
        x_spec = pl.BlockSpec((1, H, W, dim), lambda b, r: (b, 0, 0, 0))
        scratch = [pltpu.VMEM((tro + 2, W + 2, C), jnp.float32)]

    n_rt = Ho // tro
    weight_specs = [
        pl.BlockSpec((dim, C), lambda b, r: (0, 0)),   # w1 (bf16)
        pl.BlockSpec((1, C), lambda b, r: (0, 0)),     # b1
        pl.BlockSpec((9, C), lambda b, r: (0, 0)),     # w2 depthwise taps
        pl.BlockSpec((1, C), lambda b, r: (0, 0)),     # b2
        pl.BlockSpec((C, C), lambda b, r: (0, 0)),     # w3 (bf16)
        pl.BlockSpec((1, C), lambda b, r: (0, 0)),     # b3
    ]

    out = pl.pallas_call(
        kernel,
        out_shape=jax.ShapeDtypeStruct((B, Ho * Wo, C), x.dtype),
        grid_spec=pltpu.PrefetchScalarGridSpec(
            num_scalar_prefetch=0,
            grid=(B, n_rt),
            in_specs=[x_spec] + weight_specs,
            out_specs=pl.BlockSpec((1, tro * Wo, C), lambda b, r: (b, r, 0)),
            scratch_shapes=scratch,
        ),
        compiler_params=pltpu.CompilerParams(
            dimension_semantics=("parallel", "parallel"),
            vmem_limit_bytes=32 * 1024 * 1024,
        ),
    )(x_in, params["w1"], params["b1"], params["w2"], params["b2"],
      params["w3"], params["b3"])
    return out


# ----------------------------------------------------------------------------
# Parameter init (deterministic, Conv2dBN = conv(no bias) + BN folded).
# ----------------------------------------------------------------------------
def init_params(key, dim, out_dim, eps=1e-5):
    ks = jax.random.split(key, 15)

    def bn_fold(w, i0):
        gamma = 1.0 + 0.1 * jax.random.normal(ks[i0], (out_dim,), jnp.float32)
        beta = 0.1 * jax.random.normal(ks[i0 + 1], (out_dim,), jnp.float32)
        mean = 0.1 * jax.random.normal(ks[i0 + 2], (out_dim,), jnp.float32)
        var = jax.random.uniform(ks[i0 + 3], (out_dim,), jnp.float32, 0.5, 1.5)
        scale = gamma / jnp.sqrt(var + eps)
        return w * scale, beta - mean * scale

    w1 = 0.1 * jax.random.normal(ks[0], (dim, out_dim), jnp.float32)      # 1x1
    w2 = 0.1 * jax.random.normal(ks[1], (3, 3, out_dim), jnp.float32)     # dw 3x3
    w3 = 0.1 * jax.random.normal(ks[2], (out_dim, out_dim), jnp.float32)  # 1x1

    w1f, b1f = bn_fold(w1, 3)
    w2f, b2f = bn_fold(w2, 7)
    w3f, b3f = bn_fold(w3, 11)

    return dict(
        w1=w1f.astype(jnp.bfloat16), b1=b1f.reshape(1, out_dim),
        w2=w2f.reshape(9, out_dim), b2=b2f.reshape(1, out_dim),
        w3=w3f.astype(jnp.bfloat16), b3=b3f.reshape(1, out_dim),
    )


# ----------------------------------------------------------------------------
# Pure-JAX reference (mirrors the kernel's bf16 matmul inputs / f32 accumulate).
# ----------------------------------------------------------------------------
def reference_forward(x, params, resolution, stride_c):
    B, L, dim = x.shape
    H, W = resolution
    C = params["b1"].shape[-1]
    hp = lax.Precision.HIGHEST
    f32 = lambda a: a.astype(jnp.float32)

    xi = f32(x.astype(jnp.bfloat16)).reshape(B, H, W, dim)
    y = _gelu(jnp.einsum("bhwc,cd->bhwd", xi, f32(params["w1"]), precision=hp)
              + params["b1"].reshape(C))

    w2_hwio = params["w2"].reshape(3, 3, 1, C)
    z = lax.conv_general_dilated(
        y, w2_hwio, (stride_c, stride_c), ((1, 1), (1, 1)),
        dimension_numbers=("NHWC", "HWIO", "NHWC"),
        feature_group_count=C, precision=hp)
    z = _gelu(z + params["b2"].reshape(1, 1, 1, C))

    o = jnp.einsum("bhwc,cd->bhwd", f32(z.astype(jnp.bfloat16)),
                   f32(params["w3"]), precision=hp) + params["b3"].reshape(C)
    return o.reshape(B, -1, C)


def _run_case(key, B, dim, out_dim, H, W):
    stride_c = 1 if out_dim in (320, 448, 576) else 2   # the module's rule
    kx, kp = jax.random.split(key)
    x = jax.random.normal(kx, (B, H * W, dim), jnp.float32)
    params = init_params(kp, dim, out_dim)

    out = jax.block_until_ready(patch_merging_forward(x, params, (H, W), stride_c))

    Ho = (H + 2 - 3) // stride_c + 1
    Wo = (W + 2 - 3) // stride_c + 1
    assert out.shape == (B, Ho * Wo, out_dim), out.shape

    ref = reference_forward(x, params, (H, W), stride_c)
    if not jnp.allclose(out, ref, atol=1e-2, rtol=1e-2):
        raise AssertionError(
            f"mismatch (stride={stride_c}): max abs err "
            f"{float(jnp.max(jnp.abs(out - ref)))}")


if __name__ == "__main__":
    key = jax.random.PRNGKey(0)
    k1, k2 = jax.random.split(key)

    # stride-2 case (default PatchMerging): exercises the phase-split + halo path.
    _run_case(k1, B=2, dim=64, out_dim=128, H=32, W=32)

    # stride-1 case (out_dim == 320 per the module's rule).
    _run_case(k2, B=1, dim=32, out_dim=320, H=16, W=16)

    print("KERNEL_OK")
</pallas_src>

<mosaic_0001>
module attributes {stable_mosaic.version = 11 : i64} {
  func.func @_fused_s2_kernel(%arg0: i32, %arg1: i32, %arg2: memref<1x16x2x16x128xf32, #tpu.memory_space<vmem>>, %arg3: memref<64x128xbf16, #tpu.memory_space<vmem>>, %arg4: memref<1x128xf32, #tpu.memory_space<vmem>>, %arg5: memref<9x128xf32, #tpu.memory_space<vmem>>, %arg6: memref<1x128xf32, #tpu.memory_space<vmem>>, %arg7: memref<128x128xbf16, #tpu.memory_space<vmem>>, %arg8: memref<1x128xf32, #tpu.memory_space<vmem>>, %arg9: memref<1x128x128xf32, #tpu.memory_space<vmem>>, %arg10: memref<8x16x128xf32, #tpu.memory_space<vmem>>, %arg11: memref<8x17x128xf32, #tpu.memory_space<vmem>>, %arg12: memref<9x16x128xf32, #tpu.memory_space<vmem>>, %arg13: memref<9x17x128xf32, #tpu.memory_space<vmem>>) attributes {dimension_semantics = [#tpu.dimension_semantics<parallel>, #tpu.dimension_semantics<parallel>], iteration_bounds = array<i64: 2, 2>, scalar_prefetch = 0 : i64, scratch_operands = 4 : i64, tpu.core_type = #tpu.core_type<tc>, window_params = [{transform_indices = @transform_0, window_bounds = array<i64: 1, 16, 2, 16, 128>}, {pipeline_mode = #tpu.pipeline_mode<synchronous>, transform_indices = @transform_1, window_bounds = array<i64: 64, 128>}, {pipeline_mode = #tpu.pipeline_mode<synchronous>, transform_indices = @transform_2, window_bounds = array<i64: 1, 128>}, {pipeline_mode = #tpu.pipeline_mode<synchronous>, transform_indices = @transform_3, window_bounds = array<i64: 9, 128>}, {pipeline_mode = #tpu.pipeline_mode<synchronous>, transform_indices = @transform_4, window_bounds = array<i64: 1, 128>}, {pipeline_mode = #tpu.pipeline_mode<synchronous>, transform_indices = @transform_5, window_bounds = array<i64: 128, 128>}, {pipeline_mode = #tpu.pipeline_mode<synchronous>, transform_indices = @transform_6, window_bounds = array<i64: 1, 128>}, {transform_indices = @transform_7, window_bounds = array<i64: 1, 128, 128>}]} {
    %c8_i32 = arith.constant 8 : i32
    %0 = arith.muli %arg1, %c8_i32 : i32
    %c0 = arith.constant 0 : index
    %1 = arith.index_cast %0 : i32 to index
    %c0_0 = arith.constant 0 : index
    %c0_1 = arith.constant 0 : index
    %c0_2 = arith.constant 0 : index
    %2 = vector.load %arg2[%c0, %1, %c0_0, %c0_1, %c0_2] : memref<1x16x2x16x128xf32, #tpu.memory_space<vmem>>, vector<1x8x1x16x128xf32>
    %3 = vector.shape_cast %2 : vector<1x8x1x16x128xf32> to vector<8x16x128xf32>
    %4 = vector.extract_strided_slice %3 {offsets = [0, 0, 0], sizes = [8, 16, 64], strides = [1, 1, 1]} : vector<8x16x128xf32> to vector<8x16x64xf32>
    %5 = arith.truncf %4 : vector<8x16x64xf32> to vector<8x16x64xbf16>
    %6 = vector.shape_cast %5 : vector<8x16x64xbf16> to vector<128x64xbf16>
    %c0_3 = arith.constant 0 : index
    %c0_4 = arith.constant 0 : index
    %7 = vector.load %arg3[%c0_3, %c0_4] : memref<64x128xbf16, #tpu.memory_space<vmem>>, vector<64x128xbf16>
    %cst = arith.constant dense<0.000000e+00> : vector<128x128xf32>
    %8 = tpu.matmul %6, %7, %cst {dimension_numbers = #tpu.dot_dimension_numbers<[1], [0], [0], [1], [0, 0, 1, 1], [], []>} : vector<128x64xbf16>, vector<64x128xbf16>, vector<128x128xf32> -> vector<128x128xf32>
    %c0_5 = arith.constant 0 : index
    %c0_6 = arith.constant 0 : index
    %9 = vector.load %arg4[%c0_5, %c0_6] : memref<1x128xf32, #tpu.memory_space<vmem>>, vector<1x128xf32>
    %10 = vector.broadcast %9 : vector<1x128xf32> to vector<128x128xf32>
    %11 = arith.addf %8, %10 : vector<128x128xf32>
    %cst_7 = arith.constant 5.000000e-01 : f32
    %12 = vector.broadcast %cst_7 : f32 to vector<128x128xf32>
    %13 = arith.mulf %12, %11 : vector<128x128xf32>
    %cst_8 = arith.constant 4.471500e-02 : f32
    %14 = vector.broadcast %cst_8 : f32 to vector<128x128xf32>
    %15 = arith.mulf %14, %11 : vector<128x128xf32>
    %16 = arith.mulf %15, %11 : vector<128x128xf32>
    %17 = arith.mulf %16, %11 : vector<128x128xf32>
    %18 = arith.addf %11, %17 : vector<128x128xf32>
    %cst_9 = arith.constant 0.797884583 : f32
    %19 = vector.broadcast %cst_9 : f32 to vector<128x128xf32>
    %20 = arith.mulf %19, %18 : vector<128x128xf32>
    %21 = math.tanh %20 : vector<128x128xf32>
    %cst_10 = arith.constant 1.000000e+00 : f32
    %22 = vector.broadcast %cst_10 : f32 to vector<128x128xf32>
    %23 = arith.addf %22, %21 : vector<128x128xf32>
    %24 = arith.mulf %13, %23 : vector<128x128xf32>
    %25 = vector.shape_cast %24 : vector<128x128xf32> to vector<8x16x128xf32>
    %26 = vector.extract_strided_slice %3 {offsets = [0, 0, 64], sizes = [8, 16, 64], strides = [1, 1, 1]} : vector<8x16x128xf32> to vector<8x16x64xf32>
    %27 = arith.truncf %26 : vector<8x16x64xf32> to vector<8x16x64xbf16>
    %28 = vector.shape_cast %27 : vector<8x16x64xbf16> to vector<128x64xbf16>
    %c0_11 = arith.constant 0 : index
    %c0_12 = arith.constant 0 : index
    %29 = vector.load %arg3[%c0_11, %c0_12] : memref<64x128xbf16, #tpu.memory_space<vmem>>, vector<64x128xbf16>
    %cst_13 = arith.constant dense<0.000000e+00> : vector<128x128xf32>
    %30 = tpu.matmul %28, %29, %cst_13 {dimension_numbers = #tpu.dot_dimension_numbers<[1], [0], [0], [1], [0, 0, 1, 1], [], []>} : vector<128x64xbf16>, vector<64x128xbf16>, vector<128x128xf32> -> vector<128x128xf32>
    %c0_14 = arith.constant 0 : index
    %c0_15 = arith.constant 0 : index
    %31 = vector.load %arg4[%c0_14, %c0_15] : memref<1x128xf32, #tpu.memory_space<vmem>>, vector<1x128xf32>
    %32 = vector.broadcast %31 : vector<1x128xf32> to vector<128x128xf32>
    %33 = arith.addf %30, %32 : vector<128x128xf32>
    %cst_16 = arith.constant 5.000000e-01 : f32
    %34 = vector.broadcast %cst_16 : f32 to vector<128x128xf32>
    %35 = arith.mulf %34, %33 : vector<128x128xf32>
    %cst_17 = arith.constant 4.471500e-02 : f32
    %36 = vector.broadcast %cst_17 : f32 to vector<128x128xf32>
    %37 = arith.mulf %36, %33 : vector<128x128xf32>
    %38 = arith.mulf %37, %33 : vector<128x128xf32>
    %39 = arith.mulf %38, %33 : vector<128x128xf32>
    %40 = arith.addf %33, %39 : vector<128x128xf32>
    %cst_18 = arith.constant 0.797884583 : f32
    %41 = vector.broadcast %cst_18 : f32 to vector<128x128xf32>
    %42 = arith.mulf %41, %40 : vector<128x128xf32>
    %43 = math.tanh %42 : vector<128x128xf32>
    %cst_19 = arith.constant 1.000000e+00 : f32
    %44 = vector.broadcast %cst_19 : f32 to vector<128x128xf32>
    %45 = arith.addf %44, %43 : vector<128x128xf32>
    %46 = arith.mulf %35, %45 : vector<128x128xf32>
    %47 = vector.shape_cast %46 : vector<128x128xf32> to vector<8x16x128xf32>
    %c0_20 = arith.constant 0 : index
    %c0_21 = arith.constant 0 : index
    %c0_22 = arith.constant 0 : index
    %48 = vector.load %arg10[%c0_20, %c0_21, %c0_22] : memref<8x16x128xf32, #tpu.memory_space<vmem>>, vector<8x16x128xf32>
    tpu.vector_store %arg10[%c0_20, %c0_21, %c0_22], %25 {strides = array<i32>} : memref<8x16x128xf32, #tpu.memory_space<vmem>>, vector<8x16x128xf32>,
    %c0_23 = arith.constant 0 : index
    %c1 = arith.constant 1 : index
    %c0_24 = arith.constant 0 : index
    %49 = vector.load %arg11[%c0_23, %c1, %c0_24] : memref<8x17x128xf32, #tpu.memory_space<vmem>>, vector<8x16x128xf32>
    tpu.vector_store %arg11[%c0_23, %c1, %c0_24], %47 {strides = array<i32>} : memref<8x17x128xf32, #tpu.memory_space<vmem>>, vector<8x16x128xf32>,
    %c0_25 = arith.constant 0 : index
    %50 = arith.index_cast %0 : i32 to index
    %c1_26 = arith.constant 1 : index
    %c0_27 = arith.constant 0 : index
    %c0_28 = arith.constant 0 : index
    %51 = vector.load %arg2[%c0_25, %50, %c1_26, %c0_27, %c0_28] : memref<1x16x2x16x128xf32, #tpu.memory_space<vmem>>, vector<1x8x1x16x128xf32>
    %52 = vector.shape_cast %51 : vector<1x8x1x16x128xf32> to vector<8x16x128xf32>
    %53 = vector.extract_strided_slice %52 {offsets = [0, 0, 0], sizes = [8, 16, 64], strides = [1, 1, 1]} : vector<8x16x128xf32> to vector<8x16x64xf32>
    %54 = arith.truncf %53 : vector<8x16x64xf32> to vector<8x16x64xbf16>
    %55 = vector.shape_cast %54 : vector<8x16x64xbf16> to vector<128x64xbf16>
    %c0_29 = arith.constant 0 : index
    %c0_30 = arith.constant 0 : index
    %56 = vector.load %arg3[%c0_29, %c0_30] : memref<64x128xbf16, #tpu.memory_space<vmem>>, vector<64x128xbf16>
    %cst_31 = arith.constant dense<0.000000e+00> : vector<128x128xf32>
    %57 = tpu.matmul %55, %56, %cst_31 {dimension_numbers = #tpu.dot_dimension_numbers<[1], [0], [0], [1], [0, 0, 1, 1], [], []>} : vector<128x64xbf16>, vector<64x128xbf16>, vector<128x128xf32> -> vector<128x128xf32>
    %c0_32 = arith.constant 0 : index
    %c0_33 = arith.constant 0 : index
    %58 = vector.load %arg4[%c0_32, %c0_33] : memref<1x128xf32, #tpu.memory_space<vmem>>, vector<1x128xf32>
    %59 = vector.broadcast %58 : vector<1x128xf32> to vector<128x128xf32>
    %60 = arith.addf %57, %59 : vector<128x128xf32>
    %cst_34 = arith.constant 5.000000e-01 : f32
    %61 = vector.broadcast %cst_34 : f32 to vector<128x128xf32>
    %62 = arith.mulf %61, %60 : vector<128x128xf32>
    %cst_35 = arith.constant 4.471500e-02 : f32
    %63 = vector.broadcast %cst_35 : f32 to vector<128x128xf32>
    %64 = arith.mulf %63, %60 : vector<128x128xf32>
    %65 = arith.mulf %64, %60 : vector<128x128xf32>
    %66 = arith.mulf %65, %60 : vector<128x128xf32>
    %67 = arith.addf %60, %66 : vector<128x128xf32>
    %cst_36 = arith.constant 0.797884583 : f32
    %68 = vector.broadcast %cst_36 : f32 to vector<128x128xf32>
    %69 = arith.mulf %68, %67 : vector<128x128xf32>
    %70 = math.tanh %69 : vector<128x128xf32>
    %cst_37 = arith.constant 1.000000e+00 : f32
    %71 = vector.broadcast %cst_37 : f32 to vector<128x128xf32>
    %72 = arith.addf %71, %70 : vector<128x128xf32>
    %73 = arith.mulf %62, %72 : vector<128x128xf32>
    %74 = vector.shape_cast %73 : vector<128x128xf32> to vector<8x16x128xf32>
    %75 = vector.extract_strided_slice %52 {offsets = [0, 0, 64], sizes = [8, 16, 64], strides = [1, 1, 1]} : vector<8x16x128xf32> to vector<8x16x64xf32>
    %76 = arith.truncf %75 : vector<8x16x64xf32> to vector<8x16x64xbf16>
    %77 = vector.shape_cast %76 : vector<8x16x64xbf16> to vector<128x64xbf16>
    %c0_38 = arith.constant 0 : index
    %c0_39 = arith.constant 0 : index
    %78 = vector.load %arg3[%c0_38, %c0_39] : memref<64x128xbf16, #tpu.memory_space<vmem>>, vector<64x128xbf16>
    %cst_40 = arith.constant dense<0.000000e+00> : vector<128x128xf32>
    %79 = tpu.matmul %77, %78, %cst_40 {dimension_numbers = #tpu.dot_dimension_numbers<[1], [0], [0], [1], [0, 0, 1, 1], [], []>} : vector<128x64xbf16>, vector<64x128xbf16>, vector<128x128xf32> -> vector<128x128xf32>
    %c0_41 = arith.constant 0 : index
    %c0_42 = arith.constant 0 : index
    %80 = vector.load %arg4[%c0_41, %c0_42] : memref<1x128xf32, #tpu.memory_space<vmem>>, vector<1x128xf32>
    %81 = vector.broadcast %80 : vector<1x128xf32> to vector<128x128xf32>
    %82 = arith.addf %79, %81 : vector<128x128xf32>
    %cst_43 = arith.constant 5.000000e-01 : f32
    %83 = vector.broadcast %cst_43 : f32 to vector<128x128xf32>
    %84 = arith.mulf %83, %82 : vector<128x128xf32>
    %cst_44 = arith.constant 4.471500e-02 : f32
    %85 = vector.broadcast %cst_44 : f32 to vector<128x128xf32>
    %86 = arith.mulf %85, %82 : vector<128x128xf32>
    %87 = arith.mulf %86, %82 : vector<128x128xf32>
    %88 = arith.mulf %87, %82 : vector<128x128xf32>
    %89 = arith.addf %82, %88 : vector<128x128xf32>
    %cst_45 = arith.constant 0.797884583 : f32
    %90 = vector.broadcast %cst_45 : f32 to vector<128x128xf32>
    %91 = arith.mulf %90, %89 : vector<128x128xf32>
    %92 = math.tanh %91 : vector<128x128xf32>
    %cst_46 = arith.constant 1.000000e+00 : f32
    %93 = vector.broadcast %cst_46 : f32 to vector<128x128xf32>
    %94 = arith.addf %93, %92 : vector<128x128xf32>
    %95 = arith.mulf %84, %94 : vector<128x128xf32>
    %96 = vector.shape_cast %95 : vector<128x128xf32> to vector<8x16x128xf32>
    %c1_47 = arith.constant 1 : index
    %c0_48 = arith.constant 0 : index
    %c0_49 = arith.constant 0 : index
    %97 = vector.load %arg12[%c1_47, %c0_48, %c0_49] : memref<9x16x128xf32, #tpu.memory_space<vmem>>, vector<8x16x128xf32>
    tpu.vector_store %arg12[%c1_47, %c0_48, %c0_49], %74 {strides = array<i32>} : memref<9x16x128xf32, #tpu.memory_space<vmem>>, vector<8x16x128xf32>,
    %c1_50 = arith.constant 1 : index
    %c1_51 = arith.constant 1 : index
    %c0_52 = arith.constant 0 : index
    %98 = vector.load %arg13[%c1_50, %c1_51, %c0_52] : memref<9x17x128xf32, #tpu.memory_space<vmem>>, vector<8x16x128xf32>
    tpu.vector_store %arg13[%c1_50, %c1_51, %c0_52], %96 {strides = array<i32>} : memref<9x17x128xf32, #tpu.memory_space<vmem>>, vector<8x16x128xf32>,
    %c0_i32 = arith.constant 0 : i32
    %99 = arith.cmpi eq, %arg1, %c0_i32 : i32
    %100 = arith.extui %99 : i1 to i32
    %c0_i32_53 = arith.constant 0 : i32
    %101 = arith.cmpi ne, %100, %c0_i32_53 : i32
    scf.if %101 {
      %cst_108 = arith.constant 0.000000e+00 : f32
      %192 = vector.broadcast %cst_108 : f32 to vector<1x16x128xf32>
      %c0_109 = arith.constant 0 : index
      %c0_110 = arith.constant 0 : index
      %c0_111 = arith.constant 0 : index
      %193 = vector.load %arg12[%c0_109, %c0_110, %c0_111] : memref<9x16x128xf32, #tpu.memory_space<vmem>>, vector<1x16x128xf32>
      tpu.vector_store %arg12[%c0_109, %c0_110, %c0_111], %192 {strides = array<i32>} : memref<9x16x128xf32, #tpu.memory_space<vmem>>, vector<1x16x128xf32>,
      %cst_112 = arith.constant 0.000000e+00 : f32
      %194 = vector.broadcast %cst_112 : f32 to vector<1x17x128xf32>
      %c0_113 = arith.constant 0 : index
      %c0_114 = arith.constant 0 : index
      %c0_115 = arith.constant 0 : index
      %195 = vector.load %arg13[%c0_113, %c0_114, %c0_115] : memref<9x17x128xf32, #tpu.memory_space<vmem>>, vector<1x17x128xf32>
      tpu.vector_store %arg13[%c0_113, %c0_114, %c0_115], %194 {strides = array<i32>} : memref<9x17x128xf32, #tpu.memory_space<vmem>>, vector<1x17x128xf32>,
    } else {
    }
    %c0_i32_54 = arith.constant 0 : i32
    %102 = arith.cmpi sgt, %arg1, %c0_i32_54 : i32
    %103 = arith.extui %102 : i1 to i32
    %c0_i32_55 = arith.constant 0 : i32
    %104 = arith.cmpi ne, %103, %c0_i32_55 : i32
    scf.if %104 {
      %c1_i32 = arith.constant 1 : i32
      %192 = arith.subi %0, %c1_i32 : i32
      %c0_108 = arith.constant 0 : index
      %193 = arith.index_cast %192 : i32 to index
      %c1_109 = arith.constant 1 : index
      %c0_110 = arith.constant 0 : index
      %c0_111 = arith.constant 0 : index
      %194 = vector.load %arg2[%c0_108, %193, %c1_109, %c0_110, %c0_111] : memref<1x16x2x16x128xf32, #tpu.memory_space<vmem>>, vector<1x1x1x16x128xf32>
      %195 = vector.shape_cast %194 : vector<1x1x1x16x128xf32> to vector<1x16x128xf32>
      %196 = vector.extract_strided_slice %195 {offsets = [0, 0, 0], sizes = [1, 16, 64], strides = [1, 1, 1]} : vector<1x16x128xf32> to vector<1x16x64xf32>
      %197 = arith.truncf %196 : vector<1x16x64xf32> to vector<1x16x64xbf16>
      %198 = vector.shape_cast %197 : vector<1x16x64xbf16> to vector<16x64xbf16>
      %c0_112 = arith.constant 0 : index
      %c0_113 = arith.constant 0 : index
      %199 = vector.load %arg3[%c0_112, %c0_113] : memref<64x128xbf16, #tpu.memory_space<vmem>>, vector<64x128xbf16>
      %cst_114 = arith.constant dense<0.000000e+00> : vector<16x128xf32>
      %200 = tpu.matmul %198, %199, %cst_114 {dimension_numbers = #tpu.dot_dimension_numbers<[1], [0], [0], [1], [0, 0, 1, 1], [], []>} : vector<16x64xbf16>, vector<64x128xbf16>, vector<16x128xf32> -> vector<16x128xf32>
      %c0_115 = arith.constant 0 : index
      %c0_116 = arith.constant 0 : index
      %201 = vector.load %arg4[%c0_115, %c0_116] : memref<1x128xf32, #tpu.memory_space<vmem>>, vector<1x128xf32>
      %202 = vector.broadcast %201 : vector<1x128xf32> to vector<16x128xf32>
      %203 = arith.addf %200, %202 : vector<16x128xf32>
      %cst_117 = arith.constant 5.000000e-01 : f32
      %204 = vector.broadcast %cst_117 : f32 to vector<16x128xf32>
      %205 = arith.mulf %204, %203 : vector<16x128xf32>
      %cst_118 = arith.constant 4.471500e-02 : f32
      %206 = vector.broadcast %cst_118 : f32 to vector<16x128xf32>
      %207 = arith.mulf %206, %203 : vector<16x128xf32>
      %208 = arith.mulf %207, %203 : vector<16x128xf32>
      %209 = arith.mulf %208, %203 : vector<16x128xf32>
      %210 = arith.addf %203, %209 : vector<16x128xf32>
      %cst_119 = arith.constant 0.797884583 : f32
      %211 = vector.broadcast %cst_119 : f32 to vector<16x128xf32>
      %212 = arith.mulf %211, %210 : vector<16x128xf32>
      %213 = math.tanh %212 : vector<16x128xf32>
      %cst_120 = arith.constant 1.000000e+00 : f32
      %214 = vector.broadcast %cst_120 : f32 to vector<16x128xf32>
      %215 = arith.addf %214, %213 : vector<16x128xf32>
      %216 = arith.mulf %205, %215 : vector<16x128xf32>
      %217 = vector.shape_cast %216 : vector<16x128xf32> to vector<1x16x128xf32>
      %218 = vector.extract_strided_slice %195 {offsets = [0, 0, 64], sizes = [1, 16, 64], strides = [1, 1, 1]} : vector<1x16x128xf32> to vector<1x16x64xf32>
      %219 = arith.truncf %218 : vector<1x16x64xf32> to vector<1x16x64xbf16>
      %220 = vector.shape_cast %219 : vector<1x16x64xbf16> to vector<16x64xbf16>
      %c0_121 = arith.constant 0 : index
      %c0_122 = arith.constant 0 : index
      %221 = vector.load %arg3[%c0_121, %c0_122] : memref<64x128xbf16, #tpu.memory_space<vmem>>, vector<64x128xbf16>
      %cst_123 = arith.constant dense<0.000000e+00> : vector<16x128xf32>
      %222 = tpu.matmul %220, %221, %cst_123 {dimension_numbers = #tpu.dot_dimension_numbers<[1], [0], [0], [1], [0, 0, 1, 1], [], []>} : vector<16x64xbf16>, vector<64x128xbf16>, vector<16x128xf32> -> vector<16x128xf32>
      %c0_124 = arith.constant 0 : index
      %c0_125 = arith.constant 0 : index
      %223 = vector.load %arg4[%c0_124, %c0_125] : memref<1x128xf32, #tpu.memory_space<vmem>>, vector<1x128xf32>
      %224 = vector.broadcast %223 : vector<1x128xf32> to vector<16x128xf32>
      %225 = arith.addf %222, %224 : vector<16x128xf32>
      %cst_126 = arith.constant 5.000000e-01 : f32
      %226 = vector.broadcast %cst_126 : f32 to vector<16x128xf32>
      %227 = arith.mulf %226, %225 : vector<16x128xf32>
      %cst_127 = arith.constant 4.471500e-02 : f32
      %228 = vector.broadcast %cst_127 : f32 to vector<16x128xf32>
      %229 = arith.mulf %228, %225 : vector<16x128xf32>
      %230 = arith.mulf %229, %225 : vector<16x128xf32>
      %231 = arith.mulf %230, %225 : vector<16x128xf32>
      %232 = arith.addf %225, %231 : vector<16x128xf32>
      %cst_128 = arith.constant 0.797884583 : f32
      %233 = vector.broadcast %cst_128 : f32 to vector<16x128xf32>
      %234 = arith.mulf %233, %232 : vector<16x128xf32>
      %235 = math.tanh %234 : vector<16x128xf32>
      %cst_129 = arith.constant 1.000000e+00 : f32
      %236 = vector.broadcast %cst_129 : f32 to vector<16x128xf32>
      %237 = arith.addf %236, %235 : vector<16x128xf32>
      %238 = arith.mulf %227, %237 : vector<16x128xf32>
      %239 = vector.shape_cast %238 : vector<16x128xf32> to vector<1x16x128xf32>
      %c0_130 = arith.constant 0 : index
      %c0_131 = arith.constant 0 : index
      %c0_132 = arith.constant 0 : index
      %240 = vector.load %arg12[%c0_130, %c0_131, %c0_132] : memref<9x16x128xf32, #tpu.memory_space<vmem>>, vector<1x16x128xf32>
      tpu.vector_store %arg12[%c0_130, %c0_131, %c0_132], %217 {strides = array<i32>} : memref<9x16x128xf32, #tpu.memory_space<vmem>>, vector<1x16x128xf32>,
      %c0_133 = arith.constant 0 : index
      %c1_134 = arith.constant 1 : index
      %c0_135 = arith.constant 0 : index
      %241 = vector.load %arg13[%c0_133, %c1_134, %c0_135] : memref<9x17x128xf32, #tpu.memory_space<vmem>>, vector<1x16x128xf32>
      tpu.vector_store %arg13[%c0_133, %c1_134, %c0_135], %239 {strides = array<i32>} : memref<9x17x128xf32, #tpu.memory_space<vmem>>, vector<1x16x128xf32>,
    } else {
    }
    %cst_56 = arith.constant 0.000000e+00 : f32
    %105 = vector.broadcast %cst_56 : f32 to vector<8x1x128xf32>
    %c0_57 = arith.constant 0 : index
    %c0_58 = arith.constant 0 : index
    %c0_59 = arith.constant 0 : index
    %106 = vector.load %arg11[%c0_57, %c0_58, %c0_59] : memref<8x17x128xf32, #tpu.memory_space<vmem>>, vector<8x1x128xf32>
    tpu.vector_store %arg11[%c0_57, %c0_58, %c0_59], %105 {strides = array<i32>} : memref<8x17x128xf32, #tpu.memory_space<vmem>>, vector<8x1x128xf32>,
    %cst_60 = arith.constant 0.000000e+00 : f32
    %107 = vector.broadcast %cst_60 : f32 to vector<9x1x128xf32>
    %c0_61 = arith.constant 0 : index
    %c0_62 = arith.constant 0 : index
    %c0_63 = arith.constant 0 : index
    %108 = vector.load %arg13[%c0_61, %c0_62, %c0_63] : memref<9x17x128xf32, #tpu.memory_space<vmem>>, vector<9x1x128xf32>
    tpu.vector_store %arg13[%c0_61, %c0_62, %c0_63], %107 {strides = array<i32>} : memref<9x17x128xf32, #tpu.memory_space<vmem>>, vector<9x1x128xf32>,
    %c0_64 = arith.constant 0 : index
    %c0_65 = arith.constant 0 : index
    %109 = vector.load %arg5[%c0_64, %c0_65] : memref<9x128xf32, #tpu.memory_space<vmem>>, vector<9x128xf32>
    %cst_66 = arith.constant 0.000000e+00 : f32
    %110 = vector.broadcast %cst_66 : f32 to vector<8x16x128xf32>
    %c0_67 = arith.constant 0 : index
    %c0_68 = arith.constant 0 : index
    %c0_69 = arith.constant 0 : index
    %111 = vector.load %arg13[%c0_67, %c0_68, %c0_69] : memref<9x17x128xf32, #tpu.memory_space<vmem>>, vector<8x16x128xf32>
    %112 = vector.extract_strided_slice %109 {offsets = [0, 0], sizes = [1, 128], strides = [1, 1]} : vector<9x128xf32> to vector<1x128xf32>
    %113 = vector.shape_cast %112 : vector<1x128xf32> to vector<1x1x128xf32>
    %114 = vector.broadcast %113 : vector<1x1x128xf32> to vector<8x16x128xf32>
    %115 = arith.mulf %111, %114 : vector<8x16x128xf32>
    %116 = arith.addf %110, %115 : vector<8x16x128xf32>
    %c0_70 = arith.constant 0 : index
    %c0_71 = arith.constant 0 : index
    %c0_72 = arith.constant 0 : index
    %117 = vector.load %arg12[%c0_70, %c0_71, %c0_72] : memref<9x16x128xf32, #tpu.memory_space<vmem>>, vector<8x16x128xf32>
    %118 = vector.extract_strided_slice %109 {offsets = [1, 0], sizes = [1, 128], strides = [1, 1]} : vector<9x128xf32> to vector<1x128xf32>
    %119 = vector.shape_cast %118 : vector<1x128xf32> to vector<1x1x128xf32>
    %120 = vector.broadcast %119 : vector<1x1x128xf32> to vector<8x16x128xf32>
    %121 = arith.mulf %117, %120 : vector<8x16x128xf32>
    %122 = arith.addf %116, %121 : vector<8x16x128xf32>
    %c0_73 = arith.constant 0 : index
    %c1_74 = arith.constant 1 : index
    %c0_75 = arith.constant 0 : index
    %123 = vector.load %arg13[%c0_73, %c1_74, %c0_75] : memref<9x17x128xf32, #tpu.memory_space<vmem>>, vector<8x16x128xf32>
    %124 = vector.extract_strided_slice %109 {offsets = [2, 0], sizes = [1, 128], strides = [1, 1]} : vector<9x128xf32> to vector<1x128xf32>
    %125 = vector.shape_cast %124 : vector<1x128xf32> to vector<1x1x128xf32>
    %126 = vector.broadcast %125 : vector<1x1x128xf32> to vector<8x16x128xf32>
    %127 = arith.mulf %123, %126 : vector<8x16x128xf32>
    %128 = arith.addf %122, %127 : vector<8x16x128xf32>
    %c0_76 = arith.constant 0 : index
    %c0_77 = arith.constant 0 : index
    %c0_78 = arith.constant 0 : index
    %129 = vector.load %arg11[%c0_76, %c0_77, %c0_78] : memref<8x17x128xf32, #tpu.memory_space<vmem>>, vector<8x16x128xf32>
    %130 = vector.extract_strided_slice %109 {offsets = [3, 0], sizes = [1, 128], strides = [1, 1]} : vector<9x128xf32> to vector<1x128xf32>
    %131 = vector.shape_cast %130 : vector<1x128xf32> to vector<1x1x128xf32>
    %132 = vector.broadcast %131 : vector<1x1x128xf32> to vector<8x16x128xf32>
    %133 = arith.mulf %129, %132 : vector<8x16x128xf32>
    %134 = arith.addf %128, %133 : vector<8x16x128xf32>
    %c0_79 = arith.constant 0 : index
    %c0_80 = arith.constant 0 : index
    %c0_81 = arith.constant 0 : index
    %135 = vector.load %arg10[%c0_79, %c0_80, %c0_81] : memref<8x16x128xf32, #tpu.memory_space<vmem>>, vector<8x16x128xf32>
    %136 = vector.extract_strided_slice %109 {offsets = [4, 0], sizes = [1, 128], strides = [1, 1]} : vector<9x128xf32> to vector<1x128xf32>
    %137 = vector.shape_cast %136 : vector<1x128xf32> to vector<1x1x128xf32>
    %138 = vector.broadcast %137 : vector<1x1x128xf32> to vector<8x16x128xf32>
    %139 = arith.mulf %135, %138 : vector<8x16x128xf32>
    %140 = arith.addf %134, %139 : vector<8x16x128xf32>
    %c0_82 = arith.constant 0 : index
    %c1_83 = arith.constant 1 : index
    %c0_84 = arith.constant 0 : index
    %141 = vector.load %arg11[%c0_82, %c1_83, %c0_84] : memref<8x17x128xf32, #tpu.memory_space<vmem>>, vector<8x16x128xf32>
    %142 = vector.extract_strided_slice %109 {offsets = [5, 0], sizes = [1, 128], strides = [1, 1]} : vector<9x128xf32> to vector<1x128xf32>
    %143 = vector.shape_cast %142 : vector<1x128xf32> to vector<1x1x128xf32>
    %144 = vector.broadcast %143 : vector<1x1x128xf32> to vector<8x16x128xf32>
    %145 = arith.mulf %141, %144 : vector<8x16x128xf32>
    %146 = arith.addf %140, %145 : vector<8x16x128xf32>
    %c1_85 = arith.constant 1 : index
    %c0_86 = arith.constant 0 : index
    %c0_87 = arith.constant 0 : index
    %147 = vector.load %arg13[%c1_85, %c0_86, %c0_87] : memref<9x17x128xf32, #tpu.memory_space<vmem>>, vector<8x16x128xf32>
    %148 = vector.extract_strided_slice %109 {offsets = [6, 0], sizes = [1, 128], strides = [1, 1]} : vector<9x128xf32> to vector<1x128xf32>
    %149 = vector.shape_cast %148 : vector<1x128xf32> to vector<1x1x128xf32>
    %150 = vector.broadcast %149 : vector<1x1x128xf32> to vector<8x16x128xf32>
    %151 = arith.mulf %147, %150 : vector<8x16x128xf32>
    %152 = arith.addf %146, %151 : vector<8x16x128xf32>
    %c1_88 = arith.constant 1 : index
    %c0_89 = arith.constant 0 : index
    %c0_90 = arith.constant 0 : index
    %153 = vector.load %arg12[%c1_88, %c0_89, %c0_90] : memref<9x16x128xf32, #tpu.memory_space<vmem>>, vector<8x16x128xf32>
    %154 = vector.extract_strided_slice %109 {offsets = [7, 0], sizes = [1, 128], strides = [1, 1]} : vector<9x128xf32> to vector<1x128xf32>
    %155 = vector.shape_cast %154 : vector<1x128xf32> to vector<1x1x128xf32>
    %156 = vector.broadcast %155 : vector<1x1x128xf32> to vector<8x16x128xf32>
    %157 = arith.mulf %153, %156 : vector<8x16x128xf32>
    %158 = arith.addf %152, %157 : vector<8x16x128xf32>
    %c1_91 = arith.constant 1 : index
    %c1_92 = arith.constant 1 : index
    %c0_93 = arith.constant 0 : index
    %159 = vector.load %arg13[%c1_91, %c1_92, %c0_93] : memref<9x17x128xf32, #tpu.memory_space<vmem>>, vector<8x16x128xf32>
    %160 = vector.extract_strided_slice %109 {offsets = [8, 0], sizes = [1, 128], strides = [1, 1]} : vector<9x128xf32> to vector<1x128xf32>
    %161 = vector.shape_cast %160 : vector<1x128xf32> to vector<1x1x128xf32>
    %162 = vector.broadcast %161 : vector<1x1x128xf32> to vector<8x16x128xf32>
    %163 = arith.mulf %159, %162 : vector<8x16x128xf32>
    %164 = arith.addf %158, %163 : vector<8x16x128xf32>
    %c0_94 = arith.constant 0 : index
    %c0_95 = arith.constant 0 : index
    %165 = vector.load %arg6[%c0_94, %c0_95] : memref<1x128xf32, #tpu.memory_space<vmem>>, vector<1x128xf32>
    %166 = vector.shape_cast %165 : vector<1x128xf32> to vector<1x1x128xf32>
    %167 = vector.broadcast %166 : vector<1x1x128xf32> to vector<8x16x128xf32>
    %168 = arith.addf %164, %167 : vector<8x16x128xf32>
    %cst_96 = arith.constant 5.000000e-01 : f32
    %169 = vector.broadcast %cst_96 : f32 to vector<8x16x128xf32>
    %170 = arith.mulf %169, %168 : vector<8x16x128xf32>
    %cst_97 = arith.constant 4.471500e-02 : f32
    %171 = vector.broadcast %cst_97 : f32 to vector<8x16x128xf32>
    %172 = arith.mulf %171, %168 : vector<8x16x128xf32>
    %173 = arith.mulf %172, %168 : vector<8x16x128xf32>
    %174 = arith.mulf %173, %168 : vector<8x16x128xf32>
    %175 = arith.addf %168, %174 : vector<8x16x128xf32>
    %cst_98 = arith.constant 0.797884583 : f32
    %176 = vector.broadcast %cst_98 : f32 to vector<8x16x128xf32>
    %177 = arith.mulf %176, %175 : vector<8x16x128xf32>
    %178 = math.tanh %177 : vector<8x16x128xf32>
    %cst_99 = arith.constant 1.000000e+00 : f32
    %179 = vector.broadcast %cst_99 : f32 to vector<8x16x128xf32>
    %180 = arith.addf %179, %178 : vector<8x16x128xf32>
    %181 = arith.mulf %170, %180 : vector<8x16x128xf32>
    %182 = vector.shape_cast %181 : vector<8x16x128xf32> to vector<128x128xf32>
    %183 = arith.truncf %182 : vector<128x128xf32> to vector<128x128xbf16>
    %c0_100 = arith.constant 0 : index
    %c0_101 = arith.constant 0 : index
    %184 = vector.load %arg7[%c0_100, %c0_101] : memref<128x128xbf16, #tpu.memory_space<vmem>>, vector<128x128xbf16>
    %cst_102 = arith.constant dense<0.000000e+00> : vector<128x128xf32>
    %185 = tpu.matmul %183, %184, %cst_102 {dimension_numbers = #tpu.dot_dimension_numbers<[1], [0], [0], [1], [0, 0, 1, 1], [], []>} : vector<128x128xbf16>, vector<128x128xbf16>, vector<128x128xf32> -> vector<128x128xf32>
    %c0_103 = arith.constant 0 : index
    %c0_104 = arith.constant 0 : index
    %186 = vector.load %arg8[%c0_103, %c0_104] : memref<1x128xf32, #tpu.memory_space<vmem>>, vector<1x128xf32>
    %187 = vector.broadcast %186 : vector<1x128xf32> to vector<128x128xf32>
    %188 = arith.addf %185, %187 : vector<128x128xf32>
    %c0_105 = arith.constant 0 : index
    %c0_106 = arith.constant 0 : index
    %c0_107 = arith.constant 0 : index
    %189 = vector.load %arg9[%c0_105, %c0_106, %c0_107] : memref<1x128x128xf32, #tpu.memory_space<vmem>>, vector<1x128x128xf32>
    %190 = vector.shape_cast %189 : vector<1x128x128xf32> to vector<128x128xf32>
    %191 = vector.shape_cast %188 : vector<128x128xf32> to vector<1x128x128xf32>
    tpu.vector_store %arg9[%c0_105, %c0_106, %c0_107], %191 {strides = array<i32>} : memref<1x128x128xf32, #tpu.memory_space<vmem>>, vector<1x128x128xf32>,
    return
  }
  func.func @transform_0(%arg0: i32, %arg1: i32) -> (i32, i32, i32, i32, i32) {
    %c0_i32 = arith.constant 0 : i32
    %c0_i32_0 = arith.constant 0 : i32
    %c0_i32_1 = arith.constant 0 : i32
    %c0_i32_2 = arith.constant 0 : i32
    %c0_i32_3 = arith.constant 0 : i32
    return %arg0, %c0_i32, %c0_i32_0, %c0_i32_1, %c0_i32_2 : i32, i32, i32, i32, i32
  }
  func.func @transform_1(%arg0: i32, %arg1: i32) -> (i32, i32) {
    %c0_i32 = arith.constant 0 : i32
    %c0_i32_0 = arith.constant 0 : i32
    %c0_i32_1 = arith.constant 0 : i32
    return %c0_i32, %c0_i32_0 : i32, i32
  }
  func.func @transform_2(%arg0: i32, %arg1: i32) -> (i32, i32) {
    %c0_i32 = arith.constant 0 : i32
    %c0_i32_0 = arith.constant 0 : i32
    %c0_i32_1 = arith.constant 0 : i32
    return %c0_i32, %c0_i32_0 : i32, i32
  }
  func.func @transform_3(%arg0: i32, %arg1: i32) -> (i32, i32) {
    %c0_i32 = arith.constant 0 : i32
    %c0_i32_0 = arith.constant 0 : i32
    %c0_i32_1 = arith.constant 0 : i32
    return %c0_i32, %c0_i32_0 : i32, i32
  }
  func.func @transform_4(%arg0: i32, %arg1: i32) -> (i32, i32) {
    %c0_i32 = arith.constant 0 : i32
    %c0_i32_0 = arith.constant 0 : i32
    %c0_i32_1 = arith.constant 0 : i32
    return %c0_i32, %c0_i32_0 : i32, i32
  }
  func.func @transform_5(%arg0: i32, %arg1: i32) -> (i32, i32) {
    %c0_i32 = arith.constant 0 : i32
    %c0_i32_0 = arith.constant 0 : i32
    %c0_i32_1 = arith.constant 0 : i32
    return %c0_i32, %c0_i32_0 : i32, i32
  }
  func.func @transform_6(%arg0: i32, %arg1: i32) -> (i32, i32) {
    %c0_i32 = arith.constant 0 : i32
    %c0_i32_0 = arith.constant 0 : i32
    %c0_i32_1 = arith.constant 0 : i32
    return %c0_i32, %c0_i32_0 : i32, i32
  }
  func.func @transform_7(%arg0: i32, %arg1: i32) -> (i32, i32, i32) {
    %c0_i32 = arith.constant 0 : i32
    %c0_i32_0 = arith.constant 0 : i32
    return %arg0, %arg1, %c0_i32 : i32, i32, i32
  }
}

</mosaic_0001>

<llo_original>
// kernel: tpu_custom_call.1
$region0: #{tpu_custom_call.1}
  #allocation0 [shape = 'u32[]', space=smem, size = 0x4, offset = 0x4, fixed_abs, tag = 'smem constant byte address 0x4 - core index']
  #allocation1 [shape = 'u32[144,128]{1,0:T(1,128)}', space=vmem, size = 0x12000, scoped, tag = 'internal scratch']
  #allocation2 [shape = 'f32[8,16,128]{2,1,0:T(8,128)}', space=vmem, size = 0x10000, scoped, tag = 'scratch operand']
  #allocation3 [shape = 'f32[8,17,128]{2,1,0:T(8,128)}', space=vmem, size = 0x18000, scoped, tag = 'scratch operand']
  #allocation4 [shape = 'f32[9,16,128]{2,1,0:T(8,128)}', space=vmem, size = 0x12000, scoped, tag = 'scratch operand']
  #allocation5 [shape = 'f32[9,17,128]{2,1,0:T(8,128)}', space=vmem, size = 0x1b000, scoped, tag = 'scratch operand']
  %s0 = inlined_call_operand.hbm [shape: f32[2,16,2,16,128], index: 0, kind: input, shape index: {}]
  %s1 = inlined_call_operand.hbm [shape: bf16[64,128], index: 1, kind: input, shape index: {}]
  %s2 = inlined_call_operand.vmem [shape: f32[1,128], index: 2, kind: input, shape index: {}]
  %s3 = inlined_call_operand.hbm [shape: f32[9,128], index: 3, kind: input, shape index: {}]
  %s4 = inlined_call_operand.vmem [shape: f32[1,128], index: 4, kind: input, shape index: {}]
  %s5 = inlined_call_operand.hbm [shape: bf16[128,128], index: 5, kind: input, shape index: {}]
  %s6 = inlined_call_operand.vmem [shape: f32[1,128], index: 6, kind: input, shape index: {}]
  %s7 = inlined_call_operand.hbm [shape: f32[2,256,128], index: 7, kind: output, shape index: {}]
  %s8 = sld [smem:[#allocation0]]
  $region85: #{tpu_custom_call.1} parent=0
    _
  %s10 = ssub.s32 1, %s8
  %s11 = scalar_select 0, %s10, %s8
  $region1: #{tpu_custom_call.1} parent=0
    #allocation6 [shape = 'u8[524288]{0}', space=vmem, size = 0x80000, scoped, tag = 'input window, operand 0']
    #allocation7 [shape = 's32[2]{0}', space=sflag, size = 0x8, scoped, tag = 'scoped memory for tpu_custom_call.1']
    #allocation8 [shape = 's32[2]{0}', space=sflag, size = 0x8, scoped, tag = 'scoped memory for tpu_custom_call.1']
    #allocation9 [shape = 'u8[16384]{0}', space=vmem, size = 0x4000, scoped, tag = 'input window, operand 1, single buffered']
    #allocation10 [shape = 's32[1]{0}', space=sflag, size = 0x4, scoped, tag = 'scoped memory for tpu_custom_call.1']
    #allocation11 [shape = 'u8[8192]{0}', space=vmem, size = 0x2000, scoped, tag = 'input window, operand 3, single buffered']
    #allocation12 [shape = 'u8[32768]{0}', space=vmem, size = 0x8000, scoped, tag = 'input window, operand 5, single buffered']
    #allocation13 [shape = 's32[1]{0}', space=sflag, size = 0x4, scoped, tag = 'scoped memory for tpu_custom_call.1']
    #allocation14 [shape = 'u8[131072]{0}', space=vmem, size = 0x20000, scoped, tag = 'output window, operand 0']
    %12 = vsyncpa [#allocation7], 0
    %s13 = scalar_lea.sflag [#allocation7], 1
    %14 = vsyncpa %s13, 0
    %15 = vsyncpa [#allocation10], 0
    %16 = vsyncpa [#allocation13], 0
    %17 = vsyncpa [#allocation8], 0
    %s18 = scalar_lea.sflag [#allocation8], 1
    %19 = vsyncpa %s18, 0
    loop: start=0, step=1, limit=6
    $region2: #{tpu_custom_call.1} parent=1 // loop_pre_header
      _
    $region3: #{tpu_custom_call.1} parent=1 // loop_header
      %s21 = sphi 0, %s25
      %p22 = scmp.ge.s32.totalorder %s21, 6
      %s28 = sphi 0, %s40
      %s29 = sphi 0, %s36
      %s30 = sphi 0, %s28
      %s31 = sphi 0, %s29
      %s32 = sphi 0, %s30
      %s33 = sphi 0, %s31
      %s43 = sphi 0, %s45
      %s46 = sphi 0, %s43
      %s47 = sphi 0, %s46
      %s63 = sphi 0, %s47
      %s67 = sphi 0, %s67
      %s69 = sphi 0, %s67
      %s70 = sphi 0, %s69
      %s84 = sphi 0, %s70
      %s88 = sphi 0, %s88
      %s90 = sphi 0, %s88
      %s91 = sphi 0, %s90
      %s105 = sphi 0, %s91
      %s109 = sphi 0, %s109
      %s111 = sphi 0, %s109
      %s112 = sphi 0, %s111
      %s126 = sphi 0, %s112
      %s130 = sphi 0, %s130
      %s132 = sphi 0, %s130
      %s133 = sphi 0, %s132
      %s147 = sphi 0, %s133
      %s151 = sphi 0, %s151
      %s153 = sphi 0, %s151
      %s154 = sphi 0, %s153
      %s168 = sphi 0, %s154
      %s172 = sphi 0, %s172
      %s174 = sphi 0, %s172
      %s175 = sphi 0, %s174
      %s189 = sphi 0, %s175
      %s197 = sphi 0, %s199
      %s200 = sphi 0, %s197
      %s201 = sphi 0, %s200
      %s217 = sphi 0, %s201
    $region4: #{tpu_custom_call.1} parent=1 // loop_header_branch
      %24 = sbr.rel (%p22) target = $region8
    $region5: #{tpu_custom_call.1} parent=1 // loop_body
      %s26 = ssub.s32 %s21, 1
      %s27 = ssub.s32 %s21, 2
      %s34 = sadd.s32 1, %s29
      %p35 = scmp.ge.s32.totalorder %s34, 2
      %s36 = scalar_select %p35, 0, %s34
      %s37 = sadd.s32 1, %s28
      %s38 = scalar_select %p35, %s37, %s28
      %p39 = scmp.ge.s32.totalorder %s38, 2
      %s40 = scalar_select %p39, 0, %s38
      %s41 = ssub.s32 %s28, %s40
      %p42 = scmp.eq.s32.totalorder %s41, 0
      %s44 = sadd.s32 %s43, 1
      %s45 = scalar_select %p42, %s43, %s44
      %p48 = pneg %p42
      %p49 = scmp.eq.s32.totalorder %s21, 3
      %p50 = por %p48, %p49
      %p51 = scmp.ne.s32.totalorder %s43, %s46
      %p52 = scmp.eq.s32.totalorder %s21, 0
      %p53 = por %p51, %p52
      %p54 = scmp.ne.s32.totalorder %s43, %s46
      %p55 = scmp.eq.s32.totalorder %s26, 3
      %p56 = por %p54, %p55
      %p57 = scmp.ne.s32.totalorder %s46, %s47
      %p58 = scmp.eq.s32.totalorder %s26, 0
      %p59 = por %p57, %p58
      %p60 = scmp.ne.s32.totalorder %s46, %s47
      %p61 = scmp.eq.s32.totalorder %s27, 3
      %p62 = por %p60, %p61
      %p64 = scmp.ne.s32.totalorder %s47, %s63
      %p65 = scmp.eq.s32.totalorder %s27, 0
      %p66 = por %p64, %p65
      %s68 = sadd.s32 %s67, 1
      %p71 = scmp.eq.s32.totalorder %s21, 3
      %p72 = scmp.ne.s32.totalorder %s67, %s69
      %p73 = scmp.eq.s32.totalorder %s21, 0
      %p74 = por %p72, %p73
      %p75 = scmp.ne.s32.totalorder %s67, %s69
      %p76 = scmp.eq.s32.totalorder %s26, 3
      %p77 = por %p75, %p76
      %p78 = scmp.ne.s32.totalorder %s69, %s70
      %p79 = scmp.eq.s32.totalorder %s26, 0
      %p80 = por %p78, %p79
      %p81 = scmp.ne.s32.totalorder %s69, %s70
      %p82 = scmp.eq.s32.totalorder %s27, 3
      %p83 = por %p81, %p82
      %p85 = scmp.ne.s32.totalorder %s70, %s84
      %p86 = scmp.eq.s32.totalorder %s27, 0
      %p87 = por %p85, %p86
      %s89 = sadd.s32 %s88, 1
      %p92 = scmp.eq.s32.totalorder %s21, 3
      %p93 = scmp.ne.s32.totalorder %s88, %s90
      %p94 = scmp.eq.s32.totalorder %s21, 0
      %p95 = por %p93, %p94
      %p96 = scmp.ne.s32.totalorder %s88, %s90
      %p97 = scmp.eq.s32.totalorder %s26, 3
      %p98 = por %p96, %p97
      %p99 = scmp.ne.s32.totalorder %s90, %s91
      %p100 = scmp.eq.s32.totalorder %s26, 0
      %p101 = por %p99, %p100
      %p102 = scmp.ne.s32.totalorder %s90, %s91
      %p103 = scmp.eq.s32.totalorder %s27, 3
      %p104 = por %p102, %p103
      %p106 = scmp.ne.s32.totalorder %s91, %s105
      %p107 = scmp.eq.s32.totalorder %s27, 0
      %p108 = por %p106, %p107
      %s110 = sadd.s32 %s109, 1
      %p113 = scmp.eq.s32.totalorder %s21, 3
      %p114 = scmp.ne.s32.totalorder %s109, %s111
      %p115 = scmp.eq.s32.totalorder %s21, 0
      %p116 = por %p114, %p115
      %p117 = scmp.ne.s32.totalorder %s109, %s111
      %p118 = scmp.eq.s32.totalorder %s26, 3
      %p119 = por %p117, %p118
      %p120 = scmp.ne.s32.totalorder %s111, %s112
      %p121 = scmp.eq.s32.totalorder %s26, 0
      %p122 = por %p120, %p121
      %p123 = scmp.ne.s32.totalorder %s111, %s112
      %p124 = scmp.eq.s32.totalorder %s27, 3
      %p125 = por %p123, %p124
      %p127 = scmp.ne.s32.totalorder %s112, %s126
      %p128 = scmp.eq.s32.totalorder %s27, 0
      %p129 = por %p127, %p128
      %s131 = sadd.s32 %s130, 1
      %p134 = scmp.eq.s32.totalorder %s21, 3
      %p135 = scmp.ne.s32.totalorder %s130, %s132
      %p136 = scmp.eq.s32.totalorder %s21, 0
      %p137 = por %p135, %p136
      %p138 = scmp.ne.s32.totalorder %s130, %s132
      %p139 = scmp.eq.s32.totalorder %s26, 3
      %p140 = por %p138, %p139
      %p141 = scmp.ne.s32.totalorder %s132, %s133
      %p142 = scmp.eq.s32.totalorder %s26, 0
      %p143 = por %p141, %p142
      %p144 = scmp.ne.s32.totalorder %s132, %s133
      %p145 = scmp.eq.s32.totalorder %s27, 3
      %p146 = por %p144, %p145
      %p148 = scmp.ne.s32.totalorder %s133, %s147
      %p149 = scmp.eq.s32.totalorder %s27, 0
      %p150 = por %p148, %p149
      %s152 = sadd.s32 %s151, 1
      %p155 = scmp.eq.s32.totalorder %s21, 3
      %p156 = scmp.ne.s32.totalorder %s151, %s153
      %p157 = scmp.eq.s32.totalorder %s21, 0
      %p158 = por %p156, %p157
      %p159 = scmp.ne.s32.totalorder %s151, %s153
      %p160 = scmp.eq.s32.totalorder %s26, 3
      %p161 = por %p159, %p160
      %p162 = scmp.ne.s32.totalorder %s153, %s154
      %p163 = scmp.eq.s32.totalorder %s26, 0
      %p164 = por %p162, %p163
      %p165 = scmp.ne.s32.totalorder %s153, %s154
      %p166 = scmp.eq.s32.totalorder %s27, 3
      %p167 = por %p165, %p166
      %p169 = scmp.ne.s32.totalorder %s154, %s168
      %p170 = scmp.eq.s32.totalorder %s27, 0
      %p171 = por %p169, %p170
      %s173 = sadd.s32 %s172, 1
      %p176 = scmp.eq.s32.totalorder %s21, 3
      %p177 = scmp.ne.s32.totalorder %s172, %s174
      %p178 = scmp.eq.s32.totalorder %s21, 0
      %p179 = por %p177, %p178
      %p180 = scmp.ne.s32.totalorder %s172, %s174
      %p181 = scmp.eq.s32.totalorder %s26, 3
      %p182 = por %p180, %p181
      %p183 = scmp.ne.s32.totalorder %s174, %s175
      %p184 = scmp.eq.s32.totalorder %s26, 0
      %p185 = por %p183, %p184
      %p186 = scmp.ne.s32.totalorder %s174, %s175
      %p187 = scmp.eq.s32.totalorder %s27, 3
      %p188 = por %p186, %p187
      %p190 = scmp.ne.s32.totalorder %s175, %s189
      %p191 = scmp.eq.s32.totalorder %s27, 0
      %p192 = por %p190, %p191
      %s193 = ssub.s32 %s28, %s40
      %s194 = ssub.s32 %s29, %s36
      %s195 = sor.u32 %s193, %s194
      %p196 = scmp.eq.s32.totalorder %s195, 0
      %s198 = sadd.s32 %s197, 1
      %s199 = scalar_select %p196, %s197, %s198
      %p202 = pneg %p196
      %p203 = scmp.eq.s32.totalorder %s21, 3
      %p204 = por %p202, %p203
      %p205 = scmp.ne.s32.totalorder %s197, %s200
      %p206 = scmp.eq.s32.totalorder %s21, 0
      %p207 = por %p205, %p206
      %p208 = scmp.ne.s32.totalorder %s197, %s200
      %p209 = scmp.eq.s32.totalorder %s26, 3
      %p210 = por %p208, %p209
      %p211 = scmp.ne.s32.totalorder %s200, %s201
      %p212 = scmp.eq.s32.totalorder %s26, 0
      %p213 = por %p211, %p212
      %p214 = scmp.ne.s32.totalorder %s200, %s201
      %p215 = scmp.eq.s32.totalorder %s27, 3
      %p216 = por %p214, %p215
      %p218 = scmp.ne.s32.totalorder %s201, %s217
      %p219 = scmp.eq.s32.totalorder %s27, 0
      %p220 = por %p218, %p219
      %p221 = scmp.le.s32.totalorder 1, %s21
      %p222 = scmp.lt.s32.totalorder %s21, 5
      %p223 = pnand %p221, %p222
      %p224 = pneg %p223
      // Predicated region
      $region9: #{tpu_custom_call.1} parent=5 // pred_check
        _
      $region10: #{tpu_custom_call.1} parent=5 // pred_check_branch
        %226 = sbr.rel (%p223) target = $region12
      $region11: #{tpu_custom_call.1} parent=5 // pred_region
        %s227 = ssub.s32 %s21, 1
        // Predicated region
        $region13: #{tpu_custom_call.1} parent=11 // pred_check
          %p228 = pneg %p80
        $region14: #{tpu_custom_call.1} parent=11 // pred_check_branch
          %230 = sbr.rel (%p228) target = $region16
        $region15: #{tpu_custom_call.1} parent=11 // pred_region
          %s232 = ssub.s32 512, 512
          %233 = vsyncadd [#allocation10], %s232
          %s234 = sshll.u32 [#allocation9], 4
          %s235 = int_to_ptr.vmem [resolvable:$true] %s234
          %240 = dma.hbm_to_vmem [thread:$0]  %s1, 512, %s235, [#allocation10], 64, 64, 4
        $region16: #{tpu_custom_call.1} parent=11 // pred_fallthru
          _
        // Predicated region
        $region17: #{tpu_custom_call.1} parent=11 // pred_check
          %p241 = pneg %p101
        $region18: #{tpu_custom_call.1} parent=11 // pred_check_branch
          %243 = sbr.rel (%p241) target = $region20
        $region19: #{tpu_custom_call.1} parent=11 // pred_region
          _
        $region20: #{tpu_custom_call.1} parent=11 // pred_fallthru
          _
        // Predicated region
        $region21: #{tpu_custom_call.1} parent=11 // pred_check
          %p244 = pneg %p122
        $region22: #{tpu_custom_call.1} parent=11 // pred_check_branch
          %246 = sbr.rel (%p244) target = $region24
        $region23: #{tpu_custom_call.1} parent=11 // pred_region
          %s248 = ssub.s32 256, 256
          %249 = vsyncadd [#allocation10], %s248
          %s250 = sshll.u32 [#allocation11], 4
          %s251 = int_to_ptr.vmem [resolvable:$true] %s250
          %256 = dma.hbm_to_vmem [thread:$0]  %s3, 256, %s251, [#allocation10], 128, 128, 8
        $region24: #{tpu_custom_call.1} parent=11 // pred_fallthru
          _
        // Predicated region
        $region25: #{tpu_custom_call.1} parent=11 // pred_check
          %p257 = pneg %p143
        $region26: #{tpu_custom_call.1} parent=11 // pred_check_branch
          %259 = sbr.rel (%p257) target = $region28
        $region27: #{tpu_custom_call.1} parent=11 // pred_region
          _
        $region28: #{tpu_custom_call.1} parent=11 // pred_fallthru
          _
        // Predicated region
        $region29: #{tpu_custom_call.1} parent=11 // pred_check
          %p260 = pneg %p164
        $region30: #{tpu_custom_call.1} parent=11 // pred_check_branch
          %262 = sbr.rel (%p260) target = $region32
        $region31: #{tpu_custom_call.1} parent=11 // pred_region
          %s264 = ssub.s32 1024, 1024
          %265 = vsyncadd [#allocation13], %s264
          %s266 = sshll.u32 [#allocation12], 4
          %s267 = int_to_ptr.vmem [resolvable:$true] %s266
          %272 = dma.hbm_to_vmem [thread:$0]  %s5, 1024, %s267, [#allocation13], 64, 64, 4
        $region32: #{tpu_custom_call.1} parent=11 // pred_fallthru
          _
        // Predicated region
        $region33: #{tpu_custom_call.1} parent=11 // pred_check
          %p273 = pneg %p185
        $region34: #{tpu_custom_call.1} parent=11 // pred_check_branch
          %275 = sbr.rel (%p273) target = $region36
        $region35: #{tpu_custom_call.1} parent=11 // pred_region
          _
        $region36: #{tpu_custom_call.1} parent=11 // pred_fallthru
          _
      $region12: #{tpu_custom_call.1} parent=5 // pred_fallthru
        _
      %p276 = scmp.lt.s32.totalorder %s21, 4
      // Predicated region
      $region37: #{tpu_custom_call.1} parent=5 // pred_check
        %p277 = pneg %p276
      $region38: #{tpu_custom_call.1} parent=5 // pred_check_branch
        %279 = sbr.rel (%p277) target = $region40
      $region39: #{tpu_custom_call.1} parent=5 // pred_region
        // Predicated region
        $region41: #{tpu_custom_call.1} parent=39 // pred_check
          %p280 = pneg %p53
        $region42: #{tpu_custom_call.1} parent=39 // pred_check_branch
          %282 = sbr.rel (%p280) target = $region44
        $region43: #{tpu_custom_call.1} parent=39 // pred_region
          %s283 = sand.u32 %s43, 1
          %s284 = scalar_lea.sflag [#allocation7], %s283
          %s285 = sand.u32 %s43, 1
          %s286 = smul.addr %s285, 512
          %s287 = scalar_lea.vmem [#allocation6], %s286
          %s289 = ssub.s32 8192, 8192
          %290 = vsyncadd %s284, %s289
          %s291 = smul.addr %s28, 64
          %s292 = smul.addr %s291, 128
          %s293 = scalar_lea.hbm %s0, %s292
          %s294 = sshll.u32 %s287, 4
          %s295 = int_to_ptr.vmem [resolvable:$true] %s294
          %300 = dma.hbm_to_vmem [thread:$0]  %s293, 8192, %s295, %s284, 128, 128, 8
        $region44: #{tpu_custom_call.1} parent=39 // pred_fallthru
          _
      $region40: #{tpu_custom_call.1} parent=5 // pred_fallthru
        _
      %p301 = scmp.le.s32.totalorder 1, %s21
      %p302 = scmp.lt.s32.totalorder %s21, 5
      %p303 = pnand %p301, %p302
      %p304 = pneg %p303
      // Predicated region
      $region45: #{tpu_custom_call.1} parent=5 // pred_check
        _
      $region46: #{tpu_custom_call.1} parent=5 // pred_check_branch
        %306 = sbr.rel (%p303) target = $region48
      $region47: #{tpu_custom_call.1} parent=5 // pred_region
        %s307 = ssub.s32 %s21, 1
        %s308 = sand.u32 %s46, 1
        %s309 = scalar_lea.sflag [#allocation7], %s308
        %s310 = sand.u32 %s46, 1
        %s311 = smul.addr %s310, 512
        %s312 = scalar_lea.vmem [#allocation6], %s311
        // Predicated region
        $region49: #{tpu_custom_call.1} parent=47 // pred_check
          %p313 = pneg %p59
        $region50: #{tpu_custom_call.1} parent=47 // pred_check_branch
          %315 = sbr.rel (%p313) target = $region52
        $region51: #{tpu_custom_call.1} parent=47 // pred_region
          %316 = dma.done %s309, 8192
        $region52: #{tpu_custom_call.1} parent=47 // pred_fallthru
          _
        // Predicated region
        $region53: #{tpu_custom_call.1} parent=47 // pred_check
          %p317 = pneg %p80
        $region54: #{tpu_custom_call.1} parent=47 // pred_check_branch
          %319 = sbr.rel (%p317) target = $region56
        $region55: #{tpu_custom_call.1} parent=47 // pred_region
          %320 = dma.done [#allocation10], 512
        $region56: #{tpu_custom_call.1} parent=47 // pred_fallthru
          _
        // Predicated region
        $region57: #{tpu_custom_call.1} parent=47 // pred_check
          %p321 = pneg %p122
        $region58: #{tpu_custom_call.1} parent=47 // pred_check_branch
          %323 = sbr.rel (%p321) target = $region60
        $region59: #{tpu_custom_call.1} parent=47 // pred_region
          %324 = dma.done [#allocation10], 256
        $region60: #{tpu_custom_call.1} parent=47 // pred_fallthru
          _
        // Predicated region
        $region61: #{tpu_custom_call.1} parent=47 // pred_check
          %p325 = pneg %p164
        $region62: #{tpu_custom_call.1} parent=47 // pred_check_branch
          %327 = sbr.rel (%p325) target = $region64
        $region63: #{tpu_custom_call.1} parent=47 // pred_region
          %328 = dma.done [#allocation13], 1024
        $region64: #{tpu_custom_call.1} parent=47 // pred_fallthru
          _
        %s329 = sand.u32 %s46, 1
        %s330 = scalar_lea.sflag [#allocation7], %s329
        %s331 = sand.u32 %s46, 1
        %s332 = smul.addr %s331, 512
        %s333 = scalar_lea.vmem [#allocation6], %s332
        %p334 = pneg %p59
        %p335 = pneg %p56
        %p336 = pneg %p80
        %p337 = pneg %p77
        %p338 = pneg %p101
        %p339 = pneg %p98
        %p340 = pneg %p122
        %p341 = pneg %p119
        %p342 = pneg %p143
        %p343 = pneg %p140
        %p344 = pneg %p164
        %p345 = pneg %p161
        %p346 = pneg %p185
        %p347 = pneg %p182
        %p348 = pneg %p213
        %p349 = pneg %p210
        %s350 = sand.u32 %s200, 1
        %s351 = scalar_lea.sflag [#allocation8], %s350
        %s352 = sand.u32 %s200, 1
        %s353 = smul.addr %s352, 128
        %s354 = scalar_lea.vmem [#allocation14], %s353
        %s355 = smul.u32 16, %s31
        %s357 = smul.u32 %s31, 8
        %s358 = smul.u32 %s357, 32
        %s359 = scalar_lea.vmem %s312, %s358 [#allocation6]
        %v360 = vld [vmem:[%s359] sm:$0xff]
        %v361 = vld [vmem:[%s359 + $0x8] sm:$0xff]
        %v362 = vld [vmem:[%s359 + $0x20] sm:$0xff]
        %v363 = vld [vmem:[%s359 + $0x28] sm:$0xff]
        %v364 = vld [vmem:[%s359 + $0x40] sm:$0xff]
        %v365 = vld [vmem:[%s359 + $0x48] sm:$0xff]
        %v366 = vld [vmem:[%s359 + $0x60] sm:$0xff]
        %v367 = vld [vmem:[%s359 + $0x68] sm:$0xff]
        %v368 = vld [vmem:[%s359 + $0x80] sm:$0xff]
        %v369 = vld [vmem:[%s359 + $0x88] sm:$0xff]
        %v370 = vld [vmem:[%s359 + $0xa0] sm:$0xff]
        %v371 = vld [vmem:[%s359 + $0xa8] sm:$0xff]
        %v372 = vld [vmem:[%s359 + $0xc0] sm:$0xff]
        %v373 = vld [vmem:[%s359 + $0xc8] sm:$0xff]
        %v374 = vld [vmem:[%s359 + $0xe0] sm:$0xff]
        %v375 = vld [vmem:[%s359 + $0xe8] sm:$0xff]
        %v376 = vpack.c.bf16 %v361, %v360
        %v377 = vpack.c.bf16 %v363, %v362
        %v378 = vpack.c.bf16 %v365, %v364
        %v379 = vpack.c.bf16 %v367, %v366
        %v380 = vpack.c.bf16 %v369, %v368
        %v381 = vpack.c.bf16 %v371, %v370
        %v382 = vpack.c.bf16 %v373, %v372
        %v383 = vpack.c.bf16 %v375, %v374
        %v384 = vld [vmem:[#allocation9] sm:$0xf]
        %v385 = vld [vmem:[#allocation9 + $0x4] sm:$0xf]
        %v386 = vld [vmem:[#allocation9 + $0x8] sm:$0xf]
        %v387 = vld [vmem:[#allocation9 + $0xc] sm:$0xf]
        %v388 = vld [vmem:[#allocation9 + $0x10] sm:$0xf]
        %v389 = vld [vmem:[#allocation9 + $0x14] sm:$0xf]
        %v390 = vld [vmem:[#allocation9 + $0x18] sm:$0xf]
        %v391 = vld [vmem:[#allocation9 + $0x1c] sm:$0xf]
        %v392 = vld [vmem:[%s2] sm:$0x1]
        %v394 = vlaneseq
        %v395 = vshrl.u32 %v394, 7
        %v396 = vsub.s32 0, %v395
        %v397 = vrot.slane %v392, %v396
        %v407 = vunpack.c.l.b16 %v384
        %v408 = vunpack.c.l.b16 %v385
        %v409 = vunpack.c.l.b16 %v386
        %v410 = vunpack.c.l.b16 %v387
        %v411 = vunpack.c.l.b16 %v388
        %v412 = vunpack.c.l.b16 %v389
        %v413 = vunpack.c.l.b16 %v390
        %v414 = vunpack.c.l.b16 %v391
        %v415 = vpack.c.b16 %v408, %v407
        %v416 = vpack.c.b16 %v410, %v409
        %v417 = vpack.c.b16 %v412, %v411
        %v418 = vpack.c.b16 %v414, %v413
        %vm423 = vcmask 523264
        %v425 = vsel %vm423, %v376, 0
        %v428 = vsel %vm423, %v377, 0
        %v431 = vsel %vm423, %v378, 0
        %v434 = vsel %vm423, %v379, 0
        %v437 = vsel %vm423, %v380, 0
        %v440 = vsel %vm423, %v381, 0
        %v443 = vsel %vm423, %v382, 0
        %v446 = vsel %vm423, %v383, 0
        %448 = vmatprep.subr.bf16.mxu0 0
        %449 = vmatpush1.bf16.msra.mxu0 %v415
        %450 = vmatprep.subr.bf16.mxu0 0
        %451 = vmatpush1.bf16.msra.mxu0 %v416
        %452 = vmatprep.subr.bf16.mxu0 0
        %453 = vmatpush1.bf16.msra.mxu0 %v417
        %454 = vmatprep.subr.bf16.mxu0 0
        %455 = vmatpush1.bf16.msra.mxu0 %v418
        %456 = vmatprep.subr.bf16.mxu0 0
        %457 = vmatpush1.bf16.msra.mxu0 0
        %458 = vmatprep.subr.bf16.mxu0 0
        %459 = vmatpush1.bf16.msra.mxu0 0
        %460 = vmatprep.subr.bf16.mxu0 0
        %461 = vmatpush1.bf16.msra.mxu0 0
        %462 = vmatprep.subr.bf16.mxu0 0
        %463 = vmatpush1.bf16.msra.mxu0 0
        %464 = vmatprep.subr.bf16.mxu0 0
        %465 = vmatpush1.bf16.msra.mxu0 0
        %466 = vmatprep.subr.bf16.mxu0 0
        %467 = vmatpush1.bf16.msra.mxu0 0
        %468 = vmatprep.subr.bf16.mxu0 0
        %469 = vmatpush1.bf16.msra.mxu0 0
        %470 = vmatprep.subr.bf16.mxu0 0
        %471 = vmatpush1.bf16.msra.mxu0 0
        %472 = vmatprep.subr.bf16.mxu0 0
        %473 = vmatpush1.bf16.msra.mxu0 0
        %474 = vmatprep.subr.bf16.mxu0 0
        %475 = vmatpush1.bf16.msra.mxu0 0
        %476 = vmatprep.subr.bf16.mxu0 0
        %477 = vmatpush1.bf16.msra.mxu0 0
        %478 = vmatprep.subr.bf16.mxu0 0
        %479 = vmatpush1.bf16.msra.mxu0 0
        %480 = vmatprep.mubr.bf16.mxu0 0
        %481 = vmatmul.mubr.bf16.gmra.mrb[0].mxu0 %v425
        %v482 = vpop.f32.mrb[0].mxu0
        %v483 = vadd.f32 %v397, %v482
        %v484 = vpop.f32.mrb[0].mxu0
        %v485 = vpop.f32.mrb[0].mxu0
        %v486 = vadd.f32 %v397, %v485
        %v487 = vpop.f32.mrb[0].mxu0
        %488 = vmatprep.mubr.bf16.mxu0 0
        %489 = vmatmul.mubr.bf16.gmra.mrb[0].mxu0 %v428
        %v490 = vpop.f32.mrb[0].mxu0
        %v491 = vadd.f32 %v397, %v490
        %v492 = vpop.f32.mrb[0].mxu0
        %v493 = vpop.f32.mrb[0].mxu0
        %v494 = vadd.f32 %v397, %v493
        %v495 = vpop.f32.mrb[0].mxu0
        %496 = vmatprep.mubr.bf16.mxu0 0
        %497 = vmatmul.mubr.bf16.gmra.mrb[0].mxu0 %v431
        %v498 = vpop.f32.mrb[0].mxu0
        %v499 = vadd.f32 %v397, %v498
        %v500 = vpop.f32.mrb[0].mxu0
        %v501 = vpop.f32.mrb[0].mxu0
        %v502 = vadd.f32 %v397, %v501
        %v503 = vpop.f32.mrb[0].mxu0
        %504 = vmatprep.mubr.bf16.mxu0 0
        %505 = vmatmul.mubr.bf16.gmra.mrb[0].mxu0 %v434
        %v506 = vpop.f32.mrb[0].mxu0
        %v507 = vadd.f32 %v397, %v506
        %v508 = vpop.f32.mrb[0].mxu0
        %v509 = vpop.f32.mrb[0].mxu0
        %v510 = vadd.f32 %v397, %v509
        %v511 = vpop.f32.mrb[0].mxu0
        %512 = vmatprep.mubr.bf16.mxu0 0
        %513 = vmatmul.mubr.bf16.gmra.mrb[0].mxu0 %v437
        %v514 = vpop.f32.mrb[0].mxu0
        %v515 = vadd.f32 %v397, %v514
        %v516 = vpop.f32.mrb[0].mxu0
        %v517 = vpop.f32.mrb[0].mxu0
        %v518 = vadd.f32 %v397, %v517
        %v519 = vpop.f32.mrb[0].mxu0
        %520 = vmatprep.mubr.bf16.mxu0 0
        %521 = vmatmul.mubr.bf16.gmra.mrb[0].mxu0 %v440
        %v522 = vpop.f32.mrb[0].mxu0
        %v523 = vadd.f32 %v397, %v522
        %v524 = vpop.f32.mrb[0].mxu0
        %v525 = vpop.f32.mrb[0].mxu0
        %v526 = vadd.f32 %v397, %v525
        %v527 = vpop.f32.mrb[0].mxu0
        %528 = vmatprep.mubr.bf16.mxu0 0
        %529 = vmatmul.mubr.bf16.gmra.mrb[0].mxu0 %v443
        %v530 = vpop.f32.mrb[0].mxu0
        %v531 = vadd.f32 %v397, %v530
        %v532 = vpop.f32.mrb[0].mxu0
        %v533 = vpop.f32.mrb[0].mxu0
        %v534 = vadd.f32 %v397, %v533
        %v535 = vpop.f32.mrb[0].mxu0
        %536 = vmatprep.mubr.bf16.mxu0 0
        %537 = vmatmul.mubr.bf16.gmra.mrb[0].mxu0 %v446
        %v538 = vpop.f32.mrb[0].mxu0
        %v539 = vadd.f32 %v397, %v538
        %v540 = vpop.f32.mrb[0].mxu0
        %v541 = vpop.f32.mrb[0].mxu0
        %v542 = vadd.f32 %v397, %v541
        %v543 = vpop.f32.mrb[0].mxu0
        %544 = vdwg.mxu0
        %v545 = vmul.f32 %v483, 0.5
        %v546 = vmul.f32 %v486, 0.5
        %v547 = vmul.f32 %v491, 0.5
        %v548 = vmul.f32 %v494, 0.5
        %v549 = vmul.f32 %v499, 0.5
        %v550 = vmul.f32 %v502, 0.5
        %v551 = vmul.f32 %v507, 0.5
        %v552 = vmul.f32 %v510, 0.5
        %v553 = vmul.f32 %v515, 0.5
        %v554 = vmul.f32 %v518, 0.5
        %v555 = vmul.f32 %v523, 0.5
        %v556 = vmul.f32 %v526, 0.5
        %v557 = vmul.f32 %v531, 0.5
        %v558 = vmul.f32 %v534, 0.5
        %v559 = vmul.f32 %v539, 0.5
        %v560 = vmul.f32 %v542, 0.5
        %v561 = vmul.f32 %v483, 0.044715
        %v562 = vmul.f32 %v486, 0.044715
        %v563 = vmul.f32 %v491, 0.044715
        %v564 = vmul.f32 %v494, 0.044715
        %v565 = vmul.f32 %v499, 0.044715
        %v566 = vmul.f32 %v502, 0.044715
        %v567 = vmul.f32 %v507, 0.044715
        %v568 = vmul.f32 %v510, 0.044715
        %v569 = vmul.f32 %v515, 0.044715
        %v570 = vmul.f32 %v518, 0.044715
        %v571 = vmul.f32 %v523, 0.044715
        %v572 = vmul.f32 %v526, 0.044715
        %v573 = vmul.f32 %v531, 0.044715
        %v574 = vmul.f32 %v534, 0.044715
        %v575 = vmul.f32 %v539, 0.044715
        %v576 = vmul.f32 %v542, 0.044715
        %v577 = vmul.f32 %v561, %v483
        %v578 = vmul.f32 %v562, %v486
        %v579 = vmul.f32 %v563, %v491
        %v580 = vmul.f32 %v564, %v494
        %v581 = vmul.f32 %v565, %v499
        %v582 = vmul.f32 %v566, %v502
        %v583 = vmul.f32 %v567, %v507
        %v584 = vmul.f32 %v568, %v510
        %v585 = vmul.f32 %v569, %v515
        %v586 = vmul.f32 %v570, %v518
        %v587 = vmul.f32 %v571, %v523
        %v588 = vmul.f32 %v572, %v526
        %v589 = vmul.f32 %v573, %v531
        %v590 = vmul.f32 %v574, %v534
        %v591 = vmul.f32 %v575, %v539
        %v592 = vmul.f32 %v576, %v542
        %v593 = vmul.f32 %v577, %v483
        %v594 = vmul.f32 %v578, %v486
        %v595 = vmul.f32 %v579, %v491
        %v596 = vmul.f32 %v580, %v494
        %v597 = vmul.f32 %v581, %v499
        %v598 = vmul.f32 %v582, %v502
        %v599 = vmul.f32 %v583, %v507
        %v600 = vmul.f32 %v584, %v510
        %v601 = vmul.f32 %v585, %v515
        %v602 = vmul.f32 %v586, %v518
        %v603 = vmul.f32 %v587, %v523
        %v604 = vmul.f32 %v588, %v526
        %v605 = vmul.f32 %v589, %v531
        %v606 = vmul.f32 %v590, %v534
        %v607 = vmul.f32 %v591, %v539
        %v608 = vmul.f32 %v592, %v542
        %v609 = vadd.f32 %v483, %v593
        %v610 = vadd.f32 %v486, %v594
        %v611 = vadd.f32 %v491, %v595
        %v612 = vadd.f32 %v494, %v596
        %v613 = vadd.f32 %v499, %v597
        %v614 = vadd.f32 %v502, %v598
        %v615 = vadd.f32 %v507, %v599
        %v616 = vadd.f32 %v510, %v600
        %v617 = vadd.f32 %v515, %v601
        %v618 = vadd.f32 %v518, %v602
        %v619 = vadd.f32 %v523, %v603
        %v620 = vadd.f32 %v526, %v604
        %v621 = vadd.f32 %v531, %v605
        %v622 = vadd.f32 %v534, %v606
        %v623 = vadd.f32 %v539, %v607
        %v624 = vadd.f32 %v542, %v608
        %v625 = vmul.f32 %v609, 0.7978846
        %v626 = vmul.f32 %v610, 0.7978846
        %v627 = vmul.f32 %v611, 0.7978846
        %v628 = vmul.f32 %v612, 0.7978846
        %v629 = vmul.f32 %v613, 0.7978846
        %v630 = vmul.f32 %v614, 0.7978846
        %v631 = vmul.f32 %v615, 0.7978846
        %v632 = vmul.f32 %v616, 0.7978846
        %v633 = vmul.f32 %v617, 0.7978846
        %v634 = vmul.f32 %v618, 0.7978846
        %v635 = vmul.f32 %v619, 0.7978846
        %v636 = vmul.f32 %v620, 0.7978846
        %v637 = vmul.f32 %v621, 0.7978846
        %v638 = vmul.f32 %v622, 0.7978846
        %v639 = vmul.f32 %v623, 0.7978846
        %v640 = vmul.f32 %v624, 0.7978846
        %v641 = vtanh.pop %v625
        %v642 = vtanh.pop %v626
        %v643 = vtanh.pop %v627
        %v644 = vtanh.pop %v628
        %v645 = vtanh.pop %v629
        %v646 = vtanh.pop %v630
        %v647 = vtanh.pop %v631
        %v648 = vtanh.pop %v632
        %v649 = vtanh.pop %v633
        %v650 = vtanh.pop %v634
        %v651 = vtanh.pop %v635
        %v652 = vtanh.pop %v636
        %v653 = vtanh.pop %v637
        %v654 = vtanh.pop %v638
        %v655 = vtanh.pop %v639
        %v656 = vtanh.pop %v640
        %v657 = vadd.f32 %v641, 1.0
        %v658 = vadd.f32 %v642, 1.0
        %v659 = vadd.f32 %v643, 1.0
        %v660 = vadd.f32 %v644, 1.0
        %v661 = vadd.f32 %v645, 1.0
        %v662 = vadd.f32 %v646, 1.0
        %v663 = vadd.f32 %v647, 1.0
        %v664 = vadd.f32 %v648, 1.0
        %v665 = vadd.f32 %v649, 1.0
        %v666 = vadd.f32 %v650, 1.0
        %v667 = vadd.f32 %v651, 1.0
        %v668 = vadd.f32 %v652, 1.0
        %v669 = vadd.f32 %v653, 1.0
        %v670 = vadd.f32 %v654, 1.0
        %v671 = vadd.f32 %v655, 1.0
        %v672 = vadd.f32 %v656, 1.0
        %v673 = vmul.f32 %v545, %v657
        %v674 = vmul.f32 %v546, %v658
        %v675 = vmul.f32 %v547, %v659
        %v676 = vmul.f32 %v548, %v660
        %v677 = vmul.f32 %v549, %v661
        %v678 = vmul.f32 %v550, %v662
        %v679 = vmul.f32 %v551, %v663
        %v680 = vmul.f32 %v552, %v664
        %v681 = vmul.f32 %v553, %v665
        %v682 = vmul.f32 %v554, %v666
        %v683 = vmul.f32 %v555, %v667
        %v684 = vmul.f32 %v556, %v668
        %v685 = vmul.f32 %v557, %v669
        %v686 = vmul.f32 %v558, %v670
        %v687 = vmul.f32 %v559, %v671
        %v688 = vmul.f32 %v560, %v672
        %697 = vrot.lane.b32.xlu0 %v376, 64
        %v698 = vpop.permute.xlu0 %697
        %699 = vrot.lane.b32.xlu0 %v377, 64
        %v700 = vpop.permute.xlu0 %699
        %701 = vrot.lane.b32.xlu0 %v378, 64
        %v702 = vpop.permute.xlu0 %701
        %703 = vrot.lane.b32.xlu0 %v379, 64
        %v704 = vpop.permute.xlu0 %703
        %705 = vrot.lane.b32.xlu0 %v380, 64
        %v706 = vpop.permute.xlu0 %705
        %707 = vrot.lane.b32.xlu0 %v381, 64
        %v708 = vpop.permute.xlu0 %707
        %709 = vrot.lane.b32.xlu0 %v382, 64
        %v710 = vpop.permute.xlu0 %709
        %711 = vrot.lane.b32.xlu0 %v383, 64
        %v712 = vpop.permute.xlu0 %711
        %v714 = vsel %vm423, %v698, 0
        %v717 = vsel %vm423, %v700, 0
        %v720 = vsel %vm423, %v702, 0
        %v723 = vsel %vm423, %v704, 0
        %v726 = vsel %vm423, %v706, 0
        %v729 = vsel %vm423, %v708, 0
        %v732 = vsel %vm423, %v710, 0
        %v735 = vsel %vm423, %v712, 0
        %737 = vmatprep.subr.bf16.mxu0 0
        %738 = vmatpush1.bf16.msra.mxu0 %v415
        %739 = vmatprep.subr.bf16.mxu0 0
        %740 = vmatpush1.bf16.msra.mxu0 %v416
        %741 = vmatprep.subr.bf16.mxu0 0
        %742 = vmatpush1.bf16.msra.mxu0 %v417
        %743 = vmatprep.subr.bf16.mxu0 0
        %744 = vmatpush1.bf16.msra.mxu0 %v418
        %745 = vmatprep.subr.bf16.mxu0 0
        %746 = vmatpush1.bf16.msra.mxu0 0
        %747 = vmatprep.subr.bf16.mxu0 0
        %748 = vmatpush1.bf16.msra.mxu0 0
        %749 = vmatprep.subr.bf16.mxu0 0
        %750 = vmatpush1.bf16.msra.mxu0 0
        %751 = vmatprep.subr.bf16.mxu0 0
        %752 = vmatpush1.bf16.msra.mxu0 0
        %753 = vmatprep.subr.bf16.mxu0 0
        %754 = vmatpush1.bf16.msra.mxu0 0
        %755 = vmatprep.subr.bf16.mxu0 0
        %756 = vmatpush1.bf16.msra.mxu0 0
        %757 = vmatprep.subr.bf16.mxu0 0
        %758 = vmatpush1.bf16.msra.mxu0 0
        %759 = vmatprep.subr.bf16.mxu0 0
        %760 = vmatpush1.bf16.msra.mxu0 0
        %761 = vmatprep.subr.bf16.mxu0 0
        %762 = vmatpush1.bf16.msra.mxu0 0
        %763 = vmatprep.subr.bf16.mxu0 0
        %764 = vmatpush1.bf16.msra.mxu0 0
        %765 = vmatprep.subr.bf16.mxu0 0
        %766 = vmatpush1.bf16.msra.mxu0 0
        %767 = vmatprep.subr.bf16.mxu0 0
        %768 = vmatpush1.bf16.msra.mxu0 0
        %769 = vmatprep.mubr.bf16.mxu0 0
        %770 = vmatmul.mubr.bf16.gmra.mrb[0].mxu0 %v714
        %v771 = vpop.f32.mrb[0].mxu0
        %v772 = vadd.f32 %v397, %v771
        %v773 = vpop.f32.mrb[0].mxu0
        %v774 = vpop.f32.mrb[0].mxu0
        %v775 = vadd.f32 %v397, %v774
        %v776 = vpop.f32.mrb[0].mxu0
        %777 = vmatprep.mubr.bf16.mxu0 0
        %778 = vmatmul.mubr.bf16.gmra.mrb[0].mxu0 %v717
        %v779 = vpop.f32.mrb[0].mxu0
        %v780 = vadd.f32 %v397, %v779
        %v781 = vpop.f32.mrb[0].mxu0
        %v782 = vpop.f32.mrb[0].mxu0
        %v783 = vadd.f32 %v397, %v782
        %v784 = vpop.f32.mrb[0].mxu0
        %785 = vmatprep.mubr.bf16.mxu0 0
        %786 = vmatmul.mubr.bf16.gmra.mrb[0].mxu0 %v720
        %v787 = vpop.f32.mrb[0].mxu0
        %v788 = vadd.f32 %v397, %v787
        %v789 = vpop.f32.mrb[0].mxu0
        %v790 = vpop.f32.mrb[0].mxu0
        %v791 = vadd.f32 %v397, %v790
        %v792 = vpop.f32.mrb[0].mxu0
        %793 = vmatprep.mubr.bf16.mxu0 0
        %794 = vmatmul.mubr.bf16.gmra.mrb[0].mxu0 %v723
        %v795 = vpop.f32.mrb[0].mxu0
        %v796 = vadd.f32 %v397, %v795
        %v797 = vpop.f32.mrb[0].mxu0
        %v798 = vpop.f32.mrb[0].mxu0
        %v799 = vadd.f32 %v397, %v798
        %v800 = vpop.f32.mrb[0].mxu0
        %801 = vmatprep.mubr.bf16.mxu0 0
        %802 = vmatmul.mubr.bf16.gmra.mrb[0].mxu0 %v726
        %v803 = vpop.f32.mrb[0].mxu0
        %v804 = vadd.f32 %v397, %v803
        %v805 = vpop.f32.mrb[0].mxu0
        %v806 = vpop.f32.mrb[0].mxu0
        %v807 = vadd.f32 %v397, %v806
        %v808 = vpop.f32.mrb[0].mxu0
        %809 = vmatprep.mubr.bf16.mxu0 0
        %810 = vmatmul.mubr.bf16.gmra.mrb[0].mxu0 %v729
        %v811 = vpop.f32.mrb[0].mxu0
        %v812 = vadd.f32 %v397, %v811
        %v813 = vpop.f32.mrb[0].mxu0
        %v814 = vpop.f32.mrb[0].mxu0
        %v815 = vadd.f32 %v397, %v814
        %v816 = vpop.f32.mrb[0].mxu0
        %817 = vmatprep.mubr.bf16.mxu0 0
        %818 = vmatmul.mubr.bf16.gmra.mrb[0].mxu0 %v732
        %v819 = vpop.f32.mrb[0].mxu0
        %v820 = vadd.f32 %v397, %v819
        %v821 = vpop.f32.mrb[0].mxu0
        %v822 = vpop.f32.mrb[0].mxu0
        %v823 = vadd.f32 %v397, %v822
        %v824 = vpop.f32.mrb[0].mxu0
        %825 = vmatprep.mubr.bf16.mxu0 0
        %826 = vmatmul.mubr.bf16.gmra.mrb[0].mxu0 %v735
        %v827 = vpop.f32.mrb[0].mxu0
        %v828 = vadd.f32 %v397, %v827
        %v829 = vpop.f32.mrb[0].mxu0
        %v830 = vpop.f32.mrb[0].mxu0
        %v831 = vadd.f32 %v397, %v830
        %v832 = vpop.f32.mrb[0].mxu0
        %833 = vdwg.mxu0
        %v834 = vmul.f32 %v772, 0.5
        %v835 = vmul.f32 %v775, 0.5
        %v836 = vmul.f32 %v780, 0.5
        %v837 = vmul.f32 %v783, 0.5
        %v838 = vmul.f32 %v788, 0.5
        %v839 = vmul.f32 %v791, 0.5
        %v840 = vmul.f32 %v796, 0.5
        %v841 = vmul.f32 %v799, 0.5
        %v842 = vmul.f32 %v804, 0.5
        %v843 = vmul.f32 %v807, 0.5
        %v844 = vmul.f32 %v812, 0.5
        %v845 = vmul.f32 %v815, 0.5
        %v846 = vmul.f32 %v820, 0.5
        %v847 = vmul.f32 %v823, 0.5
        %v848 = vmul.f32 %v828, 0.5
        %v849 = vmul.f32 %v831, 0.5
        %v850 = vmul.f32 %v772, 0.044715
        %v851 = vmul.f32 %v775, 0.044715
        %v852 = vmul.f32 %v780, 0.044715
        %v853 = vmul.f32 %v783, 0.044715
        %v854 = vmul.f32 %v788, 0.044715
        %v855 = vmul.f32 %v791, 0.044715
        %v856 = vmul.f32 %v796, 0.044715
        %v857 = vmul.f32 %v799, 0.044715
        %v858 = vmul.f32 %v804, 0.044715
        %v859 = vmul.f32 %v807, 0.044715
        %v860 = vmul.f32 %v812, 0.044715
        %v861 = vmul.f32 %v815, 0.044715
        %v862 = vmul.f32 %v820, 0.044715
        %v863 = vmul.f32 %v823, 0.044715
        %v864 = vmul.f32 %v828, 0.044715
        %v865 = vmul.f32 %v831, 0.044715
        %v866 = vmul.f32 %v850, %v772
        %v867 = vmul.f32 %v851, %v775
        %v868 = vmul.f32 %v852, %v780
        %v869 = vmul.f32 %v853, %v783
        %v870 = vmul.f32 %v854, %v788
        %v871 = vmul.f32 %v855, %v791
        %v872 = vmul.f32 %v856, %v796
        %v873 = vmul.f32 %v857, %v799
        %v874 = vmul.f32 %v858, %v804
        %v875 = vmul.f32 %v859, %v807
        %v876 = vmul.f32 %v860, %v812
        %v877 = vmul.f32 %v861, %v815
        %v878 = vmul.f32 %v862, %v820
        %v879 = vmul.f32 %v863, %v823
        %v880 = vmul.f32 %v864, %v828
        %v881 = vmul.f32 %v865, %v831
        %v882 = vmul.f32 %v866, %v772
        %v883 = vmul.f32 %v867, %v775
        %v884 = vmul.f32 %v868, %v780
        %v885 = vmul.f32 %v869, %v783
        %v886 = vmul.f32 %v870, %v788
        %v887 = vmul.f32 %v871, %v791
        %v888 = vmul.f32 %v872, %v796
        %v889 = vmul.f32 %v873, %v799
        %v890 = vmul.f32 %v874, %v804
        %v891 = vmul.f32 %v875, %v807
        %v892 = vmul.f32 %v876, %v812
        %v893 = vmul.f32 %v877, %v815
        %v894 = vmul.f32 %v878, %v820
        %v895 = vmul.f32 %v879, %v823
        %v896 = vmul.f32 %v880, %v828
        %v897 = vmul.f32 %v881, %v831
        %v898 = vadd.f32 %v772, %v882
        %v899 = vadd.f32 %v775, %v883
        %v900 = vadd.f32 %v780, %v884
        %v901 = vadd.f32 %v783, %v885
        %v902 = vadd.f32 %v788, %v886
        %v903 = vadd.f32 %v791, %v887
        %v904 = vadd.f32 %v796, %v888
        %v905 = vadd.f32 %v799, %v889
        %v906 = vadd.f32 %v804, %v890
        %v907 = vadd.f32 %v807, %v891
        %v908 = vadd.f32 %v812, %v892
        %v909 = vadd.f32 %v815, %v893
        %v910 = vadd.f32 %v820, %v894
        %v911 = vadd.f32 %v823, %v895
        %v912 = vadd.f32 %v828, %v896
        %v913 = vadd.f32 %v831, %v897
        %v914 = vmul.f32 %v898, 0.7978846
        %v915 = vmul.f32 %v899, 0.7978846
        %v916 = vmul.f32 %v900, 0.7978846
        %v917 = vmul.f32 %v901, 0.7978846
        %v918 = vmul.f32 %v902, 0.7978846
        %v919 = vmul.f32 %v903, 0.7978846
        %v920 = vmul.f32 %v904, 0.7978846
        %v921 = vmul.f32 %v905, 0.7978846
        %v922 = vmul.f32 %v906, 0.7978846
        %v923 = vmul.f32 %v907, 0.7978846
        %v924 = vmul.f32 %v908, 0.7978846
        %v925 = vmul.f32 %v909, 0.7978846
        %v926 = vmul.f32 %v910, 0.7978846
        %v927 = vmul.f32 %v911, 0.7978846
        %v928 = vmul.f32 %v912, 0.7978846
        %v929 = vmul.f32 %v913, 0.7978846
        %v930 = vtanh.pop %v914
        %v931 = vtanh.pop %v915
        %v932 = vtanh.pop %v916
        %v933 = vtanh.pop %v917
        %v934 = vtanh.pop %v918
        %v935 = vtanh.pop %v919
        %v936 = vtanh.pop %v920
        %v937 = vtanh.pop %v921
        %v938 = vtanh.pop %v922
        %v939 = vtanh.pop %v923
        %v940 = vtanh.pop %v924
        %v941 = vtanh.pop %v925
        %v942 = vtanh.pop %v926
        %v943 = vtanh.pop %v927
        %v944 = vtanh.pop %v928
        %v945 = vtanh.pop %v929
        %v946 = vadd.f32 %v930, 1.0
        %v947 = vadd.f32 %v931, 1.0
        %v948 = vadd.f32 %v932, 1.0
        %v949 = vadd.f32 %v933, 1.0
        %v950 = vadd.f32 %v934, 1.0
        %v951 = vadd.f32 %v935, 1.0
        %v952 = vadd.f32 %v936, 1.0
        %v953 = vadd.f32 %v937, 1.0
        %v954 = vadd.f32 %v938, 1.0
        %v955 = vadd.f32 %v939, 1.0
        %v956 = vadd.f32 %v940, 1.0
        %v957 = vadd.f32 %v941, 1.0
        %v958 = vadd.f32 %v942, 1.0
        %v959 = vadd.f32 %v943, 1.0
        %v960 = vadd.f32 %v944, 1.0
        %v961 = vadd.f32 %v945, 1.0
        %v962 = vmul.f32 %v834, %v946
        %v963 = vmul.f32 %v835, %v947
        %v964 = vmul.f32 %v836, %v948
        %v965 = vmul.f32 %v837, %v949
        %v966 = vmul.f32 %v838, %v950
        %v967 = vmul.f32 %v839, %v951
        %v968 = vmul.f32 %v840, %v952
        %v969 = vmul.f32 %v841, %v953
        %v970 = vmul.f32 %v842, %v954
        %v971 = vmul.f32 %v843, %v955
        %v972 = vmul.f32 %v844, %v956
        %v973 = vmul.f32 %v845, %v957
        %v974 = vmul.f32 %v846, %v958
        %v975 = vmul.f32 %v847, %v959
        %v976 = vmul.f32 %v848, %v960
        %v977 = vmul.f32 %v849, %v961
        %978 = vst [vmem:[#allocation2] sm:$0xff] %v673
        %979 = vst [vmem:[#allocation2 + $0x8] sm:$0xff] %v674
        %980 = vst [vmem:[#allocation2 + $0x10] sm:$0xff] %v675
        %981 = vst [vmem:[#allocation2 + $0x18] sm:$0xff] %v676
        %982 = vst [vmem:[#allocation2 + $0x20] sm:$0xff] %v677
        %983 = vst [vmem:[#allocation2 + $0x28] sm:$0xff] %v678
        %984 = vst [vmem:[#allocation2 + $0x30] sm:$0xff] %v679
        %985 = vst [vmem:[#allocation2 + $0x38] sm:$0xff] %v680
        %986 = vst [vmem:[#allocation2 + $0x40] sm:$0xff] %v681
        %987 = vst [vmem:[#allocation2 + $0x48] sm:$0xff] %v682
        %988 = vst [vmem:[#allocation2 + $0x50] sm:$0xff] %v683
        %989 = vst [vmem:[#allocation2 + $0x58] sm:$0xff] %v684
        %990 = vst [vmem:[#allocation2 + $0x60] sm:$0xff] %v685
        %991 = vst [vmem:[#allocation2 + $0x68] sm:$0xff] %v686
        %992 = vst [vmem:[#allocation2 + $0x70] sm:$0xff] %v687
        %993 = vst [vmem:[#allocation2 + $0x78] sm:$0xff] %v688
        %994 = vst [vmem:[#allocation3 + $0x1] sm:$0xff] %v962
        %995 = vst [vmem:[#allocation3 + $0x9] sm:$0xff] %v963
        %996 = vst [vmem:[#allocation3 + $0x19] sm:$0xff] %v964
        %997 = vst [vmem:[#allocation3 + $0x21] sm:$0xff] %v965
        %998 = vst [vmem:[#allocation3 + $0x31] sm:$0xff] %v966
        %999 = vst [vmem:[#allocation3 + $0x39] sm:$0xff] %v967
        %1000 = vst [vmem:[#allocation3 + $0x49] sm:$0xff] %v968
        %1001 = vst [vmem:[#allocation3 + $0x51] sm:$0xff] %v969
        %1002 = vst [vmem:[#allocation3 + $0x61] sm:$0xff] %v970
        %1003 = vst [vmem:[#allocation3 + $0x69] sm:$0xff] %v971
        %1004 = vst [vmem:[#allocation3 + $0x79] sm:$0xff] %v972
        %1005 = vst [vmem:[#allocation3 + $0x81] sm:$0xff] %v973
        %1006 = vst [vmem:[#allocation3 + $0x91] sm:$0xff] %v974
        %1007 = vst [vmem:[#allocation3 + $0x99] sm:$0xff] %v975
        %1008 = vst [vmem:[#allocation3 + $0xa9] sm:$0xff] %v976
        %1009 = vst [vmem:[#allocation3 + $0xb1] sm:$0xff] %v977
        %s1010 = sadd.s32 16, %s358
        %s1011 = scalar_lea.vmem %s312, %s1010 [#allocation6]
        %v1012 = vld [vmem:[%s1011] sm:$0xff]
        %v1013 = vld [vmem:[%s1011 + $0x8] sm:$0xff]
        %v1014 = vld [vmem:[%s1011 + $0x20] sm:$0xff]
        %v1015 = vld [vmem:[%s1011 + $0x28] sm:$0xff]
        %v1016 = vld [vmem:[%s1011 + $0x40] sm:$0xff]
        %v1017 = vld [vmem:[%s1011 + $0x48] sm:$0xff]
        %v1018 = vld [vmem:[%s1011 + $0x60] sm:$0xff]
        %v1019 = vld [vmem:[%s1011 + $0x68] sm:$0xff]
        %v1020 = vld [vmem:[%s1011 + $0x80] sm:$0xff]
        %v1021 = vld [vmem:[%s1011 + $0x88] sm:$0xff]
        %v1022 = vld [vmem:[%s1011 + $0xa0] sm:$0xff]
        %v1023 = vld [vmem:[%s1011 + $0xa8] sm:$0xff]
        %v1024 = vld [vmem:[%s1011 + $0xc0] sm:$0xff]
        %v1025 = vld [vmem:[%s1011 + $0xc8] sm:$0xff]
        %v1026 = vld [vmem:[%s1011 + $0xe0] sm:$0xff]
        %v1027 = vld [vmem:[%s1011 + $0xe8] sm:$0xff]
        %v1028 = vpack.c.bf16 %v1013, %v1012
        %v1029 = vpack.c.bf16 %v1015, %v1014
        %v1030 = vpack.c.bf16 %v1017, %v1016
        %v1031 = vpack.c.bf16 %v1019, %v1018
        %v1032 = vpack.c.bf16 %v1021, %v1020
        %v1033 = vpack.c.bf16 %v1023, %v1022
        %v1034 = vpack.c.bf16 %v1025, %v1024
        %v1035 = vpack.c.bf16 %v1027, %v1026
        %v1036 = vld [vmem:[#allocation9] sm:$0xf]
        %v1037 = vld [vmem:[#allocation9 + $0x4] sm:$0xf]
        %v1038 = vld [vmem:[#allocation9 + $0x8] sm:$0xf]
        %v1039 = vld [vmem:[#allocation9 + $0xc] sm:$0xf]
        %v1040 = vld [vmem:[#allocation9 + $0x10] sm:$0xf]
        %v1041 = vld [vmem:[#allocation9 + $0x14] sm:$0xf]
        %v1042 = vld [vmem:[#allocation9 + $0x18] sm:$0xf]
        %v1043 = vld [vmem:[#allocation9 + $0x1c] sm:$0xf]
        %v1044 = vld [vmem:[%s2] sm:$0x1]
        %v1046 = vlaneseq
        %v1047 = vshrl.u32 %v1046, 7
        %v1048 = vsub.s32 0, %v1047
        %v1049 = vrot.slane %v1044, %v1048
        %v1059 = vunpack.c.l.b16 %v1036
        %v1060 = vunpack.c.l.b16 %v1037
        %v1061 = vunpack.c.l.b16 %v1038
        %v1062 = vunpack.c.l.b16 %v1039
        %v1063 = vunpack.c.l.b16 %v1040
        %v1064 = vunpack.c.l.b16 %v1041
        %v1065 = vunpack.c.l.b16 %v1042
        %v1066 = vunpack.c.l.b16 %v1043
        %v1067 = vpack.c.b16 %v1060, %v1059
        %v1068 = vpack.c.b16 %v1062, %v1061
        %v1069 = vpack.c.b16 %v1064, %v1063
        %v1070 = vpack.c.b16 %v1066, %v1065
        %v1076 = vsel %vm423, %v1028, 0
        %v1079 = vsel %vm423, %v1029, 0
        %v1082 = vsel %vm423, %v1030, 0
        %v1085 = vsel %vm423, %v1031, 0
        %v1088 = vsel %vm423, %v1032, 0
        %v1091 = vsel %vm423, %v1033, 0
        %v1094 = vsel %vm423, %v1034, 0
        %v1097 = vsel %vm423, %v1035, 0
        %1099 = vmatprep.subr.bf16.mxu0 0
        %1100 = vmatpush1.bf16.msra.mxu0 %v1067
        %1101 = vmatprep.subr.bf16.mxu0 0
        %1102 = vmatpush1.bf16.msra.mxu0 %v1068
        %1103 = vmatprep.subr.bf16.mxu0 0
        %1104 = vmatpush1.bf16.msra.mxu0 %v1069
        %1105 = vmatprep.subr.bf16.mxu0 0
        %1106 = vmatpush1.bf16.msra.mxu0 %v1070
        %1107 = vmatprep.subr.bf16.mxu0 0
        %1108 = vmatpush1.bf16.msra.mxu0 0
        %1109 = vmatprep.subr.bf16.mxu0 0
        %1110 = vmatpush1.bf16.msra.mxu0 0
        %1111 = vmatprep.subr.bf16.mxu0 0
        %1112 = vmatpush1.bf16.msra.mxu0 0
        %1113 = vmatprep.subr.bf16.mxu0 0
        %1114 = vmatpush1.bf16.msra.mxu0 0
        %1115 = vmatprep.subr.bf16.mxu0 0
        %1116 = vmatpush1.bf16.msra.mxu0 0
        %1117 = vmatprep.subr.bf16.mxu0 0
        %1118 = vmatpush1.bf16.msra.mxu0 0
        %1119 = vmatprep.subr.bf16.mxu0 0
        %1120 = vmatpush1.bf16.msra.mxu0 0
        %1121 = vmatprep.subr.bf16.mxu0 0
        %1122 = vmatpush1.bf16.msra.mxu0 0
        %1123 = vmatprep.subr.bf16.mxu0 0
        %1124 = vmatpush1.bf16.msra.mxu0 0
        %1125 = vmatprep.subr.bf16.mxu0 0
        %1126 = vmatpush1.bf16.msra.mxu0 0
        %1127 = vmatprep.subr.bf16.mxu0 0
        %1128 = vmatpush1.bf16.msra.mxu0 0
        %1129 = vmatprep.subr.bf16.mxu0 0
        %1130 = vmatpush1.bf16.msra.mxu0 0
        %1131 = vmatprep.mubr.bf16.mxu0 0
        %1132 = vmatmul.mubr.bf16.gmra.mrb[0].mxu0 %v1076
        %v1133 = vpop.f32.mrb[0].mxu0
        %v1134 = vadd.f32 %v1049, %v1133
        %v1135 = vpop.f32.mrb[0].mxu0
        %v1136 = vpop.f32.mrb[0].mxu0
        %v1137 = vadd.f32 %v1049, %v1136
        %v1138 = vpop.f32.mrb[0].mxu0
        %1139 = vmatprep.mubr.bf16.mxu0 0
        %1140 = vmatmul.mubr.bf16.gmra.mrb[0].mxu0 %v1079
        %v1141 = vpop.f32.mrb[0].mxu0
        %v1142 = vadd.f32 %v1049, %v1141
        %v1143 = vpop.f32.mrb[0].mxu0
        %v1144 = vpop.f32.mrb[0].mxu0
        %v1145 = vadd.f32 %v1049, %v1144
        %v1146 = vpop.f32.mrb[0].mxu0
        %1147 = vmatprep.mubr.bf16.mxu0 0
        %1148 = vmatmul.mubr.bf16.gmra.mrb[0].mxu0 %v1082
        %v1149 = vpop.f32.mrb[0].mxu0
        %v1150 = vadd.f32 %v1049, %v1149
        %v1151 = vpop.f32.mrb[0].mxu0
        %v1152 = vpop.f32.mrb[0].mxu0
        %v1153 = vadd.f32 %v1049, %v1152
        %v1154 = vpop.f32.mrb[0].mxu0
        %1155 = vmatprep.mubr.bf16.mxu0 0
        %1156 = vmatmul.mubr.bf16.gmra.mrb[0].mxu0 %v1085
        %v1157 = vpop.f32.mrb[0].mxu0
        %v1158 = vadd.f32 %v1049, %v1157
        %v1159 = vpop.f32.mrb[0].mxu0
        %v1160 = vpop.f32.mrb[0].mxu0
        %v1161 = vadd.f32 %v1049, %v1160
        %v1162 = vpop.f32.mrb[0].mxu0
        %1163 = vmatprep.mubr.bf16.mxu0 0
        %1164 = vmatmul.mubr.bf16.gmra.mrb[0].mxu0 %v1088
        %v1165 = vpop.f32.mrb[0].mxu0
        %v1166 = vadd.f32 %v1049, %v1165
        %v1167 = vpop.f32.mrb[0].mxu0
        %v1168 = vpop.f32.mrb[0].mxu0
        %v1169 = vadd.f32 %v1049, %v1168
        %v1170 = vpop.f32.mrb[0].mxu0
        %1171 = vmatprep.mubr.bf16.mxu0 0
        %1172 = vmatmul.mubr.bf16.gmra.mrb[0].mxu0 %v1091
        %v1173 = vpop.f32.mrb[0].mxu0
        %v1174 = vadd.f32 %v1049, %v1173
        %v1175 = vpop.f32.mrb[0].mxu0
        %v1176 = vpop.f32.mrb[0].mxu0
        %v1177 = vadd.f32 %v1049, %v1176
        %v1178 = vpop.f32.mrb[0].mxu0
        %1179 = vmatprep.mubr.bf16.mxu0 0
        %1180 = vmatmul.mubr.bf16.gmra.mrb[0].mxu0 %v1094
        %v1181 = vpop.f32.mrb[0].mxu0
        %v1182 = vadd.f32 %v1049, %v1181
        %v1183 = vpop.f32.mrb[0].mxu0
        %v1184 = vpop.f32.mrb[0].mxu0
        %v1185 = vadd.f32 %v1049, %v1184
        %v1186 = vpop.f32.mrb[0].mxu0
        %1187 = vmatprep.mubr.bf16.mxu0 0
        %1188 = vmatmul.mubr.bf16.gmra.mrb[0].mxu0 %v1097
        %v1189 = vpop.f32.mrb[0].mxu0
        %v1190 = vadd.f32 %v1049, %v1189
        %v1191 = vpop.f32.mrb[0].mxu0
        %v1192 = vpop.f32.mrb[0].mxu0
        %v1193 = vadd.f32 %v1049, %v1192
        %v1194 = vpop.f32.mrb[0].mxu0
        %1195 = vdwg.mxu0
        %v1196 = vmul.f32 %v1134, 0.5
        %v1197 = vmul.f32 %v1137, 0.5
        %v1198 = vmul.f32 %v1142, 0.5
        %v1199 = vmul.f32 %v1145, 0.5
        %v1200 = vmul.f32 %v1150, 0.5
        %v1201 = vmul.f32 %v1153, 0.5
        %v1202 = vmul.f32 %v1158, 0.5
        %v1203 = vmul.f32 %v1161, 0.5
        %v1204 = vmul.f32 %v1166, 0.5
        %v1205 = vmul.f32 %v1169, 0.5
        %v1206 = vmul.f32 %v1174, 0.5
        %v1207 = vmul.f32 %v1177, 0.5
        %v1208 = vmul.f32 %v1182, 0.5
        %v1209 = vmul.f32 %v1185, 0.5
        %v1210 = vmul.f32 %v1190, 0.5
        %v1211 = vmul.f32 %v1193, 0.5
        %v1212 = vmul.f32 %v1134, 0.044715
        %v1213 = vmul.f32 %v1137, 0.044715
        %v1214 = vmul.f32 %v1142, 0.044715
        %v1215 = vmul.f32 %v1145, 0.044715
        %v1216 = vmul.f32 %v1150, 0.044715
        %v1217 = vmul.f32 %v1153, 0.044715
        %v1218 = vmul.f32 %v1158, 0.044715
        %v1219 = vmul.f32 %v1161, 0.044715
        %v1220 = vmul.f32 %v1166, 0.044715
        %v1221 = vmul.f32 %v1169, 0.044715
        %v1222 = vmul.f32 %v1174, 0.044715
        %v1223 = vmul.f32 %v1177, 0.044715
        %v1224 = vmul.f32 %v1182, 0.044715
        %v1225 = vmul.f32 %v1185, 0.044715
        %v1226 = vmul.f32 %v1190, 0.044715
        %v1227 = vmul.f32 %v1193, 0.044715
        %v1228 = vmul.f32 %v1212, %v1134
        %v1229 = vmul.f32 %v1213, %v1137
        %v1230 = vmul.f32 %v1214, %v1142
        %v1231 = vmul.f32 %v1215, %v1145
        %v1232 = vmul.f32 %v1216, %v1150
        %v1233 = vmul.f32 %v1217, %v1153
        %v1234 = vmul.f32 %v1218, %v1158
        %v1235 = vmul.f32 %v1219, %v1161
        %v1236 = vmul.f32 %v1220, %v1166
        %v1237 = vmul.f32 %v1221, %v1169
        %v1238 = vmul.f32 %v1222, %v1174
        %v1239 = vmul.f32 %v1223, %v1177
        %v1240 = vmul.f32 %v1224, %v1182
        %v1241 = vmul.f32 %v1225, %v1185
        %v1242 = vmul.f32 %v1226, %v1190
        %v1243 = vmul.f32 %v1227, %v1193
        %v1244 = vmul.f32 %v1228, %v1134
        %v1245 = vmul.f32 %v1229, %v1137
        %v1246 = vmul.f32 %v1230, %v1142
        %v1247 = vmul.f32 %v1231, %v1145
        %v1248 = vmul.f32 %v1232, %v1150
        %v1249 = vmul.f32 %v1233, %v1153
        %v1250 = vmul.f32 %v1234, %v1158
        %v1251 = vmul.f32 %v1235, %v1161
        %v1252 = vmul.f32 %v1236, %v1166
        %v1253 = vmul.f32 %v1237, %v1169
        %v1254 = vmul.f32 %v1238, %v1174
        %v1255 = vmul.f32 %v1239, %v1177
        %v1256 = vmul.f32 %v1240, %v1182
        %v1257 = vmul.f32 %v1241, %v1185
        %v1258 = vmul.f32 %v1242, %v1190
        %v1259 = vmul.f32 %v1243, %v1193
        %v1260 = vadd.f32 %v1134, %v1244
        %v1261 = vadd.f32 %v1137, %v1245
        %v1262 = vadd.f32 %v1142, %v1246
        %v1263 = vadd.f32 %v1145, %v1247
        %v1264 = vadd.f32 %v1150, %v1248
        %v1265 = vadd.f32 %v1153, %v1249
        %v1266 = vadd.f32 %v1158, %v1250
        %v1267 = vadd.f32 %v1161, %v1251
        %v1268 = vadd.f32 %v1166, %v1252
        %v1269 = vadd.f32 %v1169, %v1253
        %v1270 = vadd.f32 %v1174, %v1254
        %v1271 = vadd.f32 %v1177, %v1255
        %v1272 = vadd.f32 %v1182, %v1256
        %v1273 = vadd.f32 %v1185, %v1257
        %v1274 = vadd.f32 %v1190, %v1258
        %v1275 = vadd.f32 %v1193, %v1259
        %v1276 = vmul.f32 %v1260, 0.7978846
        %v1277 = vmul.f32 %v1261, 0.7978846
        %v1278 = vmul.f32 %v1262, 0.7978846
        %v1279 = vmul.f32 %v1263, 0.7978846
        %v1280 = vmul.f32 %v1264, 0.7978846
        %v1281 = vmul.f32 %v1265, 0.7978846
        %v1282 = vmul.f32 %v1266, 0.7978846
        %v1283 = vmul.f32 %v1267, 0.7978846
        %v1284 = vmul.f32 %v1268, 0.7978846
        %v1285 = vmul.f32 %v1269, 0.7978846
        %v1286 = vmul.f32 %v1270, 0.7978846
        %v1287 = vmul.f32 %v1271, 0.7978846
        %v1288 = vmul.f32 %v1272, 0.7978846
        %v1289 = vmul.f32 %v1273, 0.7978846
        %v1290 = vmul.f32 %v1274, 0.7978846
        %v1291 = vmul.f32 %v1275, 0.7978846
        %v1292 = vtanh.pop %v1276
        %v1293 = vtanh.pop %v1277
        %v1294 = vtanh.pop %v1278
        %v1295 = vtanh.pop %v1279
        %v1296 = vtanh.pop %v1280
        %v1297 = vtanh.pop %v1281
        %v1298 = vtanh.pop %v1282
        %v1299 = vtanh.pop %v1283
        %v1300 = vtanh.pop %v1284
        %v1301 = vtanh.pop %v1285
        %v1302 = vtanh.pop %v1286
        %v1303 = vtanh.pop %v1287
        %v1304 = vtanh.pop %v1288
        %v1305 = vtanh.pop %v1289
        %v1306 = vtanh.pop %v1290
        %v1307 = vtanh.pop %v1291
        %v1308 = vadd.f32 %v1292, 1.0
        %v1309 = vadd.f32 %v1293, 1.0
        %v1310 = vadd.f32 %v1294, 1.0
        %v1311 = vadd.f32 %v1295, 1.0
        %v1312 = vadd.f32 %v1296, 1.0
        %v1313 = vadd.f32 %v1297, 1.0
        %v1314 = vadd.f32 %v1298, 1.0
        %v1315 = vadd.f32 %v1299, 1.0
        %v1316 = vadd.f32 %v1300, 1.0
        %v1317 = vadd.f32 %v1301, 1.0
        %v1318 = vadd.f32 %v1302, 1.0
        %v1319 = vadd.f32 %v1303, 1.0
        %v1320 = vadd.f32 %v1304, 1.0
        %v1321 = vadd.f32 %v1305, 1.0
        %v1322 = vadd.f32 %v1306, 1.0
        %v1323 = vadd.f32 %v1307, 1.0
        %v1324 = vmul.f32 %v1196, %v1308
        %v1325 = vmul.f32 %v1197, %v1309
        %v1326 = vmul.f32 %v1198, %v1310
        %v1327 = vmul.f32 %v1199, %v1311
        %v1328 = vmul.f32 %v1200, %v1312
        %v1329 = vmul.f32 %v1201, %v1313
        %v1330 = vmul.f32 %v1202, %v1314
        %v1331 = vmul.f32 %v1203, %v1315
        %v1332 = vmul.f32 %v1204, %v1316
        %v1333 = vmul.f32 %v1205, %v1317
        %v1334 = vmul.f32 %v1206, %v1318
        %v1335 = vmul.f32 %v1207, %v1319
        %v1336 = vmul.f32 %v1208, %v1320
        %v1337 = vmul.f32 %v1209, %v1321
        %v1338 = vmul.f32 %v1210, %v1322
        %v1339 = vmul.f32 %v1211, %v1323
        %1348 = vrot.lane.b32.xlu0 %v1028, 64
        %v1349 = vpop.permute.xlu0 %1348
        %1350 = vrot.lane.b32.xlu0 %v1029, 64
        %v1351 = vpop.permute.xlu0 %1350
        %1352 = vrot.lane.b32.xlu0 %v1030, 64
        %v1353 = vpop.permute.xlu0 %1352
        %1354 = vrot.lane.b32.xlu0 %v1031, 64
        %v1355 = vpop.permute.xlu0 %1354
        %1356 = vrot.lane.b32.xlu0 %v1032, 64
        %v1357 = vpop.permute.xlu0 %1356
        %1358 = vrot.lane.b32.xlu0 %v1033, 64
        %v1359 = vpop.permute.xlu0 %1358
        %1360 = vrot.lane.b32.xlu0 %v1034, 64
        %v1361 = vpop.permute.xlu0 %1360
        %1362 = vrot.lane.b32.xlu0 %v1035, 64
        %v1363 = vpop.permute.xlu0 %1362
        %v1365 = vsel %vm423, %v1349, 0
        %v1368 = vsel %vm423, %v1351, 0
        %v1371 = vsel %vm423, %v1353, 0
        %v1374 = vsel %vm423, %v1355, 0
        %v1377 = vsel %vm423, %v1357, 0
        %v1380 = vsel %vm423, %v1359, 0
        %v1383 = vsel %vm423, %v1361, 0
        %v1386 = vsel %vm423, %v1363, 0
        %1388 = vmatprep.subr.bf16.mxu0 0
        %1389 = vmatpush1.bf16.msra.mxu0 %v1067
        %1390 = vmatprep.subr.bf16.mxu0 0
        %1391 = vmatpush1.bf16.msra.mxu0 %v1068
        %1392 = vmatprep.subr.bf16.mxu0 0
        %1393 = vmatpush1.bf16.msra.mxu0 %v1069
        %1394 = vmatprep.subr.bf16.mxu0 0
        %1395 = vmatpush1.bf16.msra.mxu0 %v1070
        %1396 = vmatprep.subr.bf16.mxu0 0
        %1397 = vmatpush1.bf16.msra.mxu0 0
        %1398 = vmatprep.subr.bf16.mxu0 0
        %1399 = vmatpush1.bf16.msra.mxu0 0
        %1400 = vmatprep.subr.bf16.mxu0 0
        %1401 = vmatpush1.bf16.msra.mxu0 0
        %1402 = vmatprep.subr.bf16.mxu0 0
        %1403 = vmatpush1.bf16.msra.mxu0 0
        %1404 = vmatprep.subr.bf16.mxu0 0
        %1405 = vmatpush1.bf16.msra.mxu0 0
        %1406 = vmatprep.subr.bf16.mxu0 0
        %1407 = vmatpush1.bf16.msra.mxu0 0
        %1408 = vmatprep.subr.bf16.mxu0 0
        %1409 = vmatpush1.bf16.msra.mxu0 0
        %1410 = vmatprep.subr.bf16.mxu0 0
        %1411 = vmatpush1.bf16.msra.mxu0 0
        %1412 = vmatprep.subr.bf16.mxu0 0
        %1413 = vmatpush1.bf16.msra.mxu0 0
        %1414 = vmatprep.subr.bf16.mxu0 0
        %1415 = vmatpush1.bf16.msra.mxu0 0
        %1416 = vmatprep.subr.bf16.mxu0 0
        %1417 = vmatpush1.bf16.msra.mxu0 0
        %1418 = vmatprep.subr.bf16.mxu0 0
        %1419 = vmatpush1.bf16.msra.mxu0 0
        %1420 = vmatprep.mubr.bf16.mxu0 0
        %1421 = vmatmul.mubr.bf16.gmra.mrb[0].mxu0 %v1365
        %v1422 = vpop.f32.mrb[0].mxu0
        %v1423 = vadd.f32 %v1049, %v1422
        %v1424 = vpop.f32.mrb[0].mxu0
        %v1425 = vpop.f32.mrb[0].mxu0
        %v1426 = vadd.f32 %v1049, %v1425
        %v1427 = vpop.f32.mrb[0].mxu0
        %1428 = vmatprep.mubr.bf16.mxu0 0
        %1429 = vmatmul.mubr.bf16.gmra.mrb[0].mxu0 %v1368
        %v1430 = vpop.f32.mrb[0].mxu0
        %v1431 = vadd.f32 %v1049, %v1430
        %v1432 = vpop.f32.mrb[0].mxu0
        %v1433 = vpop.f32.mrb[0].mxu0
        %v1434 = vadd.f32 %v1049, %v1433
        %v1435 = vpop.f32.mrb[0].mxu0
        %1436 = vmatprep.mubr.bf16.mxu0 0
        %1437 = vmatmul.mubr.bf16.gmra.mrb[0].mxu0 %v1371
        %v1438 = vpop.f32.mrb[0].mxu0
        %v1439 = vadd.f32 %v1049, %v1438
        %v1440 = vpop.f32.mrb[0].mxu0
        %v1441 = vpop.f32.mrb[0].mxu0
        %v1442 = vadd.f32 %v1049, %v1441
        %v1443 = vpop.f32.mrb[0].mxu0
        %1444 = vmatprep.mubr.bf16.mxu0 0
        %1445 = vmatmul.mubr.bf16.gmra.mrb[0].mxu0 %v1374
        %v1446 = vpop.f32.mrb[0].mxu0
        %v1447 = vadd.f32 %v1049, %v1446
        %v1448 = vpop.f32.mrb[0].mxu0
        %v1449 = vpop.f32.mrb[0].mxu0
        %v1450 = vadd.f32 %v1049, %v1449
        %v1451 = vpop.f32.mrb[0].mxu0
        %1452 = vmatprep.mubr.bf16.mxu0 0
        %1453 = vmatmul.mubr.bf16.gmra.mrb[0].mxu0 %v1377
        %v1454 = vpop.f32.mrb[0].mxu0
        %v1455 = vadd.f32 %v1049, %v1454
        %v1456 = vpop.f32.mrb[0].mxu0
        %v1457 = vpop.f32.mrb[0].mxu0
        %v1458 = vadd.f32 %v1049, %v1457
        %v1459 = vpop.f32.mrb[0].mxu0
        %1460 = vmatprep.mubr.bf16.mxu0 0
        %1461 = vmatmul.mubr.bf16.gmra.mrb[0].mxu0 %v1380
        %v1462 = vpop.f32.mrb[0].mxu0
        %v1463 = vadd.f32 %v1049, %v1462
        %v1464 = vpop.f32.mrb[0].mxu0
        %v1465 = vpop.f32.mrb[0].mxu0
        %v1466 = vadd.f32 %v1049, %v1465
        %v1467 = vpop.f32.mrb[0].mxu0
        %1468 = vmatprep.mubr.bf16.mxu0 0
        %1469 = vmatmul.mubr.bf16.gmra.mrb[0].mxu0 %v1383
        %v1470 = vpop.f32.mrb[0].mxu0
        %v1471 = vadd.f32 %v1049, %v1470
        %v1472 = vpop.f32.mrb[0].mxu0
        %v1473 = vpop.f32.mrb[0].mxu0
        %v1474 = vadd.f32 %v1049, %v1473
        %v1475 = vpop.f32.mrb[0].mxu0
        %1476 = vmatprep.mubr.bf16.mxu0 0
        %1477 = vmatmul.mubr.bf16.gmra.mrb[0].mxu0 %v1386
        %v1478 = vpop.f32.mrb[0].mxu0
        %v1479 = vadd.f32 %v1049, %v1478
        %v1480 = vpop.f32.mrb[0].mxu0
        %v1481 = vpop.f32.mrb[0].mxu0
        %v1482 = vadd.f32 %v1049, %v1481
        %v1483 = vpop.f32.mrb[0].mxu0
        %1484 = vdwg.mxu0
        %v1485 = vmul.f32 %v1423, 0.5
        %v1486 = vmul.f32 %v1426, 0.5
        %v1487 = vmul.f32 %v1431, 0.5
        %v1488 = vmul.f32 %v1434, 0.5
        %v1489 = vmul.f32 %v1439, 0.5
        %v1490 = vmul.f32 %v1442, 0.5
        %v1491 = vmul.f32 %v1447, 0.5
        %v1492 = vmul.f32 %v1450, 0.5
        %v1493 = vmul.f32 %v1455, 0.5
        %v1494 = vmul.f32 %v1458, 0.5
        %v1495 = vmul.f32 %v1463, 0.5
        %v1496 = vmul.f32 %v1466, 0.5
        %v1497 = vmul.f32 %v1471, 0.5
        %v1498 = vmul.f32 %v1474, 0.5
        %v1499 = vmul.f32 %v1479, 0.5
        %v1500 = vmul.f32 %v1482, 0.5
        %v1501 = vmul.f32 %v1423, 0.044715
        %v1502 = vmul.f32 %v1426, 0.044715
        %v1503 = vmul.f32 %v1431, 0.044715
        %v1504 = vmul.f32 %v1434, 0.044715
        %v1505 = vmul.f32 %v1439, 0.044715
        %v1506 = vmul.f32 %v1442, 0.044715
        %v1507 = vmul.f32 %v1447, 0.044715
        %v1508 = vmul.f32 %v1450, 0.044715
        %v1509 = vmul.f32 %v1455, 0.044715
        %v1510 = vmul.f32 %v1458, 0.044715
        %v1511 = vmul.f32 %v1463, 0.044715
        %v1512 = vmul.f32 %v1466, 0.044715
        %v1513 = vmul.f32 %v1471, 0.044715
        %v1514 = vmul.f32 %v1474, 0.044715
        %v1515 = vmul.f32 %v1479, 0.044715
        %v1516 = vmul.f32 %v1482, 0.044715
        %v1517 = vmul.f32 %v1501, %v1423
        %v1518 = vmul.f32 %v1502, %v1426
        %v1519 = vmul.f32 %v1503, %v1431
        %v1520 = vmul.f32 %v1504, %v1434
        %v1521 = vmul.f32 %v1505, %v1439
        %v1522 = vmul.f32 %v1506, %v1442
        %v1523 = vmul.f32 %v1507, %v1447
        %v1524 = vmul.f32 %v1508, %v1450
        %v1525 = vmul.f32 %v1509, %v1455
        %v1526 = vmul.f32 %v1510, %v1458
        %v1527 = vmul.f32 %v1511, %v1463
        %v1528 = vmul.f32 %v1512, %v1466
        %v1529 = vmul.f32 %v1513, %v1471
        %v1530 = vmul.f32 %v1514, %v1474
        %v1531 = vmul.f32 %v1515, %v1479
        %v1532 = vmul.f32 %v1516, %v1482
        %v1533 = vmul.f32 %v1517, %v1423
        %v1534 = vmul.f32 %v1518, %v1426
        %v1535 = vmul.f32 %v1519, %v1431
        %v1536 = vmul.f32 %v1520, %v1434
        %v1537 = vmul.f32 %v1521, %v1439
        %v1538 = vmul.f32 %v1522, %v1442
        %v1539 = vmul.f32 %v1523, %v1447
        %v1540 = vmul.f32 %v1524, %v1450
        %v1541 = vmul.f32 %v1525, %v1455
        %v1542 = vmul.f32 %v1526, %v1458
        %v1543 = vmul.f32 %v1527, %v1463
        %v1544 = vmul.f32 %v1528, %v1466
        %v1545 = vmul.f32 %v1529, %v1471
        %v1546 = vmul.f32 %v1530, %v1474
        %v1547 = vmul.f32 %v1531, %v1479
        %v1548 = vmul.f32 %v1532, %v1482
        %v1549 = vadd.f32 %v1423, %v1533
        %v1550 = vadd.f32 %v1426, %v1534
        %v1551 = vadd.f32 %v1431, %v1535
        %v1552 = vadd.f32 %v1434, %v1536
        %v1553 = vadd.f32 %v1439, %v1537
        %v1554 = vadd.f32 %v1442, %v1538
        %v1555 = vadd.f32 %v1447, %v1539
        %v1556 = vadd.f32 %v1450, %v1540
        %v1557 = vadd.f32 %v1455, %v1541
        %v1558 = vadd.f32 %v1458, %v1542
        %v1559 = vadd.f32 %v1463, %v1543
        %v1560 = vadd.f32 %v1466, %v1544
        %v1561 = vadd.f32 %v1471, %v1545
        %v1562 = vadd.f32 %v1474, %v1546
        %v1563 = vadd.f32 %v1479, %v1547
        %v1564 = vadd.f32 %v1482, %v1548
        %v1565 = vmul.f32 %v1549, 0.7978846
        %v1566 = vmul.f32 %v1550, 0.7978846
        %v1567 = vmul.f32 %v1551, 0.7978846
        %v1568 = vmul.f32 %v1552, 0.7978846
        %v1569 = vmul.f32 %v1553, 0.7978846
        %v1570 = vmul.f32 %v1554, 0.7978846
        %v1571 = vmul.f32 %v1555, 0.7978846
        %v1572 = vmul.f32 %v1556, 0.7978846
        %v1573 = vmul.f32 %v1557, 0.7978846
        %v1574 = vmul.f32 %v1558, 0.7978846
        %v1575 = vmul.f32 %v1559, 0.7978846
        %v1576 = vmul.f32 %v1560, 0.7978846
        %v1577 = vmul.f32 %v1561, 0.7978846
        %v1578 = vmul.f32 %v1562, 0.7978846
        %v1579 = vmul.f32 %v1563, 0.7978846
        %v1580 = vmul.f32 %v1564, 0.7978846
        %v1581 = vtanh.pop %v1565
        %v1582 = vtanh.pop %v1566
        %v1583 = vtanh.pop %v1567
        %v1584 = vtanh.pop %v1568
        %v1585 = vtanh.pop %v1569
        %v1586 = vtanh.pop %v1570
        %v1587 = vtanh.pop %v1571
        %v1588 = vtanh.pop %v1572
        %v1589 = vtanh.pop %v1573
        %v1590 = vtanh.pop %v1574
        %v1591 = vtanh.pop %v1575
        %v1592 = vtanh.pop %v1576
        %v1593 = vtanh.pop %v1577
        %v1594 = vtanh.pop %v1578
        %v1595 = vtanh.pop %v1579
        %v1596 = vtanh.pop %v1580
        %v1597 = vadd.f32 %v1581, 1.0
        %v1598 = vadd.f32 %v1582, 1.0
        %v1599 = vadd.f32 %v1583, 1.0
        %v1600 = vadd.f32 %v1584, 1.0
        %v1601 = vadd.f32 %v1585, 1.0
        %v1602 = vadd.f32 %v1586, 1.0
        %v1603 = vadd.f32 %v1587, 1.0
        %v1604 = vadd.f32 %v1588, 1.0
        %v1605 = vadd.f32 %v1589, 1.0
        %v1606 = vadd.f32 %v1590, 1.0
        %v1607 = vadd.f32 %v1591, 1.0
        %v1608 = vadd.f32 %v1592, 1.0
        %v1609 = vadd.f32 %v1593, 1.0
        %v1610 = vadd.f32 %v1594, 1.0
        %v1611 = vadd.f32 %v1595, 1.0
        %v1612 = vadd.f32 %v1596, 1.0
        %v1613 = vmul.f32 %v1485, %v1597
        %v1614 = vmul.f32 %v1486, %v1598
        %v1615 = vmul.f32 %v1487, %v1599
        %v1616 = vmul.f32 %v1488, %v1600
        %v1617 = vmul.f32 %v1489, %v1601
        %v1618 = vmul.f32 %v1490, %v1602
        %v1619 = vmul.f32 %v1491, %v1603
        %v1620 = vmul.f32 %v1492, %v1604
        %v1621 = vmul.f32 %v1493, %v1605
        %v1622 = vmul.f32 %v1494, %v1606
        %v1623 = vmul.f32 %v1495, %v1607
        %v1624 = vmul.f32 %v1496, %v1608
        %v1625 = vmul.f32 %v1497, %v1609
        %v1626 = vmul.f32 %v1498, %v1610
        %v1627 = vmul.f32 %v1499, %v1611
        %v1628 = vmul.f32 %v1500, %v1612
        %s1629 = scalar_lea.vmem [#allocation4], 16
        %1630 = vst [vmem:[%s1629] sm:$0xff] %v1324
        %1631 = vst [vmem:[%s1629 + $0x8] sm:$0xff] %v1325
        %1632 = vst [vmem:[%s1629 + $0x10] sm:$0xff] %v1326
        %1633 = vst [vmem:[%s1629 + $0x18] sm:$0xff] %v1327
        %1634 = vst [vmem:[%s1629 + $0x20] sm:$0xff] %v1328
        %1635 = vst [vmem:[%s1629 + $0x28] sm:$0xff] %v1329
        %1636 = vst [vmem:[%s1629 + $0x30] sm:$0xff] %v1330
        %1637 = vst [vmem:[%s1629 + $0x38] sm:$0xff] %v1331
        %1638 = vst [vmem:[%s1629 + $0x40] sm:$0xff] %v1332
        %1639 = vst [vmem:[%s1629 + $0x48] sm:$0xff] %v1333
        %1640 = vst [vmem:[%s1629 + $0x50] sm:$0xff] %v1334
        %1641 = vst [vmem:[%s1629 + $0x58] sm:$0xff] %v1335
        %1642 = vst [vmem:[%s1629 + $0x60] sm:$0xff] %v1336
        %1643 = vst [vmem:[%s1629 + $0x68] sm:$0xff] %v1337
        %1644 = vst [vmem:[%s1629 + $0x70] sm:$0xff] %v1338
        %1645 = vst [vmem:[%s1629 + $0x78] sm:$0xff] %v1339
        %s1646 = scalar_lea.vmem [#allocation5], 24
        %1647 = vst [vmem:[%s1646 + $0x1] sm:$0xff] %v1613
        %1648 = vst [vmem:[%s1646 + $0x9] sm:$0xff] %v1614
        %1649 = vst [vmem:[%s1646 + $0x19] sm:$0xff] %v1615
        %1650 = vst [vmem:[%s1646 + $0x21] sm:$0xff] %v1616
        %1651 = vst [vmem:[%s1646 + $0x31] sm:$0xff] %v1617
        %1652 = vst [vmem:[%s1646 + $0x39] sm:$0xff] %v1618
        %1653 = vst [vmem:[%s1646 + $0x49] sm:$0xff] %v1619
        %1654 = vst [vmem:[%s1646 + $0x51] sm:$0xff] %v1620
        %1655 = vst [vmem:[%s1646 + $0x61] sm:$0xff] %v1621
        %1656 = vst [vmem:[%s1646 + $0x69] sm:$0xff] %v1622
        %1657 = vst [vmem:[%s1646 + $0x79] sm:$0xff] %v1623
        %1658 = vst [vmem:[%s1646 + $0x81] sm:$0xff] %v1624
        %1659 = vst [vmem:[%s1646 + $0x91] sm:$0xff] %v1625
        %1660 = vst [vmem:[%s1646 + $0x99] sm:$0xff] %v1626
        %1661 = vst [vmem:[%s1646 + $0xa9] sm:$0xff] %v1627
        %1662 = vst [vmem:[%s1646 + $0xb1] sm:$0xff] %v1628
        %p1663 = scmp.eq.s32.totalorder %s31, 0
        // Predicated region
        $region65: #{tpu_custom_call.1} parent=47 // pred_check
          %p1664 = pneg %p1663
        $region66: #{tpu_custom_call.1} parent=47 // pred_check_branch
          %1666 = sbr.rel (%p1664) target = $region68
        $region67: #{tpu_custom_call.1} parent=47 // pred_region
          %1667 = vst [vmem:[#allocation4] sm:$0xff] 0.0
          %1668 = vst [vmem:[#allocation4 + $0x8] sm:$0xff] 0.0
          %1669 = vst [vmem:[#allocation5] sm:$0xff] 0.0
          %1670 = vst [vmem:[#allocation5 + $0x8] sm:$0xff] 0.0
          %1671 = vst [vmem:[#allocation5 + $0x10] sm:$0x1] 0.0
        $region68: #{tpu_custom_call.1} parent=47 // pred_fallthru
          _
        %p1672 = scmp.gt.s32.totalorder %s31, 0
        // Predicated region
        $region69: #{tpu_custom_call.1} parent=47 // pred_check
          %p1673 = pneg %p1672
        $region70: #{tpu_custom_call.1} parent=47 // pred_check_branch
          %1675 = sbr.rel (%p1673) target = $region72
        $region71: #{tpu_custom_call.1} parent=47 // pred_region
          %s1676 = ssub.s32 %s357, 1
          %s1677 = smul.u32 %s1676, 32
          %s1678 = sadd.s32 16, %s1677
          %s1679 = scalar_lea.vmem %s312, %s1678 [#allocation6]
          %v1680 = vld [vmem:[%s1679] sm:$0xff]
          %v1681 = vld [vmem:[%s1679 + $0x8] sm:$0xff]
          %v1682 = vpack.c.bf16 %v1681, %v1680
          %v1683 = vld [vmem:[#allocation9] sm:$0xf]
          %v1684 = vld [vmem:[#allocation9 + $0x4] sm:$0xf]
          %v1685 = vld [vmem:[#allocation9 + $0x8] sm:$0xf]
          %v1686 = vld [vmem:[#allocation9 + $0xc] sm:$0xf]
          %v1687 = vld [vmem:[#allocation9 + $0x10] sm:$0xf]
          %v1688 = vld [vmem:[#allocation9 + $0x14] sm:$0xf]
          %v1689 = vld [vmem:[#allocation9 + $0x18] sm:$0xf]
          %v1690 = vld [vmem:[#allocation9 + $0x1c] sm:$0xf]
          %v1691 = vld [vmem:[%s2] sm:$0x1]
          %v1693 = vlaneseq
          %v1694 = vshrl.u32 %v1693, 7
          %v1695 = vsub.s32 0, %v1694
          %v1696 = vrot.slane %v1691, %v1695
          %v1706 = vunpack.c.l.b16 %v1683
          %v1707 = vunpack.c.l.b16 %v1684
          %v1708 = vunpack.c.l.b16 %v1685
          %v1709 = vunpack.c.l.b16 %v1686
          %v1710 = vunpack.c.l.b16 %v1687
          %v1711 = vunpack.c.l.b16 %v1688
          %v1712 = vunpack.c.l.b16 %v1689
          %v1713 = vunpack.c.l.b16 %v1690
          %v1714 = vpack.c.b16 %v1707, %v1706
          %v1715 = vpack.c.b16 %v1709, %v1708
          %v1716 = vpack.c.b16 %v1711, %v1710
          %v1717 = vpack.c.b16 %v1713, %v1712
          %v1723 = vsel %vm423, %v1682, 0
          %1725 = vmatprep.subr.bf16.mxu0 0
          %1726 = vmatpush1.bf16.msra.mxu0 %v1714
          %1727 = vmatprep.subr.bf16.mxu0 0
          %1728 = vmatpush1.bf16.msra.mxu0 %v1715
          %1729 = vmatprep.subr.bf16.mxu0 0
          %1730 = vmatpush1.bf16.msra.mxu0 %v1716
          %1731 = vmatprep.subr.bf16.mxu0 0
          %1732 = vmatpush1.bf16.msra.mxu0 %v1717
          %1733 = vmatprep.subr.bf16.mxu0 0
          %1734 = vmatpush1.bf16.msra.mxu0 0
          %1735 = vmatprep.subr.bf16.mxu0 0
          %1736 = vmatpush1.bf16.msra.mxu0 0
          %1737 = vmatprep.subr.bf16.mxu0 0
          %1738 = vmatpush1.bf16.msra.mxu0 0
          %1739 = vmatprep.subr.bf16.mxu0 0
          %1740 = vmatpush1.bf16.msra.mxu0 0
          %1741 = vmatprep.subr.bf16.mxu0 0
          %1742 = vmatpush1.bf16.msra.mxu0 0
          %1743 = vmatprep.subr.bf16.mxu0 0
          %1744 = vmatpush1.bf16.msra.mxu0 0
          %1745 = vmatprep.subr.bf16.mxu0 0
          %1746 = vmatpush1.bf16.msra.mxu0 0
          %1747 = vmatprep.subr.bf16.mxu0 0
          %1748 = vmatpush1.bf16.msra.mxu0 0
          %1749 = vmatprep.subr.bf16.mxu0 0
          %1750 = vmatpush1.bf16.msra.mxu0 0
          %1751 = vmatprep.subr.bf16.mxu0 0
          %1752 = vmatpush1.bf16.msra.mxu0 0
          %1753 = vmatprep.subr.bf16.mxu0 0
          %1754 = vmatpush1.bf16.msra.mxu0 0
          %1755 = vmatprep.subr.bf16.mxu0 0
          %1756 = vmatpush1.bf16.msra.mxu0 0
          %1757 = vmatprep.mubr.bf16.mxu0 0
          %1758 = vmatmul.mubr.bf16.gmra.mrb[0].mxu0 %v1723
          %v1759 = vpop.f32.mrb[0].mxu0
          %v1760 = vadd.f32 %v1696, %v1759
          %v1761 = vpop.f32.mrb[0].mxu0
          %v1762 = vpop.f32.mrb[0].mxu0
          %v1763 = vadd.f32 %v1696, %v1762
          %v1764 = vpop.f32.mrb[0].mxu0
          %1765 = vdwg.mxu0
          %v1766 = vmul.f32 %v1760, 0.5
          %v1767 = vmul.f32 %v1763, 0.5
          %v1768 = vmul.f32 %v1760, 0.044715
          %v1769 = vmul.f32 %v1763, 0.044715
          %v1770 = vmul.f32 %v1768, %v1760
          %v1771 = vmul.f32 %v1769, %v1763
          %v1772 = vmul.f32 %v1770, %v1760
          %v1773 = vmul.f32 %v1771, %v1763
          %v1774 = vadd.f32 %v1760, %v1772
          %v1775 = vadd.f32 %v1763, %v1773
          %v1776 = vmul.f32 %v1774, 0.7978846
          %v1777 = vmul.f32 %v1775, 0.7978846
          %v1778 = vtanh.pop %v1776
          %v1779 = vtanh.pop %v1777
          %v1780 = vadd.f32 %v1778, 1.0
          %v1781 = vadd.f32 %v1779, 1.0
          %v1782 = vmul.f32 %v1766, %v1780
          %v1783 = vmul.f32 %v1767, %v1781
          %1785 = vrot.lane.b32.xlu0 %v1682, 64
          %v1786 = vpop.permute.xlu0 %1785
          %v1788 = vsel %vm423, %v1786, 0
          %1790 = vmatprep.subr.bf16.mxu0 0
          %1791 = vmatpush1.bf16.msra.mxu0 %v1714
          %1792 = vmatprep.subr.bf16.mxu0 0
          %1793 = vmatpush1.bf16.msra.mxu0 %v1715
          %1794 = vmatprep.subr.bf16.mxu0 0
          %1795 = vmatpush1.bf16.msra.mxu0 %v1716
          %1796 = vmatprep.subr.bf16.mxu0 0
          %1797 = vmatpush1.bf16.msra.mxu0 %v1717
          %1798 = vmatprep.subr.bf16.mxu0 0
          %1799 = vmatpush1.bf16.msra.mxu0 0
          %1800 = vmatprep.subr.bf16.mxu0 0
          %1801 = vmatpush1.bf16.msra.mxu0 0
          %1802 = vmatprep.subr.bf16.mxu0 0
          %1803 = vmatpush1.bf16.msra.mxu0 0
          %1804 = vmatprep.subr.bf16.mxu0 0
          %1805 = vmatpush1.bf16.msra.mxu0 0
          %1806 = vmatprep.subr.bf16.mxu0 0
          %1807 = vmatpush1.bf16.msra.mxu0 0
          %1808 = vmatprep.subr.bf16.mxu0 0
          %1809 = vmatpush1.bf16.msra.mxu0 0
          %1810 = vmatprep.subr.bf16.mxu0 0
          %1811 = vmatpush1.bf16.msra.mxu0 0
          %1812 = vmatprep.subr.bf16.mxu0 0
          %1813 = vmatpush1.bf16.msra.mxu0 0
          %1814 = vmatprep.subr.bf16.mxu0 0
          %1815 = vmatpush1.bf16.msra.mxu0 0
          %1816 = vmatprep.subr.bf16.mxu0 0
          %1817 = vmatpush1.bf16.msra.mxu0 0
          %1818 = vmatprep.subr.bf16.mxu0 0
          %1819 = vmatpush1.bf16.msra.mxu0 0
          %1820 = vmatprep.subr.bf16.mxu0 0
          %1821 = vmatpush1.bf16.msra.mxu0 0
          %1822 = vmatprep.mubr.bf16.mxu0 0
          %1823 = vmatmul.mubr.bf16.gmra.mrb[0].mxu0 %v1788
          %v1824 = vpop.f32.mrb[0].mxu0
          %v1825 = vadd.f32 %v1696, %v1824
          %v1826 = vpop.f32.mrb[0].mxu0
          %v1827 = vpop.f32.mrb[0].mxu0
          %v1828 = vadd.f32 %v1696, %v1827
          %v1829 = vpop.f32.mrb[0].mxu0
          %1830 = vdwg.mxu0
          %v1831 = vmul.f32 %v1825, 0.5
          %v1832 = vmul.f32 %v1828, 0.5
          %v1833 = vmul.f32 %v1825, 0.044715
          %v1834 = vmul.f32 %v1828, 0.044715
          %v1835 = vmul.f32 %v1833, %v1825
          %v1836 = vmul.f32 %v1834, %v1828
          %v1837 = vmul.f32 %v1835, %v1825
          %v1838 = vmul.f32 %v1836, %v1828
          %v1839 = vadd.f32 %v1825, %v1837
          %v1840 = vadd.f32 %v1828, %v1838
          %v1841 = vmul.f32 %v1839, 0.7978846
          %v1842 = vmul.f32 %v1840, 0.7978846
          %v1843 = vtanh.pop %v1841
          %v1844 = vtanh.pop %v1842
          %v1845 = vadd.f32 %v1843, 1.0
          %v1846 = vadd.f32 %v1844, 1.0
          %v1847 = vmul.f32 %v1831, %v1845
          %v1848 = vmul.f32 %v1832, %v1846
          %1849 = vst [vmem:[#allocation4] sm:$0xff] %v1782
          %1850 = vst [vmem:[#allocation4 + $0x8] sm:$0xff] %v1783
          %1851 = vst [vmem:[#allocation5 + $0x1] sm:$0xff] %v1847
          %1852 = vst [vmem:[#allocation5 + $0x9] sm:$0xff] %v1848
        $region72: #{tpu_custom_call.1} parent=47 // pred_fallthru
          _
        %1853 = vst [vmem:[#allocation3] sm:$0x1] 0.0
        %1854 = vst [vmem:[#allocation3 + $0x18] sm:$0x1] 0.0
        %1855 = vst [vmem:[#allocation3 + $0x30] sm:$0x1] 0.0
        %1856 = vst [vmem:[#allocation3 + $0x48] sm:$0x1] 0.0
        %1857 = vst [vmem:[#allocation3 + $0x60] sm:$0x1] 0.0
        %1858 = vst [vmem:[#allocation3 + $0x78] sm:$0x1] 0.0
        %1859 = vst [vmem:[#allocation3 + $0x90] sm:$0x1] 0.0
        %1860 = vst [vmem:[#allocation3 + $0xa8] sm:$0x1] 0.0
        %1861 = vst [vmem:[#allocation5] sm:$0x1] 0.0
        %1862 = vst [vmem:[#allocation5 + $0x18] sm:$0x1] 0.0
        %1863 = vst [vmem:[#allocation5 + $0x30] sm:$0x1] 0.0
        %1864 = vst [vmem:[#allocation5 + $0x48] sm:$0x1] 0.0
        %1865 = vst [vmem:[#allocation5 + $0x60] sm:$0x1] 0.0
        %1866 = vst [vmem:[#allocation5 + $0x78] sm:$0x1] 0.0
        %1867 = vst [vmem:[#allocation5 + $0x90] sm:$0x1] 0.0
        %1868 = vst [vmem:[#allocation5 + $0xa8] sm:$0x1] 0.0
        %1869 = vst [vmem:[#allocation5 + $0xc0] sm:$0x1] 0.0
        %v1870 = vld [vmem:[#allocation11] sm:$0xff]
        %v1871 = vld [vmem:[#allocation11 + $0x8] sm:$0x1]
        %v1872 = vld [vmem:[#allocation5] sm:$0xff]
        %v1873 = vld [vmem:[#allocation5 + $0x8] sm:$0xff]
        %v1874 = vld [vmem:[#allocation5 + $0x18] sm:$0xff]
        %v1875 = vld [vmem:[#allocation5 + $0x20] sm:$0xff]
        %v1876 = vld [vmem:[#allocation5 + $0x30] sm:$0xff]
        %v1877 = vld [vmem:[#allocation5 + $0x38] sm:$0xff]
        %v1878 = vld [vmem:[#allocation5 + $0x48] sm:$0xff]
        %v1879 = vld [vmem:[#allocation5 + $0x50] sm:$0xff]
        %v1880 = vld [vmem:[#allocation5 + $0x60] sm:$0xff]
        %v1881 = vld [vmem:[#allocation5 + $0x68] sm:$0xff]
        %v1882 = vld [vmem:[#allocation5 + $0x78] sm:$0xff]
        %v1883 = vld [vmem:[#allocation5 + $0x80] sm:$0xff]
        %v1884 = vld [vmem:[#allocation5 + $0x90] sm:$0xff]
        %v1885 = vld [vmem:[#allocation5 + $0x98] sm:$0xff]
        %v1886 = vld [vmem:[#allocation5 + $0xa8] sm:$0xff]
        %v1887 = vld [vmem:[#allocation5 + $0xb0] sm:$0xff]
        %v1888 = vlaneseq
        %v1889 = vshrl.u32 %v1888, 7
        %v1890 = vsub.s32 0, %v1889
        %v1891 = vrot.slane %v1870, %v1890
        %v1892 = vmul.f32 %v1872, %v1891
        %v1893 = vmul.f32 %v1873, %v1891
        %v1894 = vmul.f32 %v1874, %v1891
        %v1895 = vmul.f32 %v1875, %v1891
        %v1896 = vmul.f32 %v1876, %v1891
        %v1897 = vmul.f32 %v1877, %v1891
        %v1898 = vmul.f32 %v1878, %v1891
        %v1899 = vmul.f32 %v1879, %v1891
        %v1900 = vmul.f32 %v1880, %v1891
        %v1901 = vmul.f32 %v1881, %v1891
        %v1902 = vmul.f32 %v1882, %v1891
        %v1903 = vmul.f32 %v1883, %v1891
        %v1904 = vmul.f32 %v1884, %v1891
        %v1905 = vmul.f32 %v1885, %v1891
        %v1906 = vmul.f32 %v1886, %v1891
        %v1907 = vmul.f32 %v1887, %v1891
        %v1908 = vadd.f32 %v1892, 0.0
        %v1909 = vadd.f32 %v1893, 0.0
        %v1910 = vadd.f32 %v1894, 0.0
        %v1911 = vadd.f32 %v1895, 0.0
        %v1912 = vadd.f32 %v1896, 0.0
        %v1913 = vadd.f32 %v1897, 0.0
        %v1914 = vadd.f32 %v1898, 0.0
        %v1915 = vadd.f32 %v1899, 0.0
        %v1916 = vadd.f32 %v1900, 0.0
        %v1917 = vadd.f32 %v1901, 0.0
        %v1918 = vadd.f32 %v1902, 0.0
        %v1919 = vadd.f32 %v1903, 0.0
        %v1920 = vadd.f32 %v1904, 0.0
        %v1921 = vadd.f32 %v1905, 0.0
        %v1922 = vadd.f32 %v1906, 0.0
        %v1923 = vadd.f32 %v1907, 0.0
        %v1924 = vld [vmem:[#allocation4] sm:$0xff]
        %v1925 = vld [vmem:[#allocation4 + $0x8] sm:$0xff]
        %v1926 = vld [vmem:[#allocation4 + $0x10] sm:$0xff]
        %v1927 = vld [vmem:[#allocation4 + $0x18] sm:$0xff]
        %v1928 = vld [vmem:[#allocation4 + $0x20] sm:$0xff]
        %v1929 = vld [vmem:[#allocation4 + $0x28] sm:$0xff]
        %v1930 = vld [vmem:[#allocation4 + $0x30] sm:$0xff]
        %v1931 = vld [vmem:[#allocation4 + $0x38] sm:$0xff]
        %v1932 = vld [vmem:[#allocation4 + $0x40] sm:$0xff]
        %v1933 = vld [vmem:[#allocation4 + $0x48] sm:$0xff]
        %v1934 = vld [vmem:[#allocation4 + $0x50] sm:$0xff]
        %v1935 = vld [vmem:[#allocation4 + $0x58] sm:$0xff]
        %v1936 = vld [vmem:[#allocation4 + $0x60] sm:$0xff]
        %v1937 = vld [vmem:[#allocation4 + $0x68] sm:$0xff]
        %v1938 = vld [vmem:[#allocation4 + $0x70] sm:$0xff]
        %v1939 = vld [vmem:[#allocation4 + $0x78] sm:$0xff]
        %v1940 = vlaneseq
        %v1941 = vshrl.u32 %v1940, 7
        %v1942 = vsub.s32 1, %v1941
        %v1943 = vrot.slane %v1870, %v1942
        %v1944 = vmul.f32 %v1924, %v1943
        %v1945 = vmul.f32 %v1925, %v1943
        %v1946 = vmul.f32 %v1926, %v1943
        %v1947 = vmul.f32 %v1927, %v1943
        %v1948 = vmul.f32 %v1928, %v1943
        %v1949 = vmul.f32 %v1929, %v1943
        %v1950 = vmul.f32 %v1930, %v1943
        %v1951 = vmul.f32 %v1931, %v1943
        %v1952 = vmul.f32 %v1932, %v1943
        %v1953 = vmul.f32 %v1933, %v1943
        %v1954 = vmul.f32 %v1934, %v1943
        %v1955 = vmul.f32 %v1935, %v1943
        %v1956 = vmul.f32 %v1936, %v1943
        %v1957 = vmul.f32 %v1937, %v1943
        %v1958 = vmul.f32 %v1938, %v1943
        %v1959 = vmul.f32 %v1939, %v1943
        %v1960 = vadd.f32 %v1908, %v1944
        %v1961 = vadd.f32 %v1909, %v1945
        %v1962 = vadd.f32 %v1910, %v1946
        %v1963 = vadd.f32 %v1911, %v1947
        %v1964 = vadd.f32 %v1912, %v1948
        %v1965 = vadd.f32 %v1913, %v1949
        %v1966 = vadd.f32 %v1914, %v1950
        %v1967 = vadd.f32 %v1915, %v1951
        %v1968 = vadd.f32 %v1916, %v1952
        %v1969 = vadd.f32 %v1917, %v1953
        %v1970 = vadd.f32 %v1918, %v1954
        %v1971 = vadd.f32 %v1919, %v1955
        %v1972 = vadd.f32 %v1920, %v1956
        %v1973 = vadd.f32 %v1921, %v1957
        %v1974 = vadd.f32 %v1922, %v1958
        %v1975 = vadd.f32 %v1923, %v1959
        %v1976 = vld [vmem:[#allocation5 + $0x1] sm:$0xff]
        %v1977 = vld [vmem:[#allocation5 + $0x9] sm:$0xff]
        %v1978 = vld [vmem:[#allocation5 + $0x19] sm:$0xff]
        %v1979 = vld [vmem:[#allocation5 + $0x21] sm:$0xff]
        %v1980 = vld [vmem:[#allocation5 + $0x31] sm:$0xff]
        %v1981 = vld [vmem:[#allocation5 + $0x39] sm:$0xff]
        %v1982 = vld [vmem:[#allocation5 + $0x49] sm:$0xff]
        %v1983 = vld [vmem:[#allocation5 + $0x51] sm:$0xff]
        %v1984 = vld [vmem:[#allocation5 + $0x61] sm:$0xff]
        %v1985 = vld [vmem:[#allocation5 + $0x69] sm:$0xff]
        %v1986 = vld [vmem:[#allocation5 + $0x79] sm:$0xff]
        %v1987 = vld [vmem:[#allocation5 + $0x81] sm:$0xff]
        %v1988 = vld [vmem:[#allocation5 + $0x91] sm:$0xff]
        %v1989 = vld [vmem:[#allocation5 + $0x99] sm:$0xff]
        %v1990 = vld [vmem:[#allocation5 + $0xa9] sm:$0xff]
        %v1991 = vld [vmem:[#allocation5 + $0xb1] sm:$0xff]
        %v1992 = vlaneseq
        %v1993 = vshrl.u32 %v1992, 7
        %v1994 = vsub.s32 2, %v1993
        %v1995 = vrot.slane %v1870, %v1994
        %v1996 = vmul.f32 %v1976, %v1995
        %v1997 = vmul.f32 %v1977, %v1995
        %v1998 = vmul.f32 %v1978, %v1995
        %v1999 = vmul.f32 %v1979, %v1995
        %v2000 = vmul.f32 %v1980, %v1995
        %v2001 = vmul.f32 %v1981, %v1995
        %v2002 = vmul.f32 %v1982, %v1995
        %v2003 = vmul.f32 %v1983, %v1995
        %v2004 = vmul.f32 %v1984, %v1995
        %v2005 = vmul.f32 %v1985, %v1995
        %v2006 = vmul.f32 %v1986, %v1995
        %v2007 = vmul.f32 %v1987, %v1995
        %v2008 = vmul.f32 %v1988, %v1995
        %v2009 = vmul.f32 %v1989, %v1995
        %v2010 = vmul.f32 %v1990, %v1995
        %v2011 = vmul.f32 %v1991, %v1995
        %v2012 = vadd.f32 %v1960, %v1996
        %v2013 = vadd.f32 %v1961, %v1997
        %v2014 = vadd.f32 %v1962, %v1998
        %v2015 = vadd.f32 %v1963, %v1999
        %v2016 = vadd.f32 %v1964, %v2000
        %v2017 = vadd.f32 %v1965, %v2001
        %v2018 = vadd.f32 %v1966, %v2002
        %v2019 = vadd.f32 %v1967, %v2003
        %v2020 = vadd.f32 %v1968, %v2004
        %v2021 = vadd.f32 %v1969, %v2005
        %v2022 = vadd.f32 %v1970, %v2006
        %v2023 = vadd.f32 %v1971, %v2007
        %v2024 = vadd.f32 %v1972, %v2008
        %v2025 = vadd.f32 %v1973, %v2009
        %v2026 = vadd.f32 %v1974, %v2010
        %v2027 = vadd.f32 %v1975, %v2011
        %v2028 = vld [vmem:[#allocation3] sm:$0xff]
        %v2029 = vld [vmem:[#allocation3 + $0x8] sm:$0xff]
        %v2030 = vld [vmem:[#allocation3 + $0x18] sm:$0xff]
        %v2031 = vld [vmem:[#allocation3 + $0x20] sm:$0xff]
        %v2032 = vld [vmem:[#allocation3 + $0x30] sm:$0xff]
        %v2033 = vld [vmem:[#allocation3 + $0x38] sm:$0xff]
        %v2034 = vld [vmem:[#allocation3 + $0x48] sm:$0xff]
        %v2035 = vld [vmem:[#allocation3 + $0x50] sm:$0xff]
        %v2036 = vld [vmem:[#allocation3 + $0x60] sm:$0xff]
        %v2037 = vld [vmem:[#allocation3 + $0x68] sm:$0xff]
        %v2038 = vld [vmem:[#allocation3 + $0x78] sm:$0xff]
        %v2039 = vld [vmem:[#allocation3 + $0x80] sm:$0xff]
        %v2040 = vld [vmem:[#allocation3 + $0x90] sm:$0xff]
        %v2041 = vld [vmem:[#allocation3 + $0x98] sm:$0xff]
        %v2042 = vld [vmem:[#allocation3 + $0xa8] sm:$0xff]
        %v2043 = vld [vmem:[#allocation3 + $0xb0] sm:$0xff]
        %v2044 = vlaneseq
        %v2045 = vshrl.u32 %v2044, 7
        %v2046 = vsub.s32 3, %v2045
        %v2047 = vrot.slane %v1870, %v2046
        %v2048 = vmul.f32 %v2028, %v2047
        %v2049 = vmul.f32 %v2029, %v2047
        %v2050 = vmul.f32 %v2030, %v2047
        %v2051 = vmul.f32 %v2031, %v2047
        %v2052 = vmul.f32 %v2032, %v2047
        %v2053 = vmul.f32 %v2033, %v2047
        %v2054 = vmul.f32 %v2034, %v2047
        %v2055 = vmul.f32 %v2035, %v2047
        %v2056 = vmul.f32 %v2036, %v2047
        %v2057 = vmul.f32 %v2037, %v2047
        %v2058 = vmul.f32 %v2038, %v2047
        %v2059 = vmul.f32 %v2039, %v2047
        %v2060 = vmul.f32 %v2040, %v2047
        %v2061 = vmul.f32 %v2041, %v2047
        %v2062 = vmul.f32 %v2042, %v2047
        %v2063 = vmul.f32 %v2043, %v2047
        %v2064 = vadd.f32 %v2012, %v2048
        %v2065 = vadd.f32 %v2013, %v2049
        %v2066 = vadd.f32 %v2014, %v2050
        %v2067 = vadd.f32 %v2015, %v2051
        %v2068 = vadd.f32 %v2016, %v2052
        %v2069 = vadd.f32 %v2017, %v2053
        %v2070 = vadd.f32 %v2018, %v2054
        %v2071 = vadd.f32 %v2019, %v2055
        %v2072 = vadd.f32 %v2020, %v2056
        %v2073 = vadd.f32 %v2021, %v2057
        %v2074 = vadd.f32 %v2022, %v2058
        %v2075 = vadd.f32 %v2023, %v2059
        %v2076 = vadd.f32 %v2024, %v2060
        %v2077 = vadd.f32 %v2025, %v2061
        %v2078 = vadd.f32 %v2026, %v2062
        %v2079 = vadd.f32 %v2027, %v2063
        %v2080 = vld [vmem:[#allocation2] sm:$0xff]
        %v2081 = vld [vmem:[#allocation2 + $0x8] sm:$0xff]
        %v2082 = vld [vmem:[#allocation2 + $0x10] sm:$0xff]
        %v2083 = vld [vmem:[#allocation2 + $0x18] sm:$0xff]
        %v2084 = vld [vmem:[#allocation2 + $0x20] sm:$0xff]
        %v2085 = vld [vmem:[#allocation2 + $0x28] sm:$0xff]
        %v2086 = vld [vmem:[#allocation2 + $0x30] sm:$0xff]
        %v2087 = vld [vmem:[#allocation2 + $0x38] sm:$0xff]
        %v2088 = vld [vmem:[#allocation2 + $0x40] sm:$0xff]
        %v2089 = vld [vmem:[#allocation2 + $0x48] sm:$0xff]
        %v2090 = vld [vmem:[#allocation2 + $0x50] sm:$0xff]
        %v2091 = vld [vmem:[#allocation2 + $0x58] sm:$0xff]
        %v2092 = vld [vmem:[#allocation2 + $0x60] sm:$0xff]
        %v2093 = vld [vmem:[#allocation2 + $0x68] sm:$0xff]
        %v2094 = vld [vmem:[#allocation2 + $0x70] sm:$0xff]
        %v2095 = vld [vmem:[#allocation2 + $0x78] sm:$0xff]
        %v2096 = vlaneseq
        %v2097 = vshrl.u32 %v2096, 7
        %v2098 = vsub.s32 4, %v2097
        %v2099 = vrot.slane %v1870, %v2098
        %v2100 = vmul.f32 %v2080, %v2099
        %v2101 = vmul.f32 %v2081, %v2099
        %v2102 = vmul.f32 %v2082, %v2099
        %v2103 = vmul.f32 %v2083, %v2099
        %v2104 = vmul.f32 %v2084, %v2099
        %v2105 = vmul.f32 %v2085, %v2099
        %v2106 = vmul.f32 %v2086, %v2099
        %v2107 = vmul.f32 %v2087, %v2099
        %v2108 = vmul.f32 %v2088, %v2099
        %v2109 = vmul.f32 %v2089, %v2099
        %v2110 = vmul.f32 %v2090, %v2099
        %v2111 = vmul.f32 %v2091, %v2099
        %v2112 = vmul.f32 %v2092, %v2099
        %v2113 = vmul.f32 %v2093, %v2099
        %v2114 = vmul.f32 %v2094, %v2099
        %v2115 = vmul.f32 %v2095, %v2099
        %v2116 = vadd.f32 %v2064, %v2100
        %v2117 = vadd.f32 %v2065, %v2101
        %v2118 = vadd.f32 %v2066, %v2102
        %v2119 = vadd.f32 %v2067, %v2103
        %v2120 = vadd.f32 %v2068, %v2104
        %v2121 = vadd.f32 %v2069, %v2105
        %v2122 = vadd.f32 %v2070, %v2106
        %v2123 = vadd.f32 %v2071, %v2107
        %v2124 = vadd.f32 %v2072, %v2108
        %v2125 = vadd.f32 %v2073, %v2109
        %v2126 = vadd.f32 %v2074, %v2110
        %v2127 = vadd.f32 %v2075, %v2111
        %v2128 = vadd.f32 %v2076, %v2112
        %v2129 = vadd.f32 %v2077, %v2113
        %v2130 = vadd.f32 %v2078, %v2114
        %v2131 = vadd.f32 %v2079, %v2115
        %v2132 = vld [vmem:[#allocation3 + $0x1] sm:$0xff]
        %v2133 = vld [vmem:[#allocation3 + $0x9] sm:$0xff]
        %v2134 = vld [vmem:[#allocation3 + $0x19] sm:$0xff]
        %v2135 = vld [vmem:[#allocation3 + $0x21] sm:$0xff]
        %v2136 = vld [vmem:[#allocation3 + $0x31] sm:$0xff]
        %v2137 = vld [vmem:[#allocation3 + $0x39] sm:$0xff]
        %v2138 = vld [vmem:[#allocation3 + $0x49] sm:$0xff]
        %v2139 = vld [vmem:[#allocation3 + $0x51] sm:$0xff]
        %v2140 = vld [vmem:[#allocation3 + $0x61] sm:$0xff]
        %v2141 = vld [vmem:[#allocation3 + $0x69] sm:$0xff]
        %v2142 = vld [vmem:[#allocation3 + $0x79] sm:$0xff]
        %v2143 = vld [vmem:[#allocation3 + $0x81] sm:$0xff]
        %v2144 = vld [vmem:[#allocation3 + $0x91] sm:$0xff]
        %v2145 = vld [vmem:[#allocation3 + $0x99] sm:$0xff]
        %v2146 = vld [vmem:[#allocation3 + $0xa9] sm:$0xff]
        %v2147 = vld [vmem:[#allocation3 + $0xb1] sm:$0xff]
        %v2148 = vlaneseq
        %v2149 = vshrl.u32 %v2148, 7
        %v2150 = vsub.s32 5, %v2149
        %v2151 = vrot.slane %v1870, %v2150
        %v2152 = vmul.f32 %v2132, %v2151
        %v2153 = vmul.f32 %v2133, %v2151
        %v2154 = vmul.f32 %v2134, %v2151
        %v2155 = vmul.f32 %v2135, %v2151
        %v2156 = vmul.f32 %v2136, %v2151
        %v2157 = vmul.f32 %v2137, %v2151
        %v2158 = vmul.f32 %v2138, %v2151
        %v2159 = vmul.f32 %v2139, %v2151
        %v2160 = vmul.f32 %v2140, %v2151
        %v2161 = vmul.f32 %v2141, %v2151
        %v2162 = vmul.f32 %v2142, %v2151
        %v2163 = vmul.f32 %v2143, %v2151
        %v2164 = vmul.f32 %v2144, %v2151
        %v2165 = vmul.f32 %v2145, %v2151
        %v2166 = vmul.f32 %v2146, %v2151
        %v2167 = vmul.f32 %v2147, %v2151
        %v2168 = vadd.f32 %v2116, %v2152
        %v2169 = vadd.f32 %v2117, %v2153
        %v2170 = vadd.f32 %v2118, %v2154
        %v2171 = vadd.f32 %v2119, %v2155
        %v2172 = vadd.f32 %v2120, %v2156
        %v2173 = vadd.f32 %v2121, %v2157
        %v2174 = vadd.f32 %v2122, %v2158
        %v2175 = vadd.f32 %v2123, %v2159
        %v2176 = vadd.f32 %v2124, %v2160
        %v2177 = vadd.f32 %v2125, %v2161
        %v2178 = vadd.f32 %v2126, %v2162
        %v2179 = vadd.f32 %v2127, %v2163
        %v2180 = vadd.f32 %v2128, %v2164
        %v2181 = vadd.f32 %v2129, %v2165
        %v2182 = vadd.f32 %v2130, %v2166
        %v2183 = vadd.f32 %v2131, %v2167
        %v2184 = vld [vmem:[%s1646] sm:$0xff]
        %v2185 = vld [vmem:[%s1646 + $0x8] sm:$0xff]
        %v2186 = vld [vmem:[%s1646 + $0x18] sm:$0xff]
        %v2187 = vld [vmem:[%s1646 + $0x20] sm:$0xff]
        %v2188 = vld [vmem:[%s1646 + $0x30] sm:$0xff]
        %v2189 = vld [vmem:[%s1646 + $0x38] sm:$0xff]
        %v2190 = vld [vmem:[%s1646 + $0x48] sm:$0xff]
        %v2191 = vld [vmem:[%s1646 + $0x50] sm:$0xff]
        %v2192 = vld [vmem:[%s1646 + $0x60] sm:$0xff]
        %v2193 = vld [vmem:[%s1646 + $0x68] sm:$0xff]
        %v2194 = vld [vmem:[%s1646 + $0x78] sm:$0xff]
        %v2195 = vld [vmem:[%s1646 + $0x80] sm:$0xff]
        %v2196 = vld [vmem:[%s1646 + $0x90] sm:$0xff]
        %v2197 = vld [vmem:[%s1646 + $0x98] sm:$0xff]
        %v2198 = vld [vmem:[%s1646 + $0xa8] sm:$0xff]
        %v2199 = vld [vmem:[%s1646 + $0xb0] sm:$0xff]
        %v2200 = vlaneseq
        %v2201 = vshrl.u32 %v2200, 7
        %v2202 = vsub.s32 6, %v2201
        %v2203 = vrot.slane %v1870, %v2202
        %v2204 = vmul.f32 %v2184, %v2203
        %v2205 = vmul.f32 %v2185, %v2203
        %v2206 = vmul.f32 %v2186, %v2203
        %v2207 = vmul.f32 %v2187, %v2203
        %v2208 = vmul.f32 %v2188, %v2203
        %v2209 = vmul.f32 %v2189, %v2203
        %v2210 = vmul.f32 %v2190, %v2203
        %v2211 = vmul.f32 %v2191, %v2203
        %v2212 = vmul.f32 %v2192, %v2203
        %v2213 = vmul.f32 %v2193, %v2203
        %v2214 = vmul.f32 %v2194, %v2203
        %v2215 = vmul.f32 %v2195, %v2203
        %v2216 = vmul.f32 %v2196, %v2203
        %v2217 = vmul.f32 %v2197, %v2203
        %v2218 = vmul.f32 %v2198, %v2203
        %v2219 = vmul.f32 %v2199, %v2203
        %v2220 = vadd.f32 %v2168, %v2204
        %v2221 = vadd.f32 %v2169, %v2205
        %v2222 = vadd.f32 %v2170, %v2206
        %v2223 = vadd.f32 %v2171, %v2207
        %v2224 = vadd.f32 %v2172, %v2208
        %v2225 = vadd.f32 %v2173, %v2209
        %v2226 = vadd.f32 %v2174, %v2210
        %v2227 = vadd.f32 %v2175, %v2211
        %v2228 = vadd.f32 %v2176, %v2212
        %v2229 = vadd.f32 %v2177, %v2213
        %v2230 = vadd.f32 %v2178, %v2214
        %v2231 = vadd.f32 %v2179, %v2215
        %v2232 = vadd.f32 %v2180, %v2216
        %v2233 = vadd.f32 %v2181, %v2217
        %v2234 = vadd.f32 %v2182, %v2218
        %v2235 = vadd.f32 %v2183, %v2219
        %v2236 = vld [vmem:[%s1629] sm:$0xff]
        %v2237 = vld [vmem:[%s1629 + $0x8] sm:$0xff]
        %v2238 = vld [vmem:[%s1629 + $0x10] sm:$0xff]
        %v2239 = vld [vmem:[%s1629 + $0x18] sm:$0xff]
        %v2240 = vld [vmem:[%s1629 + $0x20] sm:$0xff]
        %v2241 = vld [vmem:[%s1629 + $0x28] sm:$0xff]
        %v2242 = vld [vmem:[%s1629 + $0x30] sm:$0xff]
        %v2243 = vld [vmem:[%s1629 + $0x38] sm:$0xff]
        %v2244 = vld [vmem:[%s1629 + $0x40] sm:$0xff]
        %v2245 = vld [vmem:[%s1629 + $0x48] sm:$0xff]
        %v2246 = vld [vmem:[%s1629 + $0x50] sm:$0xff]
        %v2247 = vld [vmem:[%s1629 + $0x58] sm:$0xff]
        %v2248 = vld [vmem:[%s1629 + $0x60] sm:$0xff]
        %v2249 = vld [vmem:[%s1629 + $0x68] sm:$0xff]
        %v2250 = vld [vmem:[%s1629 + $0x70] sm:$0xff]
        %v2251 = vld [vmem:[%s1629 + $0x78] sm:$0xff]
        %v2252 = vlaneseq
        %v2253 = vshrl.u32 %v2252, 7
        %v2254 = vsub.s32 7, %v2253
        %v2255 = vrot.slane %v1870, %v2254
        %v2256 = vmul.f32 %v2236, %v2255
        %v2257 = vmul.f32 %v2237, %v2255
        %v2258 = vmul.f32 %v2238, %v2255
        %v2259 = vmul.f32 %v2239, %v2255
        %v2260 = vmul.f32 %v2240, %v2255
        %v2261 = vmul.f32 %v2241, %v2255
        %v2262 = vmul.f32 %v2242, %v2255
        %v2263 = vmul.f32 %v2243, %v2255
        %v2264 = vmul.f32 %v2244, %v2255
        %v2265 = vmul.f32 %v2245, %v2255
        %v2266 = vmul.f32 %v2246, %v2255
        %v2267 = vmul.f32 %v2247, %v2255
        %v2268 = vmul.f32 %v2248, %v2255
        %v2269 = vmul.f32 %v2249, %v2255
        %v2270 = vmul.f32 %v2250, %v2255
        %v2271 = vmul.f32 %v2251, %v2255
        %v2272 = vadd.f32 %v2220, %v2256
        %v2273 = vadd.f32 %v2221, %v2257
        %v2274 = vadd.f32 %v2222, %v2258
        %v2275 = vadd.f32 %v2223, %v2259
        %v2276 = vadd.f32 %v2224, %v2260
        %v2277 = vadd.f32 %v2225, %v2261
        %v2278 = vadd.f32 %v2226, %v2262
        %v2279 = vadd.f32 %v2227, %v2263
        %v2280 = vadd.f32 %v2228, %v2264
        %v2281 = vadd.f32 %v2229, %v2265
        %v2282 = vadd.f32 %v2230, %v2266
        %v2283 = vadd.f32 %v2231, %v2267
        %v2284 = vadd.f32 %v2232, %v2268
        %v2285 = vadd.f32 %v2233, %v2269
        %v2286 = vadd.f32 %v2234, %v2270
        %v2287 = vadd.f32 %v2235, %v2271
        %v2288 = vld [vmem:[%s1646 + $0x1] sm:$0xff]
        %v2289 = vld [vmem:[%s1646 + $0x9] sm:$0xff]
        %v2290 = vld [vmem:[%s1646 + $0x19] sm:$0xff]
        %v2291 = vld [vmem:[%s1646 + $0x21] sm:$0xff]
        %v2292 = vld [vmem:[%s1646 + $0x31] sm:$0xff]
        %v2293 = vld [vmem:[%s1646 + $0x39] sm:$0xff]
        %v2294 = vld [vmem:[%s1646 + $0x49] sm:$0xff]
        %v2295 = vld [vmem:[%s1646 + $0x51] sm:$0xff]
        %v2296 = vld [vmem:[%s1646 + $0x61] sm:$0xff]
        %v2297 = vld [vmem:[%s1646 + $0x69] sm:$0xff]
        %v2298 = vld [vmem:[%s1646 + $0x79] sm:$0xff]
        %v2299 = vld [vmem:[%s1646 + $0x81] sm:$0xff]
        %v2300 = vld [vmem:[%s1646 + $0x91] sm:$0xff]
        %v2301 = vld [vmem:[%s1646 + $0x99] sm:$0xff]
        %v2302 = vld [vmem:[%s1646 + $0xa9] sm:$0xff]
        %v2303 = vld [vmem:[%s1646 + $0xb1] sm:$0xff]
        %v2304 = vlaneseq
        %v2305 = vshrl.u32 %v2304, 7
        %v2306 = vsub.s32 0, %v2305
        %v2307 = vrot.slane %v1871, %v2306
        %v2308 = vmul.f32 %v2288, %v2307
        %v2309 = vmul.f32 %v2289, %v2307
        %v2310 = vmul.f32 %v2290, %v2307
        %v2311 = vmul.f32 %v2291, %v2307
        %v2312 = vmul.f32 %v2292, %v2307
        %v2313 = vmul.f32 %v2293, %v2307
        %v2314 = vmul.f32 %v2294, %v2307
        %v2315 = vmul.f32 %v2295, %v2307
        %v2316 = vmul.f32 %v2296, %v2307
        %v2317 = vmul.f32 %v2297, %v2307
        %v2318 = vmul.f32 %v2298, %v2307
        %v2319 = vmul.f32 %v2299, %v2307
        %v2320 = vmul.f32 %v2300, %v2307
        %v2321 = vmul.f32 %v2301, %v2307
        %v2322 = vmul.f32 %v2302, %v2307
        %v2323 = vmul.f32 %v2303, %v2307
        %v2324 = vadd.f32 %v2272, %v2308
        %v2325 = vadd.f32 %v2273, %v2309
        %v2326 = vadd.f32 %v2274, %v2310
        %v2327 = vadd.f32 %v2275, %v2311
        %v2328 = vadd.f32 %v2276, %v2312
        %v2329 = vadd.f32 %v2277, %v2313
        %v2330 = vadd.f32 %v2278, %v2314
        %v2331 = vadd.f32 %v2279, %v2315
        %v2332 = vadd.f32 %v2280, %v2316
        %v2333 = vadd.f32 %v2281, %v2317
        %v2334 = vadd.f32 %v2282, %v2318
        %v2335 = vadd.f32 %v2283, %v2319
        %v2336 = vadd.f32 %v2284, %v2320
        %v2337 = vadd.f32 %v2285, %v2321
        %v2338 = vadd.f32 %v2286, %v2322
        %v2339 = vadd.f32 %v2287, %v2323
        %v2340 = vld [vmem:[%s4] sm:$0x1]
        %v2342 = vlaneseq
        %v2343 = vshrl.u32 %v2342, 7
        %v2344 = vsub.s32 0, %v2343
        %v2345 = vrot.slane %v2340, %v2344
        %v2347 = vadd.f32 %v2324, %v2345
        %v2348 = vadd.f32 %v2325, %v2345
        %v2349 = vadd.f32 %v2326, %v2345
        %v2350 = vadd.f32 %v2327, %v2345
        %v2351 = vadd.f32 %v2328, %v2345
        %v2352 = vadd.f32 %v2329, %v2345
        %v2353 = vadd.f32 %v2330, %v2345
        %v2354 = vadd.f32 %v2331, %v2345
        %v2355 = vadd.f32 %v2332, %v2345
        %v2356 = vadd.f32 %v2333, %v2345
        %v2357 = vadd.f32 %v2334, %v2345
        %v2358 = vadd.f32 %v2335, %v2345
        %v2359 = vadd.f32 %v2336, %v2345
        %v2360 = vadd.f32 %v2337, %v2345
        %v2361 = vadd.f32 %v2338, %v2345
        %v2362 = vadd.f32 %v2339, %v2345
        %v2363 = vmul.f32 %v2347, 0.5
        %v2364 = vmul.f32 %v2348, 0.5
        %v2365 = vmul.f32 %v2349, 0.5
        %v2366 = vmul.f32 %v2350, 0.5
        %v2367 = vmul.f32 %v2351, 0.5
        %v2368 = vmul.f32 %v2352, 0.5
        %v2369 = vmul.f32 %v2353, 0.5
        %v2370 = vmul.f32 %v2354, 0.5
        %v2371 = vmul.f32 %v2355, 0.5
        %v2372 = vmul.f32 %v2356, 0.5
        %v2373 = vmul.f32 %v2357, 0.5
        %v2374 = vmul.f32 %v2358, 0.5
        %v2375 = vmul.f32 %v2359, 0.5
        %v2376 = vmul.f32 %v2360, 0.5
        %v2377 = vmul.f32 %v2361, 0.5
        %v2378 = vmul.f32 %v2362, 0.5
        %v2379 = vmul.f32 %v2347, 0.044715
        %v2380 = vmul.f32 %v2348, 0.044715
        %v2381 = vmul.f32 %v2349, 0.044715
        %v2382 = vmul.f32 %v2350, 0.044715
        %v2383 = vmul.f32 %v2351, 0.044715
        %v2384 = vmul.f32 %v2352, 0.044715
        %v2385 = vmul.f32 %v2353, 0.044715
        %v2386 = vmul.f32 %v2354, 0.044715
        %v2387 = vmul.f32 %v2355, 0.044715
        %v2388 = vmul.f32 %v2356, 0.044715
        %v2389 = vmul.f32 %v2357, 0.044715
        %v2390 = vmul.f32 %v2358, 0.044715
        %v2391 = vmul.f32 %v2359, 0.044715
        %v2392 = vmul.f32 %v2360, 0.044715
        %v2393 = vmul.f32 %v2361, 0.044715
        %v2394 = vmul.f32 %v2362, 0.044715
        %v2395 = vmul.f32 %v2379, %v2347
        %v2396 = vmul.f32 %v2380, %v2348
        %v2397 = vmul.f32 %v2381, %v2349
        %v2398 = vmul.f32 %v2382, %v2350
        %v2399 = vmul.f32 %v2383, %v2351
        %v2400 = vmul.f32 %v2384, %v2352
        %v2401 = vmul.f32 %v2385, %v2353
        %v2402 = vmul.f32 %v2386, %v2354
        %v2403 = vmul.f32 %v2387, %v2355
        %v2404 = vmul.f32 %v2388, %v2356
        %v2405 = vmul.f32 %v2389, %v2357
        %v2406 = vmul.f32 %v2390, %v2358
        %v2407 = vmul.f32 %v2391, %v2359
        %v2408 = vmul.f32 %v2392, %v2360
        %v2409 = vmul.f32 %v2393, %v2361
        %v2410 = vmul.f32 %v2394, %v2362
        %v2411 = vmul.f32 %v2395, %v2347
        %v2412 = vmul.f32 %v2396, %v2348
        %v2413 = vmul.f32 %v2397, %v2349
        %v2414 = vmul.f32 %v2398, %v2350
        %v2415 = vmul.f32 %v2399, %v2351
        %v2416 = vmul.f32 %v2400, %v2352
        %v2417 = vmul.f32 %v2401, %v2353
        %v2418 = vmul.f32 %v2402, %v2354
        %v2419 = vmul.f32 %v2403, %v2355
        %v2420 = vmul.f32 %v2404, %v2356
        %v2421 = vmul.f32 %v2405, %v2357
        %v2422 = vmul.f32 %v2406, %v2358
        %v2423 = vmul.f32 %v2407, %v2359
        %v2424 = vmul.f32 %v2408, %v2360
        %v2425 = vmul.f32 %v2409, %v2361
        %v2426 = vmul.f32 %v2410, %v2362
        %v2427 = vadd.f32 %v2347, %v2411
        %v2428 = vadd.f32 %v2348, %v2412
        %v2429 = vadd.f32 %v2349, %v2413
        %v2430 = vadd.f32 %v2350, %v2414
        %v2431 = vadd.f32 %v2351, %v2415
        %v2432 = vadd.f32 %v2352, %v2416
        %v2433 = vadd.f32 %v2353, %v2417
        %v2434 = vadd.f32 %v2354, %v2418
        %v2435 = vadd.f32 %v2355, %v2419
        %v2436 = vadd.f32 %v2356, %v2420
        %v2437 = vadd.f32 %v2357, %v2421
        %v2438 = vadd.f32 %v2358, %v2422
        %v2439 = vadd.f32 %v2359, %v2423
        %v2440 = vadd.f32 %v2360, %v2424
        %v2441 = vadd.f32 %v2361, %v2425
        %v2442 = vadd.f32 %v2362, %v2426
        %v2443 = vmul.f32 %v2427, 0.7978846
        %v2444 = vmul.f32 %v2428, 0.7978846
        %v2445 = vmul.f32 %v2429, 0.7978846
        %v2446 = vmul.f32 %v2430, 0.7978846
        %v2447 = vmul.f32 %v2431, 0.7978846
        %v2448 = vmul.f32 %v2432, 0.7978846
        %v2449 = vmul.f32 %v2433, 0.7978846
        %v2450 = vmul.f32 %v2434, 0.7978846
        %v2451 = vmul.f32 %v2435, 0.7978846
        %v2452 = vmul.f32 %v2436, 0.7978846
        %v2453 = vmul.f32 %v2437, 0.7978846
        %v2454 = vmul.f32 %v2438, 0.7978846
        %v2455 = vmul.f32 %v2439, 0.7978846
        %v2456 = vmul.f32 %v2440, 0.7978846
        %v2457 = vmul.f32 %v2441, 0.7978846
        %v2458 = vmul.f32 %v2442, 0.7978846
        %v2459 = vtanh.pop %v2443
        %v2460 = vtanh.pop %v2444
        %v2461 = vtanh.pop %v2445
        %v2462 = vtanh.pop %v2446
        %v2463 = vtanh.pop %v2447
        %v2464 = vtanh.pop %v2448
        %v2465 = vtanh.pop %v2449
        %v2466 = vtanh.pop %v2450
        %v2467 = vtanh.pop %v2451
        %v2468 = vtanh.pop %v2452
        %v2469 = vtanh.pop %v2453
        %v2470 = vtanh.pop %v2454
        %v2471 = vtanh.pop %v2455
        %v2472 = vtanh.pop %v2456
        %v2473 = vtanh.pop %v2457
        %v2474 = vtanh.pop %v2458
        %v2475 = vadd.f32 %v2459, 1.0
        %v2476 = vadd.f32 %v2460, 1.0
        %v2477 = vadd.f32 %v2461, 1.0
        %v2478 = vadd.f32 %v2462, 1.0
        %v2479 = vadd.f32 %v2463, 1.0
        %v2480 = vadd.f32 %v2464, 1.0
        %v2481 = vadd.f32 %v2465, 1.0
        %v2482 = vadd.f32 %v2466, 1.0
        %v2483 = vadd.f32 %v2467, 1.0
        %v2484 = vadd.f32 %v2468, 1.0
        %v2485 = vadd.f32 %v2469, 1.0
        %v2486 = vadd.f32 %v2470, 1.0
        %v2487 = vadd.f32 %v2471, 1.0
        %v2488 = vadd.f32 %v2472, 1.0
        %v2489 = vadd.f32 %v2473, 1.0
        %v2490 = vadd.f32 %v2474, 1.0
        %v2491 = vmul.f32 %v2363, %v2475
        %v2492 = vmul.f32 %v2364, %v2476
        %v2493 = vmul.f32 %v2365, %v2477
        %v2494 = vmul.f32 %v2366, %v2478
        %v2495 = vmul.f32 %v2367, %v2479
        %v2496 = vmul.f32 %v2368, %v2480
        %v2497 = vmul.f32 %v2369, %v2481
        %v2498 = vmul.f32 %v2370, %v2482
        %v2499 = vmul.f32 %v2371, %v2483
        %v2500 = vmul.f32 %v2372, %v2484
        %v2501 = vmul.f32 %v2373, %v2485
        %v2502 = vmul.f32 %v2374, %v2486
        %v2503 = vmul.f32 %v2375, %v2487
        %v2504 = vmul.f32 %v2376, %v2488
        %v2505 = vmul.f32 %v2377, %v2489
        %v2506 = vmul.f32 %v2378, %v2490
        %v2507 = vpack.c.bf16 %v2492, %v2491
        %v2508 = vpack.c.bf16 %v2494, %v2493
        %v2509 = vpack.c.bf16 %v2496, %v2495
        %v2510 = vpack.c.bf16 %v2498, %v2497
        %v2511 = vpack.c.bf16 %v2500, %v2499
        %v2512 = vpack.c.bf16 %v2502, %v2501
        %v2513 = vpack.c.bf16 %v2504, %v2503
        %v2514 = vpack.c.bf16 %v2506, %v2505
        %v2515 = vld [vmem:[#allocation12] sm:$0xf]
        %v2516 = vld [vmem:[#allocation12 + $0x4] sm:$0xf]
        %v2517 = vld [vmem:[#allocation12 + $0x8] sm:$0xf]
        %v2518 = vld [vmem:[#allocation12 + $0xc] sm:$0xf]
        %v2519 = vld [vmem:[#allocation12 + $0x10] sm:$0xf]
        %v2520 = vld [vmem:[#allocation12 + $0x14] sm:$0xf]
        %v2521 = vld [vmem:[#allocation12 + $0x18] sm:$0xf]
        %v2522 = vld [vmem:[#allocation12 + $0x1c] sm:$0xf]
        %v2523 = vld [vmem:[#allocation12 + $0x20] sm:$0xf]
        %v2524 = vld [vmem:[#allocation12 + $0x24] sm:$0xf]
        %v2525 = vld [vmem:[#allocation12 + $0x28] sm:$0xf]
        %v2526 = vld [vmem:[#allocation12 + $0x2c] sm:$0xf]
        %v2527 = vld [vmem:[#allocation12 + $0x30] sm:$0xf]
        %v2528 = vld [vmem:[#allocation12 + $0x34] sm:$0xf]
        %v2529 = vld [vmem:[#allocation12 + $0x38] sm:$0xf]
        %v2530 = vld [vmem:[#allocation12 + $0x3c] sm:$0xf]
        %v2531 = vld [vmem:[%s6] sm:$0x1]
        %v2533 = vlaneseq
        %v2534 = vshrl.u32 %v2533, 7
        %v2535 = vsub.s32 0, %v2534
        %v2536 = vrot.slane %v2531, %v2535
        %v2554 = vunpack.c.l.b16 %v2515
        %v2555 = vunpack.c.l.b16 %v2516
        %v2556 = vunpack.c.l.b16 %v2517
        %v2557 = vunpack.c.l.b16 %v2518
        %v2558 = vunpack.c.l.b16 %v2519
        %v2559 = vunpack.c.l.b16 %v2520
        %v2560 = vunpack.c.l.b16 %v2521
        %v2561 = vunpack.c.l.b16 %v2522
        %v2562 = vunpack.c.l.b16 %v2523
        %v2563 = vunpack.c.l.b16 %v2524
        %v2564 = vunpack.c.l.b16 %v2525
        %v2565 = vunpack.c.l.b16 %v2526
        %v2566 = vunpack.c.l.b16 %v2527
        %v2567 = vunpack.c.l.b16 %v2528
        %v2568 = vunpack.c.l.b16 %v2529
        %v2569 = vunpack.c.l.b16 %v2530
        %v2570 = vpack.c.b16 %v2555, %v2554
        %v2571 = vpack.c.b16 %v2557, %v2556
        %v2572 = vpack.c.b16 %v2559, %v2558
        %v2573 = vpack.c.b16 %v2561, %v2560
        %v2574 = vpack.c.b16 %v2563, %v2562
        %v2575 = vpack.c.b16 %v2565, %v2564
        %v2576 = vpack.c.b16 %v2567, %v2566
        %v2577 = vpack.c.b16 %v2569, %v2568
        %2586 = vmatprep.subr.bf16.mxu0 0
        %2587 = vmatpush1.bf16.msra.mxu0 %v2570
        %2588 = vmatprep.subr.bf16.mxu0 0
        %2589 = vmatpush1.bf16.msra.mxu0 %v2571
        %2590 = vmatprep.subr.bf16.mxu0 0
        %2591 = vmatpush1.bf16.msra.mxu0 %v2572
        %2592 = vmatprep.subr.bf16.mxu0 0
        %2593 = vmatpush1.bf16.msra.mxu0 %v2573
        %2594 = vmatprep.subr.bf16.mxu0 0
        %2595 = vmatpush1.bf16.msra.mxu0 %v2574
        %2596 = vmatprep.subr.bf16.mxu0 0
        %2597 = vmatpush1.bf16.msra.mxu0 %v2575
        %2598 = vmatprep.subr.bf16.mxu0 0
        %2599 = vmatpush1.bf16.msra.mxu0 %v2576
        %2600 = vmatprep.subr.bf16.mxu0 0
        %2601 = vmatpush1.bf16.msra.mxu0 %v2577
        %2602 = vmatprep.subr.bf16.mxu0 0
        %2603 = vmatpush1.bf16.msra.mxu0 0
        %2604 = vmatprep.subr.bf16.mxu0 0
        %2605 = vmatpush1.bf16.msra.mxu0 0
        %2606 = vmatprep.subr.bf16.mxu0 0
        %2607 = vmatpush1.bf16.msra.mxu0 0
        %2608 = vmatprep.subr.bf16.mxu0 0
        %2609 = vmatpush1.bf16.msra.mxu0 0
        %2610 = vmatprep.subr.bf16.mxu0 0
        %2611 = vmatpush1.bf16.msra.mxu0 0
        %2612 = vmatprep.subr.bf16.mxu0 0
        %2613 = vmatpush1.bf16.msra.mxu0 0
        %2614 = vmatprep.subr.bf16.mxu0 0
        %2615 = vmatpush1.bf16.msra.mxu0 0
        %2616 = vmatprep.subr.bf16.mxu0 0
        %2617 = vmatpush1.bf16.msra.mxu0 0
        %2618 = vmatprep.mubr.bf16.mxu0 0
        %2619 = vmatmul.mubr.bf16.gmra.mrb[0].mxu0 %v2507
        %v2620 = vpop.f32.mrb[0].mxu0
        %v2621 = vadd.f32 %v2536, %v2620
        %v2622 = vpop.f32.mrb[0].mxu0
        %v2623 = vpop.f32.mrb[0].mxu0
        %v2624 = vadd.f32 %v2536, %v2623
        %v2625 = vpop.f32.mrb[0].mxu0
        %2626 = vmatprep.mubr.bf16.mxu0 0
        %2627 = vmatmul.mubr.bf16.gmra.mrb[0].mxu0 %v2508
        %v2628 = vpop.f32.mrb[0].mxu0
        %v2629 = vadd.f32 %v2536, %v2628
        %v2630 = vpop.f32.mrb[0].mxu0
        %v2631 = vpop.f32.mrb[0].mxu0
        %v2632 = vadd.f32 %v2536, %v2631
        %v2633 = vpop.f32.mrb[0].mxu0
        %2634 = vmatprep.mubr.bf16.mxu0 0
        %2635 = vmatmul.mubr.bf16.gmra.mrb[0].mxu0 %v2509
        %v2636 = vpop.f32.mrb[0].mxu0
        %v2637 = vadd.f32 %v2536, %v2636
        %v2638 = vpop.f32.mrb[0].mxu0
        %v2639 = vpop.f32.mrb[0].mxu0
        %v2640 = vadd.f32 %v2536, %v2639
        %v2641 = vpop.f32.mrb[0].mxu0
        %2642 = vmatprep.mubr.bf16.mxu0 0
        %2643 = vmatmul.mubr.bf16.gmra.mrb[0].mxu0 %v2510
        %v2644 = vpop.f32.mrb[0].mxu0
        %v2645 = vadd.f32 %v2536, %v2644
        %v2646 = vpop.f32.mrb[0].mxu0
        %v2647 = vpop.f32.mrb[0].mxu0
        %v2648 = vadd.f32 %v2536, %v2647
        %v2649 = vpop.f32.mrb[0].mxu0
        %2650 = vmatprep.mubr.bf16.mxu0 0
        %2651 = vmatmul.mubr.bf16.gmra.mrb[0].mxu0 %v2511
        %v2652 = vpop.f32.mrb[0].mxu0
        %v2653 = vadd.f32 %v2536, %v2652
        %v2654 = vpop.f32.mrb[0].mxu0
        %v2655 = vpop.f32.mrb[0].mxu0
        %v2656 = vadd.f32 %v2536, %v2655
        %v2657 = vpop.f32.mrb[0].mxu0
        %2658 = vmatprep.mubr.bf16.mxu0 0
        %2659 = vmatmul.mubr.bf16.gmra.mrb[0].mxu0 %v2512
        %v2660 = vpop.f32.mrb[0].mxu0
        %v2661 = vadd.f32 %v2536, %v2660
        %v2662 = vpop.f32.mrb[0].mxu0
        %v2663 = vpop.f32.mrb[0].mxu0
        %v2664 = vadd.f32 %v2536, %v2663
        %v2665 = vpop.f32.mrb[0].mxu0
        %2666 = vmatprep.mubr.bf16.mxu0 0
        %2667 = vmatmul.mubr.bf16.gmra.mrb[0].mxu0 %v2513
        %v2668 = vpop.f32.mrb[0].mxu0
        %v2669 = vadd.f32 %v2536, %v2668
        %v2670 = vpop.f32.mrb[0].mxu0
        %v2671 = vpop.f32.mrb[0].mxu0
        %v2672 = vadd.f32 %v2536, %v2671
        %v2673 = vpop.f32.mrb[0].mxu0
        %2674 = vmatprep.mubr.bf16.mxu0 0
        %2675 = vmatmul.mubr.bf16.gmra.mrb[0].mxu0 %v2514
        %v2676 = vpop.f32.mrb[0].mxu0
        %v2677 = vadd.f32 %v2536, %v2676
        %v2678 = vpop.f32.mrb[0].mxu0
        %v2679 = vpop.f32.mrb[0].mxu0
        %v2680 = vadd.f32 %v2536, %v2679
        %v2681 = vpop.f32.mrb[0].mxu0
        %2682 = vdwg.mxu0
        %2683 = vst [vmem:[%s354] sm:$0xff] %v2621
        %2684 = vst [vmem:[%s354 + $0x8] sm:$0xff] %v2624
        %2685 = vst [vmem:[%s354 + $0x10] sm:$0xff] %v2629
        %2686 = vst [vmem:[%s354 + $0x18] sm:$0xff] %v2632
        %2687 = vst [vmem:[%s354 + $0x20] sm:$0xff] %v2637
        %2688 = vst [vmem:[%s354 + $0x28] sm:$0xff] %v2640
        %2689 = vst [vmem:[%s354 + $0x30] sm:$0xff] %v2645
        %2690 = vst [vmem:[%s354 + $0x38] sm:$0xff] %v2648
        %2691 = vst [vmem:[%s354 + $0x40] sm:$0xff] %v2653
        %2692 = vst [vmem:[%s354 + $0x48] sm:$0xff] %v2656
        %2693 = vst [vmem:[%s354 + $0x50] sm:$0xff] %v2661
        %2694 = vst [vmem:[%s354 + $0x58] sm:$0xff] %v2664
        %2695 = vst [vmem:[%s354 + $0x60] sm:$0xff] %v2669
        %2696 = vst [vmem:[%s354 + $0x68] sm:$0xff] %v2672
        %2697 = vst [vmem:[%s354 + $0x70] sm:$0xff] %v2677
        %2698 = vst [vmem:[%s354 + $0x78] sm:$0xff] %v2680
        %s2699 = sand.u32 %s200, 1
        %s2700 = scalar_lea.sflag [#allocation8], %s2699
        %s2701 = sand.u32 %s200, 1
        %s2702 = smul.addr %s2701, 128
        %s2703 = scalar_lea.vmem [#allocation14], %s2702
        // Predicated region
        $region73: #{tpu_custom_call.1} parent=47 // pred_check
          %p2704 = pneg %p210
        $region74: #{tpu_custom_call.1} parent=47 // pred_check_branch
          %2706 = sbr.rel (%p2704) target = $region76
        $region75: #{tpu_custom_call.1} parent=47 // pred_region
          %s2707 = smul.u32 16, %s31
          %s2709 = ssub.s32 2048, 2048
          %2710 = vsyncadd %s2700, %s2709
          %s2711 = smul.addr %s30, 32
          %s2712 = sadd.s32 %s2707, %s2711
          %s2713 = smul.addr %s2712, 128
          %s2714 = scalar_lea.hbm %s7, %s2713
          %s2715 = sshll.u32 %s2703, 4
          %s2716 = int_to_ptr.vmem [resolvable:$true] %s2715
          %2721 = dma.vmem_to_hbm [thread:$0]  %s2716, 2048, %s2714, %s2700, 128, 128, 8
        $region76: #{tpu_custom_call.1} parent=47 // pred_fallthru
          _
      $region48: #{tpu_custom_call.1} parent=5 // pred_fallthru
        _
      %p2722 = scmp.le.s32.totalorder 2, %s21
      // Predicated region
      $region77: #{tpu_custom_call.1} parent=5 // pred_check
        %p2723 = pneg %p2722
      $region78: #{tpu_custom_call.1} parent=5 // pred_check_branch
        %2725 = sbr.rel (%p2723) target = $region80
      $region79: #{tpu_custom_call.1} parent=5 // pred_region
        %s2726 = ssub.s32 %s21, 2
        // Predicated region
        $region81: #{tpu_custom_call.1} parent=79 // pred_check
          %p2727 = pneg %p216
        $region82: #{tpu_custom_call.1} parent=79 // pred_check_branch
          %2729 = sbr.rel (%p2727) target = $region84
        $region83: #{tpu_custom_call.1} parent=79 // pred_region
          %s2730 = sand.u32 %s201, 1
          %s2731 = scalar_lea.sflag [#allocation8], %s2730
          %s2732 = sand.u32 %s201, 1
          %s2733 = smul.addr %s2732, 128
          %s2734 = scalar_lea.vmem [#allocation14], %s2733
          %2735 = dma.done %s2731, 2048
        $region84: #{tpu_custom_call.1} parent=79 // pred_fallthru
          _
      $region80: #{tpu_custom_call.1} parent=5 // pred_fallthru
        _
    $region6: #{tpu_custom_call.1} parent=1 // loop_footer
      %s25 = sadd.s32 1, %s21
    $region7: #{tpu_custom_call.1} parent=1 // loop_footer_branch
      %20 = sbr.rel target = $region3
    $region8: #{tpu_custom_call.1} parent=1 // loop_exit
      _
    %2736 = vsyncpa [#allocation7], 1
    %s2737 = scalar_lea.sflag [#allocation7], 1
    %2738 = vsyncpa %s2737, 1
    %2739 = vsyncpa [#allocation10], 1
    %2740 = vsyncpa [#allocation13], 1
    %2741 = vsyncpa [#allocation8], 1
    %s2742 = scalar_lea.sflag [#allocation8], 1
    %2743 = vsyncpa %s2742, 1

</llo_original>
